<compile_context>
chip_gen: v6e
topology: v6e:2x2x1
jax: 0.10.0
libtpu: 0.0.40
codegen_flags: <defaults>
</compile_context>

<pallas_src>
import functools
import numpy as np
import jax
import jax.numpy as jnp
from jax.experimental import pallas as pl
from jax.experimental.pallas import tpu as pltpu

C_OUT, KH, KW = 10, 5, 5     # Conv2d(1, 10, 5)
W_IN = 64                    # input width required so Linear(30,10) is dimensionally valid
BP_MAX = 16                  # image-pairs per grid step (= 32 images)


def _fused_kernel(wc_ref, x_ref, wlane_ref, ob_ref, out_ref, *, bp, h_out):
    # wc_ref:    SMEM (C_OUT*KH*KW,) f32  -- flattened conv weights (scalar prefetch)
    # x_ref:     VMEM (bp, H, 128)        -- two images packed per 128-lane row
    # wlane_ref: VMEM (1, 128)            -- folded head weights on even lanes (both halves)
    # ob_ref:    VMEM (1, 128)            -- folded output bias on lanes 0..19
    # out_ref:   VMEM (bp, h_out-1, 128)  -- lane-dense output slab (valid on even rows)
    khw = KH * KW
    h_m1 = h_out - 1
    wpk = 2 * W_IN - KW + 1                                   # 124-lane tap-shifted slab
    xp = x_ref[...]                                           # (bp, H, 128)

    # 25 tap-shifted tiles, materialized ONCE per grid step, reused by all 10 channels.
    tiles = [xp[:, di:di + h_out, dj:dj + wpk]
             for di in range(KH) for dj in range(KW)]         # each (bp, h_out, 124)
    w_row = wlane_ref[...][:, :wpk - 1]                       # (1, 123) head weights

    cols_a, cols_b = [], []
    for c in range(C_OUT):
        base = c * khw
        acc = wc_ref[base] * tiles[0]
        for k in range(1, khw):
            acc = acc + wc_ref[base + k] * tiles[k]           # (bp, h_out, 124)
        # 2x2 max-pool: lane-pair max (valid at even lane offsets within each image half)
        pm = jnp.maximum(acc[:, :, :wpk - 1], acc[:, :, 1:wpk])      # (bp, h_out, 123)
        # row-pair max (valid at even rows; odd rows are dropped in the wrapper)
        rp = jnp.maximum(pm[:, :h_m1, :], pm[:, 1:h_out, :])         # (bp, h_m1, 123)
        # folded Linear(30,10)->Linear(10,5)->Linear(5,1): weighted lane sum per image half
        wgt = rp * w_row
        cols_a.append(jnp.sum(wgt[:, :, :W_IN], axis=-1, keepdims=True))   # image A
        cols_b.append(jnp.sum(wgt[:, :, W_IN:], axis=-1, keepdims=True))   # image B

    pad = jnp.zeros((bp, h_m1, 128 - 2 * C_OUT), jnp.float32)
    out_ref[...] = jnp.concatenate(cols_a + cols_b + [pad], axis=-1) + ob_ref[...]


@jax.jit
def toy_model_forward(x, params):
    wc, bc, w1, b1, w2, b2, w3, b3 = [jnp.asarray(p, jnp.float32) for p in params]
    x = jnp.asarray(x, jnp.float32)
    n, cin, h, w = x.shape
    assert cin == 1, "ToyModel's Conv2d expects a single input channel"
    assert w == W_IN, "input width must be 64 so Linear(30,10) is dimensionally valid"
    assert h >= KH + 1, "need at least 2 conv output rows for the 2x2 pool"
    h_out, w_out = h - KH + 1, w - KW + 1
    hp, wp = h_out // 2, w_out // 2
    assert wp == w1.shape[1], "pooled width must equal Linear(30,10) input"
    h_m1 = h_out - 1

    # ---- host-side algebraic fold of the activation-free head ----------------
    w_head = (w1.T @ w2.T @ w3.T)[:, 0]                       # (30,)
    b_head = ((b1 @ w2.T + b2) @ w3.T + b3)[0]                # scalar
    ob = bc * jnp.sum(w_head) + b_head                        # (10,) folded bias
    ob_vec = jnp.zeros((1, 128), jnp.float32).at[0, 0:C_OUT].set(ob) \
                                             .at[0, C_OUT:2 * C_OUT].set(ob)
    w_lane = jnp.zeros((1, 128), jnp.float32)
    w_lane = w_lane.at[0, 0:2 * wp:2].set(w_head)             # image A (lanes 0..58 even)
    w_lane = w_lane.at[0, W_IN:W_IN + 2 * wp:2].set(w_head)   # image B (lanes 64..122 even)

    # ---- pack two 64-wide images per 128-lane row -----------------------------
    n2 = 2 * pl.cdiv(n, 2)
    xs = x[:, 0]                                              # (n, H, 64)
    if n2 != n:
        xs = jnp.pad(xs, ((0, n2 - n), (0, 0), (0, 0)))
    npairs = n2 // 2
    xp = xs.reshape(npairs, 2, h, w).transpose(0, 2, 1, 3).reshape(npairs, h, 2 * w)

    # ---- batch blocking (>=2 grid steps whenever possible, for megacore) ------
    bp = 1 if npairs == 1 else min(BP_MAX, pl.cdiv(npairs, 2))
    npairs_pad = pl.cdiv(npairs, bp) * bp
    if npairs_pad != npairs:
        xp = jnp.pad(xp, ((0, npairs_pad - npairs), (0, 0), (0, 0)))

    kernel = functools.partial(_fused_kernel, bp=bp, h_out=h_out)
    grid_spec = pltpu.PrefetchScalarGridSpec(
        num_scalar_prefetch=1,
        grid=(npairs_pad // bp,),
        in_specs=[
            pl.BlockSpec((bp, h, 2 * w), lambda i, wcr: (i, 0, 0)),
            pl.BlockSpec((1, 128), lambda i, wcr: (0, 0)),
            pl.BlockSpec((1, 128), lambda i, wcr: (0, 0)),
        ],
        out_specs=pl.BlockSpec((bp, h_m1, 128), lambda i, wcr: (i, 0, 0)),
    )
    out = pl.pallas_call(
        kernel,
        grid_spec=grid_spec,
        out_shape=jax.ShapeDtypeStruct((npairs_pad, h_m1, 128), jnp.float32),
        compiler_params=pltpu.CompilerParams(dimension_semantics=("parallel",)),
    )(wc.reshape(-1), xp, w_lane, ob_vec)

    # ---- unpack: (npairs_pad, h_out-1, 128) -> (n, 10, hp, 1) ------------------
    res = out[:npairs, 0:2 * hp:2, :2 * C_OUT]                # even rows, real lanes
    res = jnp.stack([res[:, :, :C_OUT], res[:, :, C_OUT:2 * C_OUT]], axis=1)
    res = res.reshape(npairs * 2, hp, C_OUT)[:n]              # (n, hp, 10)
    return jnp.transpose(res, (0, 2, 1))[..., None]           # (n, 10, hp, 1)


def reference_forward(x, params):
    """Pure-JAX reference mirroring the PyTorch forward (unfused, unfolded)."""
    wc, bc, w1, b1, w2, b2, w3, b3 = params
    x = jnp.asarray(x, jnp.float32)
    n, _, h, w = x.shape
    h_out, w_out = h - KH + 1, w - KW + 1
    hp, wp = h_out // 2, w_out // 2
    acc = jnp.zeros((n, C_OUT, h_out, w_out), jnp.float32) + bc[None, :, None, None]
    for di in range(KH):
        for dj in range(KW):
            acc = acc + (wc[:, 0, di, dj][None, :, None, None]
                         * x[:, :, di:di + h_out, dj:dj + w_out])
    a = acc[:, :, 0:2 * hp:2, 0:2 * wp:2]
    b_ = acc[:, :, 0:2 * hp:2, 1:2 * wp:2]
    c_ = acc[:, :, 1:2 * hp:2, 0:2 * wp:2]
    d_ = acc[:, :, 1:2 * hp:2, 1:2 * wp:2]
    pool = jnp.maximum(jnp.maximum(a, b_), jnp.maximum(c_, d_))
    x3 = jnp.matmul(pool, w1.T) + b1
    x4 = jnp.matmul(x3, w2.T) + b2
    x5 = jnp.matmul(x4, w3.T) + b3
    return x5


if __name__ == "__main__":
    key = jax.random.PRNGKey(0)
    ks = jax.random.split(key, 9)
    # N=5 exercises odd-batch padding, 2-image lane packing, pair padding and a 2-step grid.
    N, H, W = 5, 12, 64   # W must be 64 so Linear(30, 10) is dimensionally valid
    x = jax.random.normal(ks[0], (N, 1, H, W), jnp.float32)

    wc = jax.random.normal(ks[1], (10, 1, 5, 5), jnp.float32) * 0.2
    bc = jax.random.normal(ks[2], (10,), jnp.float32) * 0.1
    w1 = jax.random.normal(ks[3], (10, 30), jnp.float32) * (30 ** -0.5)
    b1 = jax.random.normal(ks[4], (10,), jnp.float32) * 0.1
    w2 = jax.random.normal(ks[5], (5, 10), jnp.float32) * (10 ** -0.5)
    b2 = jax.random.normal(ks[6], (5,), jnp.float32) * 0.1
    w3 = jax.random.normal(ks[7], (1, 5), jnp.float32) * (5 ** -0.5)
    b3 = jax.random.normal(ks[8], (1,), jnp.float32) * 0.1
    params = (wc, bc, w1, b1, w2, b2, w3, b3)

    out = jax.block_until_ready(toy_model_forward(x, params))
    assert out.shape == (N, 10, (H - 4) // 2, 1), out.shape

    ref = reference_forward(x, params)
    np.testing.assert_allclose(np.asarray(out), np.asarray(ref), rtol=1e-3, atol=1e-3)
    print("KERNEL_OK")
</pallas_src>

<mosaic_0001>
module attributes {stable_mosaic.version = 11 : i64} {
  func.func @_fused_kernel(%arg0: i32, %arg1: memref<250xf32, #tpu.memory_space<smem>>, %arg2: memref<2x12x128xf32, #tpu.memory_space<vmem>>, %arg3: memref<1x128xf32, #tpu.memory_space<vmem>>, %arg4: memref<1x128xf32, #tpu.memory_space<vmem>>, %arg5: memref<2x7x128xf32, #tpu.memory_space<vmem>>) attributes {dimension_semantics = [#tpu.dimension_semantics<parallel>], iteration_bounds = array<i64: 2>, scalar_prefetch = 1 : i64, scratch_operands = 0 : i64, tpu.core_type = #tpu.core_type<tc>, window_params = [{transform_indices = @transform_0, window_bounds = array<i64: 2, 12, 128>}, {pipeline_mode = #tpu.pipeline_mode<synchronous>, transform_indices = @transform_1, window_bounds = array<i64: 1, 128>}, {pipeline_mode = #tpu.pipeline_mode<synchronous>, transform_indices = @transform_2, window_bounds = array<i64: 1, 128>}, {transform_indices = @transform_3, window_bounds = array<i64: 2, 7, 128>}]} {
    %c0 = arith.constant 0 : index
    %c0_0 = arith.constant 0 : index
    %c0_1 = arith.constant 0 : index
    %0 = vector.load %arg2[%c0, %c0_0, %c0_1] : memref<2x12x128xf32, #tpu.memory_space<vmem>>, vector<2x12x128xf32>
    %1 = vector.extract_strided_slice %0 {offsets = [0, 0, 0], sizes = [2, 8, 124], strides = [1, 1, 1]} : vector<2x12x128xf32> to vector<2x8x124xf32>
    %2 = vector.extract_strided_slice %0 {offsets = [0, 0, 1], sizes = [2, 8, 124], strides = [1, 1, 1]} : vector<2x12x128xf32> to vector<2x8x124xf32>
    %3 = vector.extract_strided_slice %0 {offsets = [0, 0, 2], sizes = [2, 8, 124], strides = [1, 1, 1]} : vector<2x12x128xf32> to vector<2x8x124xf32>
    %4 = vector.extract_strided_slice %0 {offsets = [0, 0, 3], sizes = [2, 8, 124], strides = [1, 1, 1]} : vector<2x12x128xf32> to vector<2x8x124xf32>
    %5 = vector.extract_strided_slice %0 {offsets = [0, 0, 4], sizes = [2, 8, 124], strides = [1, 1, 1]} : vector<2x12x128xf32> to vector<2x8x124xf32>
    %6 = vector.extract_strided_slice %0 {offsets = [0, 1, 0], sizes = [2, 8, 124], strides = [1, 1, 1]} : vector<2x12x128xf32> to vector<2x8x124xf32>
    %7 = vector.extract_strided_slice %0 {offsets = [0, 1, 1], sizes = [2, 8, 124], strides = [1, 1, 1]} : vector<2x12x128xf32> to vector<2x8x124xf32>
    %8 = vector.extract_strided_slice %0 {offsets = [0, 1, 2], sizes = [2, 8, 124], strides = [1, 1, 1]} : vector<2x12x128xf32> to vector<2x8x124xf32>
    %9 = vector.extract_strided_slice %0 {offsets = [0, 1, 3], sizes = [2, 8, 124], strides = [1, 1, 1]} : vector<2x12x128xf32> to vector<2x8x124xf32>
    %10 = vector.extract_strided_slice %0 {offsets = [0, 1, 4], sizes = [2, 8, 124], strides = [1, 1, 1]} : vector<2x12x128xf32> to vector<2x8x124xf32>
    %11 = vector.extract_strided_slice %0 {offsets = [0, 2, 0], sizes = [2, 8, 124], strides = [1, 1, 1]} : vector<2x12x128xf32> to vector<2x8x124xf32>
    %12 = vector.extract_strided_slice %0 {offsets = [0, 2, 1], sizes = [2, 8, 124], strides = [1, 1, 1]} : vector<2x12x128xf32> to vector<2x8x124xf32>
    %13 = vector.extract_strided_slice %0 {offsets = [0, 2, 2], sizes = [2, 8, 124], strides = [1, 1, 1]} : vector<2x12x128xf32> to vector<2x8x124xf32>
    %14 = vector.extract_strided_slice %0 {offsets = [0, 2, 3], sizes = [2, 8, 124], strides = [1, 1, 1]} : vector<2x12x128xf32> to vector<2x8x124xf32>
    %15 = vector.extract_strided_slice %0 {offsets = [0, 2, 4], sizes = [2, 8, 124], strides = [1, 1, 1]} : vector<2x12x128xf32> to vector<2x8x124xf32>
    %16 = vector.extract_strided_slice %0 {offsets = [0, 3, 0], sizes = [2, 8, 124], strides = [1, 1, 1]} : vector<2x12x128xf32> to vector<2x8x124xf32>
    %17 = vector.extract_strided_slice %0 {offsets = [0, 3, 1], sizes = [2, 8, 124], strides = [1, 1, 1]} : vector<2x12x128xf32> to vector<2x8x124xf32>
    %18 = vector.extract_strided_slice %0 {offsets = [0, 3, 2], sizes = [2, 8, 124], strides = [1, 1, 1]} : vector<2x12x128xf32> to vector<2x8x124xf32>
    %19 = vector.extract_strided_slice %0 {offsets = [0, 3, 3], sizes = [2, 8, 124], strides = [1, 1, 1]} : vector<2x12x128xf32> to vector<2x8x124xf32>
    %20 = vector.extract_strided_slice %0 {offsets = [0, 3, 4], sizes = [2, 8, 124], strides = [1, 1, 1]} : vector<2x12x128xf32> to vector<2x8x124xf32>
    %21 = vector.extract_strided_slice %0 {offsets = [0, 4, 0], sizes = [2, 8, 124], strides = [1, 1, 1]} : vector<2x12x128xf32> to vector<2x8x124xf32>
    %22 = vector.extract_strided_slice %0 {offsets = [0, 4, 1], sizes = [2, 8, 124], strides = [1, 1, 1]} : vector<2x12x128xf32> to vector<2x8x124xf32>
    %23 = vector.extract_strided_slice %0 {offsets = [0, 4, 2], sizes = [2, 8, 124], strides = [1, 1, 1]} : vector<2x12x128xf32> to vector<2x8x124xf32>
    %24 = vector.extract_strided_slice %0 {offsets = [0, 4, 3], sizes = [2, 8, 124], strides = [1, 1, 1]} : vector<2x12x128xf32> to vector<2x8x124xf32>
    %25 = vector.extract_strided_slice %0 {offsets = [0, 4, 4], sizes = [2, 8, 124], strides = [1, 1, 1]} : vector<2x12x128xf32> to vector<2x8x124xf32>
    %c0_2 = arith.constant 0 : index
    %c0_3 = arith.constant 0 : index
    %26 = vector.load %arg3[%c0_2, %c0_3] : memref<1x128xf32, #tpu.memory_space<vmem>>, vector<1x128xf32>
    %27 = vector.extract_strided_slice %26 {offsets = [0, 0], sizes = [1, 123], strides = [1, 1]} : vector<1x128xf32> to vector<1x123xf32>
    %c0_4 = arith.constant 0 : index
    %28 = memref.load %arg1[%c0_4] : memref<250xf32, #tpu.memory_space<smem>>
    %29 = vector.broadcast %28 : f32 to vector<2x8x124xf32>
    %30 = arith.mulf %29, %1 : vector<2x8x124xf32>
    %c1 = arith.constant 1 : index
    %31 = memref.load %arg1[%c1] : memref<250xf32, #tpu.memory_space<smem>>
    %32 = vector.broadcast %31 : f32 to vector<2x8x124xf32>
    %33 = arith.mulf %32, %2 : vector<2x8x124xf32>
    %34 = arith.addf %30, %33 : vector<2x8x124xf32>
    %c2 = arith.constant 2 : index
    %35 = memref.load %arg1[%c2] : memref<250xf32, #tpu.memory_space<smem>>
    %36 = vector.broadcast %35 : f32 to vector<2x8x124xf32>
    %37 = arith.mulf %36, %3 : vector<2x8x124xf32>
    %38 = arith.addf %34, %37 : vector<2x8x124xf32>
    %c3 = arith.constant 3 : index
    %39 = memref.load %arg1[%c3] : memref<250xf32, #tpu.memory_space<smem>>
    %40 = vector.broadcast %39 : f32 to vector<2x8x124xf32>
    %41 = arith.mulf %40, %4 : vector<2x8x124xf32>
    %42 = arith.addf %38, %41 : vector<2x8x124xf32>
    %c4 = arith.constant 4 : index
    %43 = memref.load %arg1[%c4] : memref<250xf32, #tpu.memory_space<smem>>
    %44 = vector.broadcast %43 : f32 to vector<2x8x124xf32>
    %45 = arith.mulf %44, %5 : vector<2x8x124xf32>
    %46 = arith.addf %42, %45 : vector<2x8x124xf32>
    %c5 = arith.constant 5 : index
    %47 = memref.load %arg1[%c5] : memref<250xf32, #tpu.memory_space<smem>>
    %48 = vector.broadcast %47 : f32 to vector<2x8x124xf32>
    %49 = arith.mulf %48, %6 : vector<2x8x124xf32>
    %50 = arith.addf %46, %49 : vector<2x8x124xf32>
    %c6 = arith.constant 6 : index
    %51 = memref.load %arg1[%c6] : memref<250xf32, #tpu.memory_space<smem>>
    %52 = vector.broadcast %51 : f32 to vector<2x8x124xf32>
    %53 = arith.mulf %52, %7 : vector<2x8x124xf32>
    %54 = arith.addf %50, %53 : vector<2x8x124xf32>
    %c7 = arith.constant 7 : index
    %55 = memref.load %arg1[%c7] : memref<250xf32, #tpu.memory_space<smem>>
    %56 = vector.broadcast %55 : f32 to vector<2x8x124xf32>
    %57 = arith.mulf %56, %8 : vector<2x8x124xf32>
    %58 = arith.addf %54, %57 : vector<2x8x124xf32>
    %c8 = arith.constant 8 : index
    %59 = memref.load %arg1[%c8] : memref<250xf32, #tpu.memory_space<smem>>
    %60 = vector.broadcast %59 : f32 to vector<2x8x124xf32>
    %61 = arith.mulf %60, %9 : vector<2x8x124xf32>
    %62 = arith.addf %58, %61 : vector<2x8x124xf32>
    %c9 = arith.constant 9 : index
    %63 = memref.load %arg1[%c9] : memref<250xf32, #tpu.memory_space<smem>>
    %64 = vector.broadcast %63 : f32 to vector<2x8x124xf32>
    %65 = arith.mulf %64, %10 : vector<2x8x124xf32>
    %66 = arith.addf %62, %65 : vector<2x8x124xf32>
    %c10 = arith.constant 10 : index
    %67 = memref.load %arg1[%c10] : memref<250xf32, #tpu.memory_space<smem>>
    %68 = vector.broadcast %67 : f32 to vector<2x8x124xf32>
    %69 = arith.mulf %68, %11 : vector<2x8x124xf32>
    %70 = arith.addf %66, %69 : vector<2x8x124xf32>
    %c11 = arith.constant 11 : index
    %71 = memref.load %arg1[%c11] : memref<250xf32, #tpu.memory_space<smem>>
    %72 = vector.broadcast %71 : f32 to vector<2x8x124xf32>
    %73 = arith.mulf %72, %12 : vector<2x8x124xf32>
    %74 = arith.addf %70, %73 : vector<2x8x124xf32>
    %c12 = arith.constant 12 : index
    %75 = memref.load %arg1[%c12] : memref<250xf32, #tpu.memory_space<smem>>
    %76 = vector.broadcast %75 : f32 to vector<2x8x124xf32>
    %77 = arith.mulf %76, %13 : vector<2x8x124xf32>
    %78 = arith.addf %74, %77 : vector<2x8x124xf32>
    %c13 = arith.constant 13 : index
    %79 = memref.load %arg1[%c13] : memref<250xf32, #tpu.memory_space<smem>>
    %80 = vector.broadcast %79 : f32 to vector<2x8x124xf32>
    %81 = arith.mulf %80, %14 : vector<2x8x124xf32>
    %82 = arith.addf %78, %81 : vector<2x8x124xf32>
    %c14 = arith.constant 14 : index
    %83 = memref.load %arg1[%c14] : memref<250xf32, #tpu.memory_space<smem>>
    %84 = vector.broadcast %83 : f32 to vector<2x8x124xf32>
    %85 = arith.mulf %84, %15 : vector<2x8x124xf32>
    %86 = arith.addf %82, %85 : vector<2x8x124xf32>
    %c15 = arith.constant 15 : index
    %87 = memref.load %arg1[%c15] : memref<250xf32, #tpu.memory_space<smem>>
    %88 = vector.broadcast %87 : f32 to vector<2x8x124xf32>
    %89 = arith.mulf %88, %16 : vector<2x8x124xf32>
    %90 = arith.addf %86, %89 : vector<2x8x124xf32>
    %c16 = arith.constant 16 : index
    %91 = memref.load %arg1[%c16] : memref<250xf32, #tpu.memory_space<smem>>
    %92 = vector.broadcast %91 : f32 to vector<2x8x124xf32>
    %93 = arith.mulf %92, %17 : vector<2x8x124xf32>
    %94 = arith.addf %90, %93 : vector<2x8x124xf32>
    %c17 = arith.constant 17 : index
    %95 = memref.load %arg1[%c17] : memref<250xf32, #tpu.memory_space<smem>>
    %96 = vector.broadcast %95 : f32 to vector<2x8x124xf32>
    %97 = arith.mulf %96, %18 : vector<2x8x124xf32>
    %98 = arith.addf %94, %97 : vector<2x8x124xf32>
    %c18 = arith.constant 18 : index
    %99 = memref.load %arg1[%c18] : memref<250xf32, #tpu.memory_space<smem>>
    %100 = vector.broadcast %99 : f32 to vector<2x8x124xf32>
    %101 = arith.mulf %100, %19 : vector<2x8x124xf32>
    %102 = arith.addf %98, %101 : vector<2x8x124xf32>
    %c19 = arith.constant 19 : index
    %103 = memref.load %arg1[%c19] : memref<250xf32, #tpu.memory_space<smem>>
    %104 = vector.broadcast %103 : f32 to vector<2x8x124xf32>
    %105 = arith.mulf %104, %20 : vector<2x8x124xf32>
    %106 = arith.addf %102, %105 : vector<2x8x124xf32>
    %c20 = arith.constant 20 : index
    %107 = memref.load %arg1[%c20] : memref<250xf32, #tpu.memory_space<smem>>
    %108 = vector.broadcast %107 : f32 to vector<2x8x124xf32>
    %109 = arith.mulf %108, %21 : vector<2x8x124xf32>
    %110 = arith.addf %106, %109 : vector<2x8x124xf32>
    %c21 = arith.constant 21 : index
    %111 = memref.load %arg1[%c21] : memref<250xf32, #tpu.memory_space<smem>>
    %112 = vector.broadcast %111 : f32 to vector<2x8x124xf32>
    %113 = arith.mulf %112, %22 : vector<2x8x124xf32>
    %114 = arith.addf %110, %113 : vector<2x8x124xf32>
    %c22 = arith.constant 22 : index
    %115 = memref.load %arg1[%c22] : memref<250xf32, #tpu.memory_space<smem>>
    %116 = vector.broadcast %115 : f32 to vector<2x8x124xf32>
    %117 = arith.mulf %116, %23 : vector<2x8x124xf32>
    %118 = arith.addf %114, %117 : vector<2x8x124xf32>
    %c23 = arith.constant 23 : index
    %119 = memref.load %arg1[%c23] : memref<250xf32, #tpu.memory_space<smem>>
    %120 = vector.broadcast %119 : f32 to vector<2x8x124xf32>
    %121 = arith.mulf %120, %24 : vector<2x8x124xf32>
    %122 = arith.addf %118, %121 : vector<2x8x124xf32>
    %c24 = arith.constant 24 : index
    %123 = memref.load %arg1[%c24] : memref<250xf32, #tpu.memory_space<smem>>
    %124 = vector.broadcast %123 : f32 to vector<2x8x124xf32>
    %125 = arith.mulf %124, %25 : vector<2x8x124xf32>
    %126 = arith.addf %122, %125 : vector<2x8x124xf32>
    %127 = vector.extract_strided_slice %126 {offsets = [0, 0, 0], sizes = [2, 8, 123], strides = [1, 1, 1]} : vector<2x8x124xf32> to vector<2x8x123xf32>
    %128 = vector.extract_strided_slice %126 {offsets = [0, 0, 1], sizes = [2, 8, 123], strides = [1, 1, 1]} : vector<2x8x124xf32> to vector<2x8x123xf32>
    %129 = arith.maximumf %127, %128 : vector<2x8x123xf32>
    %130 = vector.extract_strided_slice %129 {offsets = [0, 0, 0], sizes = [2, 7, 123], strides = [1, 1, 1]} : vector<2x8x123xf32> to vector<2x7x123xf32>
    %131 = vector.extract_strided_slice %129 {offsets = [0, 1, 0], sizes = [2, 7, 123], strides = [1, 1, 1]} : vector<2x8x123xf32> to vector<2x7x123xf32>
    %132 = arith.maximumf %130, %131 : vector<2x7x123xf32>
    %133 = vector.shape_cast %27 : vector<1x123xf32> to vector<1x1x123xf32>
    %134 = vector.broadcast %133 : vector<1x1x123xf32> to vector<2x7x123xf32>
    %135 = arith.mulf %132, %134 : vector<2x7x123xf32>
    %136 = vector.extract_strided_slice %135 {offsets = [0, 0, 0], sizes = [2, 7, 64], strides = [1, 1, 1]} : vector<2x7x123xf32> to vector<2x7x64xf32>
    %cst = arith.constant dense<0.000000e+00> : vector<2x7xf32>
    %137 = vector.multi_reduction <add>, %136, %cst [2] : vector<2x7x64xf32> to vector<2x7xf32>
    %138 = vector.shape_cast %137 : vector<2x7xf32> to vector<2x7x1xf32>
    %139 = vector.extract_strided_slice %135 {offsets = [0, 0, 64], sizes = [2, 7, 59], strides = [1, 1, 1]} : vector<2x7x123xf32> to vector<2x7x59xf32>
    %cst_5 = arith.constant dense<0.000000e+00> : vector<2x7xf32>
    %140 = vector.multi_reduction <add>, %139, %cst_5 [2] : vector<2x7x59xf32> to vector<2x7xf32>
    %141 = vector.shape_cast %140 : vector<2x7xf32> to vector<2x7x1xf32>
    %c25 = arith.constant 25 : index
    %142 = memref.load %arg1[%c25] : memref<250xf32, #tpu.memory_space<smem>>
    %143 = vector.broadcast %142 : f32 to vector<2x8x124xf32>
    %144 = arith.mulf %143, %1 : vector<2x8x124xf32>
    %c26 = arith.constant 26 : index
    %145 = memref.load %arg1[%c26] : memref<250xf32, #tpu.memory_space<smem>>
    %146 = vector.broadcast %145 : f32 to vector<2x8x124xf32>
    %147 = arith.mulf %146, %2 : vector<2x8x124xf32>
    %148 = arith.addf %144, %147 : vector<2x8x124xf32>
    %c27 = arith.constant 27 : index
    %149 = memref.load %arg1[%c27] : memref<250xf32, #tpu.memory_space<smem>>
    %150 = vector.broadcast %149 : f32 to vector<2x8x124xf32>
    %151 = arith.mulf %150, %3 : vector<2x8x124xf32>
    %152 = arith.addf %148, %151 : vector<2x8x124xf32>
    %c28 = arith.constant 28 : index
    %153 = memref.load %arg1[%c28] : memref<250xf32, #tpu.memory_space<smem>>
    %154 = vector.broadcast %153 : f32 to vector<2x8x124xf32>
    %155 = arith.mulf %154, %4 : vector<2x8x124xf32>
    %156 = arith.addf %152, %155 : vector<2x8x124xf32>
    %c29 = arith.constant 29 : index
    %157 = memref.load %arg1[%c29] : memref<250xf32, #tpu.memory_space<smem>>
    %158 = vector.broadcast %157 : f32 to vector<2x8x124xf32>
    %159 = arith.mulf %158, %5 : vector<2x8x124xf32>
    %160 = arith.addf %156, %159 : vector<2x8x124xf32>
    %c30 = arith.constant 30 : index
    %161 = memref.load %arg1[%c30] : memref<250xf32, #tpu.memory_space<smem>>
    %162 = vector.broadcast %161 : f32 to vector<2x8x124xf32>
    %163 = arith.mulf %162, %6 : vector<2x8x124xf32>
    %164 = arith.addf %160, %163 : vector<2x8x124xf32>
    %c31 = arith.constant 31 : index
    %165 = memref.load %arg1[%c31] : memref<250xf32, #tpu.memory_space<smem>>
    %166 = vector.broadcast %165 : f32 to vector<2x8x124xf32>
    %167 = arith.mulf %166, %7 : vector<2x8x124xf32>
    %168 = arith.addf %164, %167 : vector<2x8x124xf32>
    %c32 = arith.constant 32 : index
    %169 = memref.load %arg1[%c32] : memref<250xf32, #tpu.memory_space<smem>>
    %170 = vector.broadcast %169 : f32 to vector<2x8x124xf32>
    %171 = arith.mulf %170, %8 : vector<2x8x124xf32>
    %172 = arith.addf %168, %171 : vector<2x8x124xf32>
    %c33 = arith.constant 33 : index
    %173 = memref.load %arg1[%c33] : memref<250xf32, #tpu.memory_space<smem>>
    %174 = vector.broadcast %173 : f32 to vector<2x8x124xf32>
    %175 = arith.mulf %174, %9 : vector<2x8x124xf32>
    %176 = arith.addf %172, %175 : vector<2x8x124xf32>
    %c34 = arith.constant 34 : index
    %177 = memref.load %arg1[%c34] : memref<250xf32, #tpu.memory_space<smem>>
    %178 = vector.broadcast %177 : f32 to vector<2x8x124xf32>
    %179 = arith.mulf %178, %10 : vector<2x8x124xf32>
    %180 = arith.addf %176, %179 : vector<2x8x124xf32>
    %c35 = arith.constant 35 : index
    %181 = memref.load %arg1[%c35] : memref<250xf32, #tpu.memory_space<smem>>
    %182 = vector.broadcast %181 : f32 to vector<2x8x124xf32>
    %183 = arith.mulf %182, %11 : vector<2x8x124xf32>
    %184 = arith.addf %180, %183 : vector<2x8x124xf32>
    %c36 = arith.constant 36 : index
    %185 = memref.load %arg1[%c36] : memref<250xf32, #tpu.memory_space<smem>>
    %186 = vector.broadcast %185 : f32 to vector<2x8x124xf32>
    %187 = arith.mulf %186, %12 : vector<2x8x124xf32>
    %188 = arith.addf %184, %187 : vector<2x8x124xf32>
    %c37 = arith.constant 37 : index
    %189 = memref.load %arg1[%c37] : memref<250xf32, #tpu.memory_space<smem>>
    %190 = vector.broadcast %189 : f32 to vector<2x8x124xf32>
    %191 = arith.mulf %190, %13 : vector<2x8x124xf32>
    %192 = arith.addf %188, %191 : vector<2x8x124xf32>
    %c38 = arith.constant 38 : index
    %193 = memref.load %arg1[%c38] : memref<250xf32, #tpu.memory_space<smem>>
    %194 = vector.broadcast %193 : f32 to vector<2x8x124xf32>
    %195 = arith.mulf %194, %14 : vector<2x8x124xf32>
    %196 = arith.addf %192, %195 : vector<2x8x124xf32>
    %c39 = arith.constant 39 : index
    %197 = memref.load %arg1[%c39] : memref<250xf32, #tpu.memory_space<smem>>
    %198 = vector.broadcast %197 : f32 to vector<2x8x124xf32>
    %199 = arith.mulf %198, %15 : vector<2x8x124xf32>
    %200 = arith.addf %196, %199 : vector<2x8x124xf32>
    %c40 = arith.constant 40 : index
    %201 = memref.load %arg1[%c40] : memref<250xf32, #tpu.memory_space<smem>>
    %202 = vector.broadcast %201 : f32 to vector<2x8x124xf32>
    %203 = arith.mulf %202, %16 : vector<2x8x124xf32>
    %204 = arith.addf %200, %203 : vector<2x8x124xf32>
    %c41 = arith.constant 41 : index
    %205 = memref.load %arg1[%c41] : memref<250xf32, #tpu.memory_space<smem>>
    %206 = vector.broadcast %205 : f32 to vector<2x8x124xf32>
    %207 = arith.mulf %206, %17 : vector<2x8x124xf32>
    %208 = arith.addf %204, %207 : vector<2x8x124xf32>
    %c42 = arith.constant 42 : index
    %209 = memref.load %arg1[%c42] : memref<250xf32, #tpu.memory_space<smem>>
    %210 = vector.broadcast %209 : f32 to vector<2x8x124xf32>
    %211 = arith.mulf %210, %18 : vector<2x8x124xf32>
    %212 = arith.addf %208, %211 : vector<2x8x124xf32>
    %c43 = arith.constant 43 : index
    %213 = memref.load %arg1[%c43] : memref<250xf32, #tpu.memory_space<smem>>
    %214 = vector.broadcast %213 : f32 to vector<2x8x124xf32>
    %215 = arith.mulf %214, %19 : vector<2x8x124xf32>
    %216 = arith.addf %212, %215 : vector<2x8x124xf32>
    %c44 = arith.constant 44 : index
    %217 = memref.load %arg1[%c44] : memref<250xf32, #tpu.memory_space<smem>>
    %218 = vector.broadcast %217 : f32 to vector<2x8x124xf32>
    %219 = arith.mulf %218, %20 : vector<2x8x124xf32>
    %220 = arith.addf %216, %219 : vector<2x8x124xf32>
    %c45 = arith.constant 45 : index
    %221 = memref.load %arg1[%c45] : memref<250xf32, #tpu.memory_space<smem>>
    %222 = vector.broadcast %221 : f32 to vector<2x8x124xf32>
    %223 = arith.mulf %222, %21 : vector<2x8x124xf32>
    %224 = arith.addf %220, %223 : vector<2x8x124xf32>
    %c46 = arith.constant 46 : index
    %225 = memref.load %arg1[%c46] : memref<250xf32, #tpu.memory_space<smem>>
    %226 = vector.broadcast %225 : f32 to vector<2x8x124xf32>
    %227 = arith.mulf %226, %22 : vector<2x8x124xf32>
    %228 = arith.addf %224, %227 : vector<2x8x124xf32>
    %c47 = arith.constant 47 : index
    %229 = memref.load %arg1[%c47] : memref<250xf32, #tpu.memory_space<smem>>
    %230 = vector.broadcast %229 : f32 to vector<2x8x124xf32>
    %231 = arith.mulf %230, %23 : vector<2x8x124xf32>
    %232 = arith.addf %228, %231 : vector<2x8x124xf32>
    %c48 = arith.constant 48 : index
    %233 = memref.load %arg1[%c48] : memref<250xf32, #tpu.memory_space<smem>>
    %234 = vector.broadcast %233 : f32 to vector<2x8x124xf32>
    %235 = arith.mulf %234, %24 : vector<2x8x124xf32>
    %236 = arith.addf %232, %235 : vector<2x8x124xf32>
    %c49 = arith.constant 49 : index
    %237 = memref.load %arg1[%c49] : memref<250xf32, #tpu.memory_space<smem>>
    %238 = vector.broadcast %237 : f32 to vector<2x8x124xf32>
    %239 = arith.mulf %238, %25 : vector<2x8x124xf32>
    %240 = arith.addf %236, %239 : vector<2x8x124xf32>
    %241 = vector.extract_strided_slice %240 {offsets = [0, 0, 0], sizes = [2, 8, 123], strides = [1, 1, 1]} : vector<2x8x124xf32> to vector<2x8x123xf32>
    %242 = vector.extract_strided_slice %240 {offsets = [0, 0, 1], sizes = [2, 8, 123], strides = [1, 1, 1]} : vector<2x8x124xf32> to vector<2x8x123xf32>
    %243 = arith.maximumf %241, %242 : vector<2x8x123xf32>
    %244 = vector.extract_strided_slice %243 {offsets = [0, 0, 0], sizes = [2, 7, 123], strides = [1, 1, 1]} : vector<2x8x123xf32> to vector<2x7x123xf32>
    %245 = vector.extract_strided_slice %243 {offsets = [0, 1, 0], sizes = [2, 7, 123], strides = [1, 1, 1]} : vector<2x8x123xf32> to vector<2x7x123xf32>
    %246 = arith.maximumf %244, %245 : vector<2x7x123xf32>
    %247 = vector.shape_cast %27 : vector<1x123xf32> to vector<1x1x123xf32>
    %248 = vector.broadcast %247 : vector<1x1x123xf32> to vector<2x7x123xf32>
    %249 = arith.mulf %246, %248 : vector<2x7x123xf32>
    %250 = vector.extract_strided_slice %249 {offsets = [0, 0, 0], sizes = [2, 7, 64], strides = [1, 1, 1]} : vector<2x7x123xf32> to vector<2x7x64xf32>
    %cst_6 = arith.constant dense<0.000000e+00> : vector<2x7xf32>
    %251 = vector.multi_reduction <add>, %250, %cst_6 [2] : vector<2x7x64xf32> to vector<2x7xf32>
    %252 = vector.shape_cast %251 : vector<2x7xf32> to vector<2x7x1xf32>
    %253 = vector.extract_strided_slice %249 {offsets = [0, 0, 64], sizes = [2, 7, 59], strides = [1, 1, 1]} : vector<2x7x123xf32> to vector<2x7x59xf32>
    %cst_7 = arith.constant dense<0.000000e+00> : vector<2x7xf32>
    %254 = vector.multi_reduction <add>, %253, %cst_7 [2] : vector<2x7x59xf32> to vector<2x7xf32>
    %255 = vector.shape_cast %254 : vector<2x7xf32> to vector<2x7x1xf32>
    %c50 = arith.constant 50 : index
    %256 = memref.load %arg1[%c50] : memref<250xf32, #tpu.memory_space<smem>>
    %257 = vector.broadcast %256 : f32 to vector<2x8x124xf32>
    %258 = arith.mulf %257, %1 : vector<2x8x124xf32>
    %c51 = arith.constant 51 : index
    %259 = memref.load %arg1[%c51] : memref<250xf32, #tpu.memory_space<smem>>
    %260 = vector.broadcast %259 : f32 to vector<2x8x124xf32>
    %261 = arith.mulf %260, %2 : vector<2x8x124xf32>
    %262 = arith.addf %258, %261 : vector<2x8x124xf32>
    %c52 = arith.constant 52 : index
    %263 = memref.load %arg1[%c52] : memref<250xf32, #tpu.memory_space<smem>>
    %264 = vector.broadcast %263 : f32 to vector<2x8x124xf32>
    %265 = arith.mulf %264, %3 : vector<2x8x124xf32>
    %266 = arith.addf %262, %265 : vector<2x8x124xf32>
    %c53 = arith.constant 53 : index
    %267 = memref.load %arg1[%c53] : memref<250xf32, #tpu.memory_space<smem>>
    %268 = vector.broadcast %267 : f32 to vector<2x8x124xf32>
    %269 = arith.mulf %268, %4 : vector<2x8x124xf32>
    %270 = arith.addf %266, %269 : vector<2x8x124xf32>
    %c54 = arith.constant 54 : index
    %271 = memref.load %arg1[%c54] : memref<250xf32, #tpu.memory_space<smem>>
    %272 = vector.broadcast %271 : f32 to vector<2x8x124xf32>
    %273 = arith.mulf %272, %5 : vector<2x8x124xf32>
    %274 = arith.addf %270, %273 : vector<2x8x124xf32>
    %c55 = arith.constant 55 : index
    %275 = memref.load %arg1[%c55] : memref<250xf32, #tpu.memory_space<smem>>
    %276 = vector.broadcast %275 : f32 to vector<2x8x124xf32>
    %277 = arith.mulf %276, %6 : vector<2x8x124xf32>
    %278 = arith.addf %274, %277 : vector<2x8x124xf32>
    %c56 = arith.constant 56 : index
    %279 = memref.load %arg1[%c56] : memref<250xf32, #tpu.memory_space<smem>>
    %280 = vector.broadcast %279 : f32 to vector<2x8x124xf32>
    %281 = arith.mulf %280, %7 : vector<2x8x124xf32>
    %282 = arith.addf %278, %281 : vector<2x8x124xf32>
    %c57 = arith.constant 57 : index
    %283 = memref.load %arg1[%c57] : memref<250xf32, #tpu.memory_space<smem>>
    %284 = vector.broadcast %283 : f32 to vector<2x8x124xf32>
    %285 = arith.mulf %284, %8 : vector<2x8x124xf32>
    %286 = arith.addf %282, %285 : vector<2x8x124xf32>
    %c58 = arith.constant 58 : index
    %287 = memref.load %arg1[%c58] : memref<250xf32, #tpu.memory_space<smem>>
    %288 = vector.broadcast %287 : f32 to vector<2x8x124xf32>
    %289 = arith.mulf %288, %9 : vector<2x8x124xf32>
    %290 = arith.addf %286, %289 : vector<2x8x124xf32>
    %c59 = arith.constant 59 : index
    %291 = memref.load %arg1[%c59] : memref<250xf32, #tpu.memory_space<smem>>
    %292 = vector.broadcast %291 : f32 to vector<2x8x124xf32>
    %293 = arith.mulf %292, %10 : vector<2x8x124xf32>
    %294 = arith.addf %290, %293 : vector<2x8x124xf32>
    %c60 = arith.constant 60 : index
    %295 = memref.load %arg1[%c60] : memref<250xf32, #tpu.memory_space<smem>>
    %296 = vector.broadcast %295 : f32 to vector<2x8x124xf32>
    %297 = arith.mulf %296, %11 : vector<2x8x124xf32>
    %298 = arith.addf %294, %297 : vector<2x8x124xf32>
    %c61 = arith.constant 61 : index
    %299 = memref.load %arg1[%c61] : memref<250xf32, #tpu.memory_space<smem>>
    %300 = vector.broadcast %299 : f32 to vector<2x8x124xf32>
    %301 = arith.mulf %300, %12 : vector<2x8x124xf32>
    %302 = arith.addf %298, %301 : vector<2x8x124xf32>
    %c62 = arith.constant 62 : index
    %303 = memref.load %arg1[%c62] : memref<250xf32, #tpu.memory_space<smem>>
    %304 = vector.broadcast %303 : f32 to vector<2x8x124xf32>
    %305 = arith.mulf %304, %13 : vector<2x8x124xf32>
    %306 = arith.addf %302, %305 : vector<2x8x124xf32>
    %c63 = arith.constant 63 : index
    %307 = memref.load %arg1[%c63] : memref<250xf32, #tpu.memory_space<smem>>
    %308 = vector.broadcast %307 : f32 to vector<2x8x124xf32>
    %309 = arith.mulf %308, %14 : vector<2x8x124xf32>
    %310 = arith.addf %306, %309 : vector<2x8x124xf32>
    %c64 = arith.constant 64 : index
    %311 = memref.load %arg1[%c64] : memref<250xf32, #tpu.memory_space<smem>>
    %312 = vector.broadcast %311 : f32 to vector<2x8x124xf32>
    %313 = arith.mulf %312, %15 : vector<2x8x124xf32>
    %314 = arith.addf %310, %313 : vector<2x8x124xf32>
    %c65 = arith.constant 65 : index
    %315 = memref.load %arg1[%c65] : memref<250xf32, #tpu.memory_space<smem>>
    %316 = vector.broadcast %315 : f32 to vector<2x8x124xf32>
    %317 = arith.mulf %316, %16 : vector<2x8x124xf32>
    %318 = arith.addf %314, %317 : vector<2x8x124xf32>
    %c66 = arith.constant 66 : index
    %319 = memref.load %arg1[%c66] : memref<250xf32, #tpu.memory_space<smem>>
    %320 = vector.broadcast %319 : f32 to vector<2x8x124xf32>
    %321 = arith.mulf %320, %17 : vector<2x8x124xf32>
    %322 = arith.addf %318, %321 : vector<2x8x124xf32>
    %c67 = arith.constant 67 : index
    %323 = memref.load %arg1[%c67] : memref<250xf32, #tpu.memory_space<smem>>
    %324 = vector.broadcast %323 : f32 to vector<2x8x124xf32>
    %325 = arith.mulf %324, %18 : vector<2x8x124xf32>
    %326 = arith.addf %322, %325 : vector<2x8x124xf32>
    %c68 = arith.constant 68 : index
    %327 = memref.load %arg1[%c68] : memref<250xf32, #tpu.memory_space<smem>>
    %328 = vector.broadcast %327 : f32 to vector<2x8x124xf32>
    %329 = arith.mulf %328, %19 : vector<2x8x124xf32>
    %330 = arith.addf %326, %329 : vector<2x8x124xf32>
    %c69 = arith.constant 69 : index
    %331 = memref.load %arg1[%c69] : memref<250xf32, #tpu.memory_space<smem>>
    %332 = vector.broadcast %331 : f32 to vector<2x8x124xf32>
    %333 = arith.mulf %332, %20 : vector<2x8x124xf32>
    %334 = arith.addf %330, %333 : vector<2x8x124xf32>
    %c70 = arith.constant 70 : index
    %335 = memref.load %arg1[%c70] : memref<250xf32, #tpu.memory_space<smem>>
    %336 = vector.broadcast %335 : f32 to vector<2x8x124xf32>
    %337 = arith.mulf %336, %21 : vector<2x8x124xf32>
    %338 = arith.addf %334, %337 : vector<2x8x124xf32>
    %c71 = arith.constant 71 : index
    %339 = memref.load %arg1[%c71] : memref<250xf32, #tpu.memory_space<smem>>
    %340 = vector.broadcast %339 : f32 to vector<2x8x124xf32>
    %341 = arith.mulf %340, %22 : vector<2x8x124xf32>
    %342 = arith.addf %338, %341 : vector<2x8x124xf32>
    %c72 = arith.constant 72 : index
    %343 = memref.load %arg1[%c72] : memref<250xf32, #tpu.memory_space<smem>>
    %344 = vector.broadcast %343 : f32 to vector<2x8x124xf32>
    %345 = arith.mulf %344, %23 : vector<2x8x124xf32>
    %346 = arith.addf %342, %345 : vector<2x8x124xf32>
    %c73 = arith.constant 73 : index
    %347 = memref.load %arg1[%c73] : memref<250xf32, #tpu.memory_space<smem>>
    %348 = vector.broadcast %347 : f32 to vector<2x8x124xf32>
    %349 = arith.mulf %348, %24 : vector<2x8x124xf32>
    %350 = arith.addf %346, %349 : vector<2x8x124xf32>
    %c74 = arith.constant 74 : index
    %351 = memref.load %arg1[%c74] : memref<250xf32, #tpu.memory_space<smem>>
    %352 = vector.broadcast %351 : f32 to vector<2x8x124xf32>
    %353 = arith.mulf %352, %25 : vector<2x8x124xf32>
    %354 = arith.addf %350, %353 : vector<2x8x124xf32>
    %355 = vector.extract_strided_slice %354 {offsets = [0, 0, 0], sizes = [2, 8, 123], strides = [1, 1, 1]} : vector<2x8x124xf32> to vector<2x8x123xf32>
    %356 = vector.extract_strided_slice %354 {offsets = [0, 0, 1], sizes = [2, 8, 123], strides = [1, 1, 1]} : vector<2x8x124xf32> to vector<2x8x123xf32>
    %357 = arith.maximumf %355, %356 : vector<2x8x123xf32>
    %358 = vector.extract_strided_slice %357 {offsets = [0, 0, 0], sizes = [2, 7, 123], strides = [1, 1, 1]} : vector<2x8x123xf32> to vector<2x7x123xf32>
    %359 = vector.extract_strided_slice %357 {offsets = [0, 1, 0], sizes = [2, 7, 123], strides = [1, 1, 1]} : vector<2x8x123xf32> to vector<2x7x123xf32>
    %360 = arith.maximumf %358, %359 : vector<2x7x123xf32>
    %361 = vector.shape_cast %27 : vector<1x123xf32> to vector<1x1x123xf32>
    %362 = vector.broadcast %361 : vector<1x1x123xf32> to vector<2x7x123xf32>
    %363 = arith.mulf %360, %362 : vector<2x7x123xf32>
    %364 = vector.extract_strided_slice %363 {offsets = [0, 0, 0], sizes = [2, 7, 64], strides = [1, 1, 1]} : vector<2x7x123xf32> to vector<2x7x64xf32>
    %cst_8 = arith.constant dense<0.000000e+00> : vector<2x7xf32>
    %365 = vector.multi_reduction <add>, %364, %cst_8 [2] : vector<2x7x64xf32> to vector<2x7xf32>
    %366 = vector.shape_cast %365 : vector<2x7xf32> to vector<2x7x1xf32>
    %367 = vector.extract_strided_slice %363 {offsets = [0, 0, 64], sizes = [2, 7, 59], strides = [1, 1, 1]} : vector<2x7x123xf32> to vector<2x7x59xf32>
    %cst_9 = arith.constant dense<0.000000e+00> : vector<2x7xf32>
    %368 = vector.multi_reduction <add>, %367, %cst_9 [2] : vector<2x7x59xf32> to vector<2x7xf32>
    %369 = vector.shape_cast %368 : vector<2x7xf32> to vector<2x7x1xf32>
    %c75 = arith.constant 75 : index
    %370 = memref.load %arg1[%c75] : memref<250xf32, #tpu.memory_space<smem>>
    %371 = vector.broadcast %370 : f32 to vector<2x8x124xf32>
    %372 = arith.mulf %371, %1 : vector<2x8x124xf32>
    %c76 = arith.constant 76 : index
    %373 = memref.load %arg1[%c76] : memref<250xf32, #tpu.memory_space<smem>>
    %374 = vector.broadcast %373 : f32 to vector<2x8x124xf32>
    %375 = arith.mulf %374, %2 : vector<2x8x124xf32>
    %376 = arith.addf %372, %375 : vector<2x8x124xf32>
    %c77 = arith.constant 77 : index
    %377 = memref.load %arg1[%c77] : memref<250xf32, #tpu.memory_space<smem>>
    %378 = vector.broadcast %377 : f32 to vector<2x8x124xf32>
    %379 = arith.mulf %378, %3 : vector<2x8x124xf32>
    %380 = arith.addf %376, %379 : vector<2x8x124xf32>
    %c78 = arith.constant 78 : index
    %381 = memref.load %arg1[%c78] : memref<250xf32, #tpu.memory_space<smem>>
    %382 = vector.broadcast %381 : f32 to vector<2x8x124xf32>
    %383 = arith.mulf %382, %4 : vector<2x8x124xf32>
    %384 = arith.addf %380, %383 : vector<2x8x124xf32>
    %c79 = arith.constant 79 : index
    %385 = memref.load %arg1[%c79] : memref<250xf32, #tpu.memory_space<smem>>
    %386 = vector.broadcast %385 : f32 to vector<2x8x124xf32>
    %387 = arith.mulf %386, %5 : vector<2x8x124xf32>
    %388 = arith.addf %384, %387 : vector<2x8x124xf32>
    %c80 = arith.constant 80 : index
    %389 = memref.load %arg1[%c80] : memref<250xf32, #tpu.memory_space<smem>>
    %390 = vector.broadcast %389 : f32 to vector<2x8x124xf32>
    %391 = arith.mulf %390, %6 : vector<2x8x124xf32>
    %392 = arith.addf %388, %391 : vector<2x8x124xf32>
    %c81 = arith.constant 81 : index
    %393 = memref.load %arg1[%c81] : memref<250xf32, #tpu.memory_space<smem>>
    %394 = vector.broadcast %393 : f32 to vector<2x8x124xf32>
    %395 = arith.mulf %394, %7 : vector<2x8x124xf32>
    %396 = arith.addf %392, %395 : vector<2x8x124xf32>
    %c82 = arith.constant 82 : index
    %397 = memref.load %arg1[%c82] : memref<250xf32, #tpu.memory_space<smem>>
    %398 = vector.broadcast %397 : f32 to vector<2x8x124xf32>
    %399 = arith.mulf %398, %8 : vector<2x8x124xf32>
    %400 = arith.addf %396, %399 : vector<2x8x124xf32>
    %c83 = arith.constant 83 : index
    %401 = memref.load %arg1[%c83] : memref<250xf32, #tpu.memory_space<smem>>
    %402 = vector.broadcast %401 : f32 to vector<2x8x124xf32>
    %403 = arith.mulf %402, %9 : vector<2x8x124xf32>
    %404 = arith.addf %400, %403 : vector<2x8x124xf32>
    %c84 = arith.constant 84 : index
    %405 = memref.load %arg1[%c84] : memref<250xf32, #tpu.memory_space<smem>>
    %406 = vector.broadcast %405 : f32 to vector<2x8x124xf32>
    %407 = arith.mulf %406, %10 : vector<2x8x124xf32>
    %408 = arith.addf %404, %407 : vector<2x8x124xf32>
    %c85 = arith.constant 85 : index
    %409 = memref.load %arg1[%c85] : memref<250xf32, #tpu.memory_space<smem>>
    %410 = vector.broadcast %409 : f32 to vector<2x8x124xf32>
    %411 = arith.mulf %410, %11 : vector<2x8x124xf32>
    %412 = arith.addf %408, %411 : vector<2x8x124xf32>
    %c86 = arith.constant 86 : index
    %413 = memref.load %arg1[%c86] : memref<250xf32, #tpu.memory_space<smem>>
    %414 = vector.broadcast %413 : f32 to vector<2x8x124xf32>
    %415 = arith.mulf %414, %12 : vector<2x8x124xf32>
    %416 = arith.addf %412, %415 : vector<2x8x124xf32>
    %c87 = arith.constant 87 : index
    %417 = memref.load %arg1[%c87] : memref<250xf32, #tpu.memory_space<smem>>
    %418 = vector.broadcast %417 : f32 to vector<2x8x124xf32>
    %419 = arith.mulf %418, %13 : vector<2x8x124xf32>
    %420 = arith.addf %416, %419 : vector<2x8x124xf32>
    %c88 = arith.constant 88 : index
    %421 = memref.load %arg1[%c88] : memref<250xf32, #tpu.memory_space<smem>>
    %422 = vector.broadcast %421 : f32 to vector<2x8x124xf32>
    %423 = arith.mulf %422, %14 : vector<2x8x124xf32>
    %424 = arith.addf %420, %423 : vector<2x8x124xf32>
    %c89 = arith.constant 89 : index
    %425 = memref.load %arg1[%c89] : memref<250xf32, #tpu.memory_space<smem>>
    %426 = vector.broadcast %425 : f32 to vector<2x8x124xf32>
    %427 = arith.mulf %426, %15 : vector<2x8x124xf32>
    %428 = arith.addf %424, %427 : vector<2x8x124xf32>
    %c90 = arith.constant 90 : index
    %429 = memref.load %arg1[%c90] : memref<250xf32, #tpu.memory_space<smem>>
    %430 = vector.broadcast %429 : f32 to vector<2x8x124xf32>
    %431 = arith.mulf %430, %16 : vector<2x8x124xf32>
    %432 = arith.addf %428, %431 : vector<2x8x124xf32>
    %c91 = arith.constant 91 : index
    %433 = memref.load %arg1[%c91] : memref<250xf32, #tpu.memory_space<smem>>
    %434 = vector.broadcast %433 : f32 to vector<2x8x124xf32>
    %435 = arith.mulf %434, %17 : vector<2x8x124xf32>
    %436 = arith.addf %432, %435 : vector<2x8x124xf32>
    %c92 = arith.constant 92 : index
    %437 = memref.load %arg1[%c92] : memref<250xf32, #tpu.memory_space<smem>>
    %438 = vector.broadcast %437 : f32 to vector<2x8x124xf32>
    %439 = arith.mulf %438, %18 : vector<2x8x124xf32>
    %440 = arith.addf %436, %439 : vector<2x8x124xf32>
    %c93 = arith.constant 93 : index
    %441 = memref.load %arg1[%c93] : memref<250xf32, #tpu.memory_space<smem>>
    %442 = vector.broadcast %441 : f32 to vector<2x8x124xf32>
    %443 = arith.mulf %442, %19 : vector<2x8x124xf32>
    %444 = arith.addf %440, %443 : vector<2x8x124xf32>
    %c94 = arith.constant 94 : index
    %445 = memref.load %arg1[%c94] : memref<250xf32, #tpu.memory_space<smem>>
    %446 = vector.broadcast %445 : f32 to vector<2x8x124xf32>
    %447 = arith.mulf %446, %20 : vector<2x8x124xf32>
    %448 = arith.addf %444, %447 : vector<2x8x124xf32>
    %c95 = arith.constant 95 : index
    %449 = memref.load %arg1[%c95] : memref<250xf32, #tpu.memory_space<smem>>
    %450 = vector.broadcast %449 : f32 to vector<2x8x124xf32>
    %451 = arith.mulf %450, %21 : vector<2x8x124xf32>
    %452 = arith.addf %448, %451 : vector<2x8x124xf32>
    %c96 = arith.constant 96 : index
    %453 = memref.load %arg1[%c96] : memref<250xf32, #tpu.memory_space<smem>>
    %454 = vector.broadcast %453 : f32 to vector<2x8x124xf32>
    %455 = arith.mulf %454, %22 : vector<2x8x124xf32>
    %456 = arith.addf %452, %455 : vector<2x8x124xf32>
    %c97 = arith.constant 97 : index
    %457 = memref.load %arg1[%c97] : memref<250xf32, #tpu.memory_space<smem>>
    %458 = vector.broadcast %457 : f32 to vector<2x8x124xf32>
    %459 = arith.mulf %458, %23 : vector<2x8x124xf32>
    %460 = arith.addf %456, %459 : vector<2x8x124xf32>
    %c98 = arith.constant 98 : index
    %461 = memref.load %arg1[%c98] : memref<250xf32, #tpu.memory_space<smem>>
    %462 = vector.broadcast %461 : f32 to vector<2x8x124xf32>
    %463 = arith.mulf %462, %24 : vector<2x8x124xf32>
    %464 = arith.addf %460, %463 : vector<2x8x124xf32>
    %c99 = arith.constant 99 : index
    %465 = memref.load %arg1[%c99] : memref<250xf32, #tpu.memory_space<smem>>
    %466 = vector.broadcast %465 : f32 to vector<2x8x124xf32>
    %467 = arith.mulf %466, %25 : vector<2x8x124xf32>
    %468 = arith.addf %464, %467 : vector<2x8x124xf32>
    %469 = vector.extract_strided_slice %468 {offsets = [0, 0, 0], sizes = [2, 8, 123], strides = [1, 1, 1]} : vector<2x8x124xf32> to vector<2x8x123xf32>
    %470 = vector.extract_strided_slice %468 {offsets = [0, 0, 1], sizes = [2, 8, 123], strides = [1, 1, 1]} : vector<2x8x124xf32> to vector<2x8x123xf32>
    %471 = arith.maximumf %469, %470 : vector<2x8x123xf32>
    %472 = vector.extract_strided_slice %471 {offsets = [0, 0, 0], sizes = [2, 7, 123], strides = [1, 1, 1]} : vector<2x8x123xf32> to vector<2x7x123xf32>
    %473 = vector.extract_strided_slice %471 {offsets = [0, 1, 0], sizes = [2, 7, 123], strides = [1, 1, 1]} : vector<2x8x123xf32> to vector<2x7x123xf32>
    %474 = arith.maximumf %472, %473 : vector<2x7x123xf32>
    %475 = vector.shape_cast %27 : vector<1x123xf32> to vector<1x1x123xf32>
    %476 = vector.broadcast %475 : vector<1x1x123xf32> to vector<2x7x123xf32>
    %477 = arith.mulf %474, %476 : vector<2x7x123xf32>
    %478 = vector.extract_strided_slice %477 {offsets = [0, 0, 0], sizes = [2, 7, 64], strides = [1, 1, 1]} : vector<2x7x123xf32> to vector<2x7x64xf32>
    %cst_10 = arith.constant dense<0.000000e+00> : vector<2x7xf32>
    %479 = vector.multi_reduction <add>, %478, %cst_10 [2] : vector<2x7x64xf32> to vector<2x7xf32>
    %480 = vector.shape_cast %479 : vector<2x7xf32> to vector<2x7x1xf32>
    %481 = vector.extract_strided_slice %477 {offsets = [0, 0, 64], sizes = [2, 7, 59], strides = [1, 1, 1]} : vector<2x7x123xf32> to vector<2x7x59xf32>
    %cst_11 = arith.constant dense<0.000000e+00> : vector<2x7xf32>
    %482 = vector.multi_reduction <add>, %481, %cst_11 [2] : vector<2x7x59xf32> to vector<2x7xf32>
    %483 = vector.shape_cast %482 : vector<2x7xf32> to vector<2x7x1xf32>
    %c100 = arith.constant 100 : index
    %484 = memref.load %arg1[%c100] : memref<250xf32, #tpu.memory_space<smem>>
    %485 = vector.broadcast %484 : f32 to vector<2x8x124xf32>
    %486 = arith.mulf %485, %1 : vector<2x8x124xf32>
    %c101 = arith.constant 101 : index
    %487 = memref.load %arg1[%c101] : memref<250xf32, #tpu.memory_space<smem>>
    %488 = vector.broadcast %487 : f32 to vector<2x8x124xf32>
    %489 = arith.mulf %488, %2 : vector<2x8x124xf32>
    %490 = arith.addf %486, %489 : vector<2x8x124xf32>
    %c102 = arith.constant 102 : index
    %491 = memref.load %arg1[%c102] : memref<250xf32, #tpu.memory_space<smem>>
    %492 = vector.broadcast %491 : f32 to vector<2x8x124xf32>
    %493 = arith.mulf %492, %3 : vector<2x8x124xf32>
    %494 = arith.addf %490, %493 : vector<2x8x124xf32>
    %c103 = arith.constant 103 : index
    %495 = memref.load %arg1[%c103] : memref<250xf32, #tpu.memory_space<smem>>
    %496 = vector.broadcast %495 : f32 to vector<2x8x124xf32>
    %497 = arith.mulf %496, %4 : vector<2x8x124xf32>
    %498 = arith.addf %494, %497 : vector<2x8x124xf32>
    %c104 = arith.constant 104 : index
    %499 = memref.load %arg1[%c104] : memref<250xf32, #tpu.memory_space<smem>>
    %500 = vector.broadcast %499 : f32 to vector<2x8x124xf32>
    %501 = arith.mulf %500, %5 : vector<2x8x124xf32>
    %502 = arith.addf %498, %501 : vector<2x8x124xf32>
    %c105 = arith.constant 105 : index
    %503 = memref.load %arg1[%c105] : memref<250xf32, #tpu.memory_space<smem>>
    %504 = vector.broadcast %503 : f32 to vector<2x8x124xf32>
    %505 = arith.mulf %504, %6 : vector<2x8x124xf32>
    %506 = arith.addf %502, %505 : vector<2x8x124xf32>
    %c106 = arith.constant 106 : index
    %507 = memref.load %arg1[%c106] : memref<250xf32, #tpu.memory_space<smem>>
    %508 = vector.broadcast %507 : f32 to vector<2x8x124xf32>
    %509 = arith.mulf %508, %7 : vector<2x8x124xf32>
    %510 = arith.addf %506, %509 : vector<2x8x124xf32>
    %c107 = arith.constant 107 : index
    %511 = memref.load %arg1[%c107] : memref<250xf32, #tpu.memory_space<smem>>
    %512 = vector.broadcast %511 : f32 to vector<2x8x124xf32>
    %513 = arith.mulf %512, %8 : vector<2x8x124xf32>
    %514 = arith.addf %510, %513 : vector<2x8x124xf32>
    %c108 = arith.constant 108 : index
    %515 = memref.load %arg1[%c108] : memref<250xf32, #tpu.memory_space<smem>>
    %516 = vector.broadcast %515 : f32 to vector<2x8x124xf32>
    %517 = arith.mulf %516, %9 : vector<2x8x124xf32>
    %518 = arith.addf %514, %517 : vector<2x8x124xf32>
    %c109 = arith.constant 109 : index
    %519 = memref.load %arg1[%c109] : memref<250xf32, #tpu.memory_space<smem>>
    %520 = vector.broadcast %519 : f32 to vector<2x8x124xf32>
    %521 = arith.mulf %520, %10 : vector<2x8x124xf32>
    %522 = arith.addf %518, %521 : vector<2x8x124xf32>
    %c110 = arith.constant 110 : index
    %523 = memref.load %arg1[%c110] : memref<250xf32, #tpu.memory_space<smem>>
    %524 = vector.broadcast %523 : f32 to vector<2x8x124xf32>
    %525 = arith.mulf %524, %11 : vector<2x8x124xf32>
    %526 = arith.addf %522, %525 : vector<2x8x124xf32>
    %c111 = arith.constant 111 : index
    %527 = memref.load %arg1[%c111] : memref<250xf32, #tpu.memory_space<smem>>
    %528 = vector.broadcast %527 : f32 to vector<2x8x124xf32>
    %529 = arith.mulf %528, %12 : vector<2x8x124xf32>
    %530 = arith.addf %526, %529 : vector<2x8x124xf32>
    %c112 = arith.constant 112 : index
    %531 = memref.load %arg1[%c112] : memref<250xf32, #tpu.memory_space<smem>>
    %532 = vector.broadcast %531 : f32 to vector<2x8x124xf32>
    %533 = arith.mulf %532, %13 : vector<2x8x124xf32>
    %534 = arith.addf %530, %533 : vector<2x8x124xf32>
    %c113 = arith.constant 113 : index
    %535 = memref.load %arg1[%c113] : memref<250xf32, #tpu.memory_space<smem>>
    %536 = vector.broadcast %535 : f32 to vector<2x8x124xf32>
    %537 = arith.mulf %536, %14 : vector<2x8x124xf32>
    %538 = arith.addf %534, %537 : vector<2x8x124xf32>
    %c114 = arith.constant 114 : index
    %539 = memref.load %arg1[%c114] : memref<250xf32, #tpu.memory_space<smem>>
    %540 = vector.broadcast %539 : f32 to vector<2x8x124xf32>
    %541 = arith.mulf %540, %15 : vector<2x8x124xf32>
    %542 = arith.addf %538, %541 : vector<2x8x124xf32>
    %c115 = arith.constant 115 : index
    %543 = memref.load %arg1[%c115] : memref<250xf32, #tpu.memory_space<smem>>
    %544 = vector.broadcast %543 : f32 to vector<2x8x124xf32>
    %545 = arith.mulf %544, %16 : vector<2x8x124xf32>
    %546 = arith.addf %542, %545 : vector<2x8x124xf32>
    %c116 = arith.constant 116 : index
    %547 = memref.load %arg1[%c116] : memref<250xf32, #tpu.memory_space<smem>>
    %548 = vector.broadcast %547 : f32 to vector<2x8x124xf32>
    %549 = arith.mulf %548, %17 : vector<2x8x124xf32>
    %550 = arith.addf %546, %549 : vector<2x8x124xf32>
    %c117 = arith.constant 117 : index
    %551 = memref.load %arg1[%c117] : memref<250xf32, #tpu.memory_space<smem>>
    %552 = vector.broadcast %551 : f32 to vector<2x8x124xf32>
    %553 = arith.mulf %552, %18 : vector<2x8x124xf32>
    %554 = arith.addf %550, %553 : vector<2x8x124xf32>
    %c118 = arith.constant 118 : index
    %555 = memref.load %arg1[%c118] : memref<250xf32, #tpu.memory_space<smem>>
    %556 = vector.broadcast %555 : f32 to vector<2x8x124xf32>
    %557 = arith.mulf %556, %19 : vector<2x8x124xf32>
    %558 = arith.addf %554, %557 : vector<2x8x124xf32>
    %c119 = arith.constant 119 : index
    %559 = memref.load %arg1[%c119] : memref<250xf32, #tpu.memory_space<smem>>
    %560 = vector.broadcast %559 : f32 to vector<2x8x124xf32>
    %561 = arith.mulf %560, %20 : vector<2x8x124xf32>
    %562 = arith.addf %558, %561 : vector<2x8x124xf32>
    %c120 = arith.constant 120 : index
    %563 = memref.load %arg1[%c120] : memref<250xf32, #tpu.memory_space<smem>>
    %564 = vector.broadcast %563 : f32 to vector<2x8x124xf32>
    %565 = arith.mulf %564, %21 : vector<2x8x124xf32>
    %566 = arith.addf %562, %565 : vector<2x8x124xf32>
    %c121 = arith.constant 121 : index
    %567 = memref.load %arg1[%c121] : memref<250xf32, #tpu.memory_space<smem>>
    %568 = vector.broadcast %567 : f32 to vector<2x8x124xf32>
    %569 = arith.mulf %568, %22 : vector<2x8x124xf32>
    %570 = arith.addf %566, %569 : vector<2x8x124xf32>
    %c122 = arith.constant 122 : index
    %571 = memref.load %arg1[%c122] : memref<250xf32, #tpu.memory_space<smem>>
    %572 = vector.broadcast %571 : f32 to vector<2x8x124xf32>
    %573 = arith.mulf %572, %23 : vector<2x8x124xf32>
    %574 = arith.addf %570, %573 : vector<2x8x124xf32>
    %c123 = arith.constant 123 : index
    %575 = memref.load %arg1[%c123] : memref<250xf32, #tpu.memory_space<smem>>
    %576 = vector.broadcast %575 : f32 to vector<2x8x124xf32>
    %577 = arith.mulf %576, %24 : vector<2x8x124xf32>
    %578 = arith.addf %574, %577 : vector<2x8x124xf32>
    %c124 = arith.constant 124 : index
    %579 = memref.load %arg1[%c124] : memref<250xf32, #tpu.memory_space<smem>>
    %580 = vector.broadcast %579 : f32 to vector<2x8x124xf32>
    %581 = arith.mulf %580, %25 : vector<2x8x124xf32>
    %582 = arith.addf %578, %581 : vector<2x8x124xf32>
    %583 = vector.extract_strided_slice %582 {offsets = [0, 0, 0], sizes = [2, 8, 123], strides = [1, 1, 1]} : vector<2x8x124xf32> to vector<2x8x123xf32>
    %584 = vector.extract_strided_slice %582 {offsets = [0, 0, 1], sizes = [2, 8, 123], strides = [1, 1, 1]} : vector<2x8x124xf32> to vector<2x8x123xf32>
    %585 = arith.maximumf %583, %584 : vector<2x8x123xf32>
    %586 = vector.extract_strided_slice %585 {offsets = [0, 0, 0], sizes = [2, 7, 123], strides = [1, 1, 1]} : vector<2x8x123xf32> to vector<2x7x123xf32>
    %587 = vector.extract_strided_slice %585 {offsets = [0, 1, 0], sizes = [2, 7, 123], strides = [1, 1, 1]} : vector<2x8x123xf32> to vector<2x7x123xf32>
    %588 = arith.maximumf %586, %587 : vector<2x7x123xf32>
    %589 = vector.shape_cast %27 : vector<1x123xf32> to vector<1x1x123xf32>
    %590 = vector.broadcast %589 : vector<1x1x123xf32> to vector<2x7x123xf32>
    %591 = arith.mulf %588, %590 : vector<2x7x123xf32>
    %592 = vector.extract_strided_slice %591 {offsets = [0, 0, 0], sizes = [2, 7, 64], strides = [1, 1, 1]} : vector<2x7x123xf32> to vector<2x7x64xf32>
    %cst_12 = arith.constant dense<0.000000e+00> : vector<2x7xf32>
    %593 = vector.multi_reduction <add>, %592, %cst_12 [2] : vector<2x7x64xf32> to vector<2x7xf32>
    %594 = vector.shape_cast %593 : vector<2x7xf32> to vector<2x7x1xf32>
    %595 = vector.extract_strided_slice %591 {offsets = [0, 0, 64], sizes = [2, 7, 59], strides = [1, 1, 1]} : vector<2x7x123xf32> to vector<2x7x59xf32>
    %cst_13 = arith.constant dense<0.000000e+00> : vector<2x7xf32>
    %596 = vector.multi_reduction <add>, %595, %cst_13 [2] : vector<2x7x59xf32> to vector<2x7xf32>
    %597 = vector.shape_cast %596 : vector<2x7xf32> to vector<2x7x1xf32>
    %c125 = arith.constant 125 : index
    %598 = memref.load %arg1[%c125] : memref<250xf32, #tpu.memory_space<smem>>
    %599 = vector.broadcast %598 : f32 to vector<2x8x124xf32>
    %600 = arith.mulf %599, %1 : vector<2x8x124xf32>
    %c126 = arith.constant 126 : index
    %601 = memref.load %arg1[%c126] : memref<250xf32, #tpu.memory_space<smem>>
    %602 = vector.broadcast %601 : f32 to vector<2x8x124xf32>
    %603 = arith.mulf %602, %2 : vector<2x8x124xf32>
    %604 = arith.addf %600, %603 : vector<2x8x124xf32>
    %c127 = arith.constant 127 : index
    %605 = memref.load %arg1[%c127] : memref<250xf32, #tpu.memory_space<smem>>
    %606 = vector.broadcast %605 : f32 to vector<2x8x124xf32>
    %607 = arith.mulf %606, %3 : vector<2x8x124xf32>
    %608 = arith.addf %604, %607 : vector<2x8x124xf32>
    %c128 = arith.constant 128 : index
    %609 = memref.load %arg1[%c128] : memref<250xf32, #tpu.memory_space<smem>>
    %610 = vector.broadcast %609 : f32 to vector<2x8x124xf32>
    %611 = arith.mulf %610, %4 : vector<2x8x124xf32>
    %612 = arith.addf %608, %611 : vector<2x8x124xf32>
    %c129 = arith.constant 129 : index
    %613 = memref.load %arg1[%c129] : memref<250xf32, #tpu.memory_space<smem>>
    %614 = vector.broadcast %613 : f32 to vector<2x8x124xf32>
    %615 = arith.mulf %614, %5 : vector<2x8x124xf32>
    %616 = arith.addf %612, %615 : vector<2x8x124xf32>
    %c130 = arith.constant 130 : index
    %617 = memref.load %arg1[%c130] : memref<250xf32, #tpu.memory_space<smem>>
    %618 = vector.broadcast %617 : f32 to vector<2x8x124xf32>
    %619 = arith.mulf %618, %6 : vector<2x8x124xf32>
    %620 = arith.addf %616, %619 : vector<2x8x124xf32>
    %c131 = arith.constant 131 : index
    %621 = memref.load %arg1[%c131] : memref<250xf32, #tpu.memory_space<smem>>
    %622 = vector.broadcast %621 : f32 to vector<2x8x124xf32>
    %623 = arith.mulf %622, %7 : vector<2x8x124xf32>
    %624 = arith.addf %620, %623 : vector<2x8x124xf32>
    %c132 = arith.constant 132 : index
    %625 = memref.load %arg1[%c132] : memref<250xf32, #tpu.memory_space<smem>>
    %626 = vector.broadcast %625 : f32 to vector<2x8x124xf32>
    %627 = arith.mulf %626, %8 : vector<2x8x124xf32>
    %628 = arith.addf %624, %627 : vector<2x8x124xf32>
    %c133 = arith.constant 133 : index
    %629 = memref.load %arg1[%c133] : memref<250xf32, #tpu.memory_space<smem>>
    %630 = vector.broadcast %629 : f32 to vector<2x8x124xf32>
    %631 = arith.mulf %630, %9 : vector<2x8x124xf32>
    %632 = arith.addf %628, %631 : vector<2x8x124xf32>
    %c134 = arith.constant 134 : index
    %633 = memref.load %arg1[%c134] : memref<250xf32, #tpu.memory_space<smem>>
    %634 = vector.broadcast %633 : f32 to vector<2x8x124xf32>
    %635 = arith.mulf %634, %10 : vector<2x8x124xf32>
    %636 = arith.addf %632, %635 : vector<2x8x124xf32>
    %c135 = arith.constant 135 : index
    %637 = memref.load %arg1[%c135] : memref<250xf32, #tpu.memory_space<smem>>
    %638 = vector.broadcast %637 : f32 to vector<2x8x124xf32>
    %639 = arith.mulf %638, %11 : vector<2x8x124xf32>
    %640 = arith.addf %636, %639 : vector<2x8x124xf32>
    %c136 = arith.constant 136 : index
    %641 = memref.load %arg1[%c136] : memref<250xf32, #tpu.memory_space<smem>>
    %642 = vector.broadcast %641 : f32 to vector<2x8x124xf32>
    %643 = arith.mulf %642, %12 : vector<2x8x124xf32>
    %644 = arith.addf %640, %643 : vector<2x8x124xf32>
    %c137 = arith.constant 137 : index
    %645 = memref.load %arg1[%c137] : memref<250xf32, #tpu.memory_space<smem>>
    %646 = vector.broadcast %645 : f32 to vector<2x8x124xf32>
    %647 = arith.mulf %646, %13 : vector<2x8x124xf32>
    %648 = arith.addf %644, %647 : vector<2x8x124xf32>
    %c138 = arith.constant 138 : index
    %649 = memref.load %arg1[%c138] : memref<250xf32, #tpu.memory_space<smem>>
    %650 = vector.broadcast %649 : f32 to vector<2x8x124xf32>
    %651 = arith.mulf %650, %14 : vector<2x8x124xf32>
    %652 = arith.addf %648, %651 : vector<2x8x124xf32>
    %c139 = arith.constant 139 : index
    %653 = memref.load %arg1[%c139] : memref<250xf32, #tpu.memory_space<smem>>
    %654 = vector.broadcast %653 : f32 to vector<2x8x124xf32>
    %655 = arith.mulf %654, %15 : vector<2x8x124xf32>
    %656 = arith.addf %652, %655 : vector<2x8x124xf32>
    %c140 = arith.constant 140 : index
    %657 = memref.load %arg1[%c140] : memref<250xf32, #tpu.memory_space<smem>>
    %658 = vector.broadcast %657 : f32 to vector<2x8x124xf32>
    %659 = arith.mulf %658, %16 : vector<2x8x124xf32>
    %660 = arith.addf %656, %659 : vector<2x8x124xf32>
    %c141 = arith.constant 141 : index
    %661 = memref.load %arg1[%c141] : memref<250xf32, #tpu.memory_space<smem>>
    %662 = vector.broadcast %661 : f32 to vector<2x8x124xf32>
    %663 = arith.mulf %662, %17 : vector<2x8x124xf32>
    %664 = arith.addf %660, %663 : vector<2x8x124xf32>
    %c142 = arith.constant 142 : index
    %665 = memref.load %arg1[%c142] : memref<250xf32, #tpu.memory_space<smem>>
    %666 = vector.broadcast %665 : f32 to vector<2x8x124xf32>
    %667 = arith.mulf %666, %18 : vector<2x8x124xf32>
    %668 = arith.addf %664, %667 : vector<2x8x124xf32>
    %c143 = arith.constant 143 : index
    %669 = memref.load %arg1[%c143] : memref<250xf32, #tpu.memory_space<smem>>
    %670 = vector.broadcast %669 : f32 to vector<2x8x124xf32>
    %671 = arith.mulf %670, %19 : vector<2x8x124xf32>
    %672 = arith.addf %668, %671 : vector<2x8x124xf32>
    %c144 = arith.constant 144 : index
    %673 = memref.load %arg1[%c144] : memref<250xf32, #tpu.memory_space<smem>>
    %674 = vector.broadcast %673 : f32 to vector<2x8x124xf32>
    %675 = arith.mulf %674, %20 : vector<2x8x124xf32>
    %676 = arith.addf %672, %675 : vector<2x8x124xf32>
    %c145 = arith.constant 145 : index
    %677 = memref.load %arg1[%c145] : memref<250xf32, #tpu.memory_space<smem>>
    %678 = vector.broadcast %677 : f32 to vector<2x8x124xf32>
    %679 = arith.mulf %678, %21 : vector<2x8x124xf32>
    %680 = arith.addf %676, %679 : vector<2x8x124xf32>
    %c146 = arith.constant 146 : index
    %681 = memref.load %arg1[%c146] : memref<250xf32, #tpu.memory_space<smem>>
    %682 = vector.broadcast %681 : f32 to vector<2x8x124xf32>
    %683 = arith.mulf %682, %22 : vector<2x8x124xf32>
    %684 = arith.addf %680, %683 : vector<2x8x124xf32>
    %c147 = arith.constant 147 : index
    %685 = memref.load %arg1[%c147] : memref<250xf32, #tpu.memory_space<smem>>
    %686 = vector.broadcast %685 : f32 to vector<2x8x124xf32>
    %687 = arith.mulf %686, %23 : vector<2x8x124xf32>
    %688 = arith.addf %684, %687 : vector<2x8x124xf32>
    %c148 = arith.constant 148 : index
    %689 = memref.load %arg1[%c148] : memref<250xf32, #tpu.memory_space<smem>>
    %690 = vector.broadcast %689 : f32 to vector<2x8x124xf32>
    %691 = arith.mulf %690, %24 : vector<2x8x124xf32>
    %692 = arith.addf %688, %691 : vector<2x8x124xf32>
    %c149 = arith.constant 149 : index
    %693 = memref.load %arg1[%c149] : memref<250xf32, #tpu.memory_space<smem>>
    %694 = vector.broadcast %693 : f32 to vector<2x8x124xf32>
    %695 = arith.mulf %694, %25 : vector<2x8x124xf32>
    %696 = arith.addf %692, %695 : vector<2x8x124xf32>
    %697 = vector.extract_strided_slice %696 {offsets = [0, 0, 0], sizes = [2, 8, 123], strides = [1, 1, 1]} : vector<2x8x124xf32> to vector<2x8x123xf32>
    %698 = vector.extract_strided_slice %696 {offsets = [0, 0, 1], sizes = [2, 8, 123], strides = [1, 1, 1]} : vector<2x8x124xf32> to vector<2x8x123xf32>
    %699 = arith.maximumf %697, %698 : vector<2x8x123xf32>
    %700 = vector.extract_strided_slice %699 {offsets = [0, 0, 0], sizes = [2, 7, 123], strides = [1, 1, 1]} : vector<2x8x123xf32> to vector<2x7x123xf32>
    %701 = vector.extract_strided_slice %699 {offsets = [0, 1, 0], sizes = [2, 7, 123], strides = [1, 1, 1]} : vector<2x8x123xf32> to vector<2x7x123xf32>
    %702 = arith.maximumf %700, %701 : vector<2x7x123xf32>
    %703 = vector.shape_cast %27 : vector<1x123xf32> to vector<1x1x123xf32>
    %704 = vector.broadcast %703 : vector<1x1x123xf32> to vector<2x7x123xf32>
    %705 = arith.mulf %702, %704 : vector<2x7x123xf32>
    %706 = vector.extract_strided_slice %705 {offsets = [0, 0, 0], sizes = [2, 7, 64], strides = [1, 1, 1]} : vector<2x7x123xf32> to vector<2x7x64xf32>
    %cst_14 = arith.constant dense<0.000000e+00> : vector<2x7xf32>
    %707 = vector.multi_reduction <add>, %706, %cst_14 [2] : vector<2x7x64xf32> to vector<2x7xf32>
    %708 = vector.shape_cast %707 : vector<2x7xf32> to vector<2x7x1xf32>
    %709 = vector.extract_strided_slice %705 {offsets = [0, 0, 64], sizes = [2, 7, 59], strides = [1, 1, 1]} : vector<2x7x123xf32> to vector<2x7x59xf32>
    %cst_15 = arith.constant dense<0.000000e+00> : vector<2x7xf32>
    %710 = vector.multi_reduction <add>, %709, %cst_15 [2] : vector<2x7x59xf32> to vector<2x7xf32>
    %711 = vector.shape_cast %710 : vector<2x7xf32> to vector<2x7x1xf32>
    %c150 = arith.constant 150 : index
    %712 = memref.load %arg1[%c150] : memref<250xf32, #tpu.memory_space<smem>>
    %713 = vector.broadcast %712 : f32 to vector<2x8x124xf32>
    %714 = arith.mulf %713, %1 : vector<2x8x124xf32>
    %c151 = arith.constant 151 : index
    %715 = memref.load %arg1[%c151] : memref<250xf32, #tpu.memory_space<smem>>
    %716 = vector.broadcast %715 : f32 to vector<2x8x124xf32>
    %717 = arith.mulf %716, %2 : vector<2x8x124xf32>
    %718 = arith.addf %714, %717 : vector<2x8x124xf32>
    %c152 = arith.constant 152 : index
    %719 = memref.load %arg1[%c152] : memref<250xf32, #tpu.memory_space<smem>>
    %720 = vector.broadcast %719 : f32 to vector<2x8x124xf32>
    %721 = arith.mulf %720, %3 : vector<2x8x124xf32>
    %722 = arith.addf %718, %721 : vector<2x8x124xf32>
    %c153 = arith.constant 153 : index
    %723 = memref.load %arg1[%c153] : memref<250xf32, #tpu.memory_space<smem>>
    %724 = vector.broadcast %723 : f32 to vector<2x8x124xf32>
    %725 = arith.mulf %724, %4 : vector<2x8x124xf32>
    %726 = arith.addf %722, %725 : vector<2x8x124xf32>
    %c154 = arith.constant 154 : index
    %727 = memref.load %arg1[%c154] : memref<250xf32, #tpu.memory_space<smem>>
    %728 = vector.broadcast %727 : f32 to vector<2x8x124xf32>
    %729 = arith.mulf %728, %5 : vector<2x8x124xf32>
    %730 = arith.addf %726, %729 : vector<2x8x124xf32>
    %c155 = arith.constant 155 : index
    %731 = memref.load %arg1[%c155] : memref<250xf32, #tpu.memory_space<smem>>
    %732 = vector.broadcast %731 : f32 to vector<2x8x124xf32>
    %733 = arith.mulf %732, %6 : vector<2x8x124xf32>
    %734 = arith.addf %730, %733 : vector<2x8x124xf32>
    %c156 = arith.constant 156 : index
    %735 = memref.load %arg1[%c156] : memref<250xf32, #tpu.memory_space<smem>>
    %736 = vector.broadcast %735 : f32 to vector<2x8x124xf32>
    %737 = arith.mulf %736, %7 : vector<2x8x124xf32>
    %738 = arith.addf %734, %737 : vector<2x8x124xf32>
    %c157 = arith.constant 157 : index
    %739 = memref.load %arg1[%c157] : memref<250xf32, #tpu.memory_space<smem>>
    %740 = vector.broadcast %739 : f32 to vector<2x8x124xf32>
    %741 = arith.mulf %740, %8 : vector<2x8x124xf32>
    %742 = arith.addf %738, %741 : vector<2x8x124xf32>
    %c158 = arith.constant 158 : index
    %743 = memref.load %arg1[%c158] : memref<250xf32, #tpu.memory_space<smem>>
    %744 = vector.broadcast %743 : f32 to vector<2x8x124xf32>
    %745 = arith.mulf %744, %9 : vector<2x8x124xf32>
    %746 = arith.addf %742, %745 : vector<2x8x124xf32>
    %c159 = arith.constant 159 : index
    %747 = memref.load %arg1[%c159] : memref<250xf32, #tpu.memory_space<smem>>
    %748 = vector.broadcast %747 : f32 to vector<2x8x124xf32>
    %749 = arith.mulf %748, %10 : vector<2x8x124xf32>
    %750 = arith.addf %746, %749 : vector<2x8x124xf32>
    %c160 = arith.constant 160 : index
    %751 = memref.load %arg1[%c160] : memref<250xf32, #tpu.memory_space<smem>>
    %752 = vector.broadcast %751 : f32 to vector<2x8x124xf32>
    %753 = arith.mulf %752, %11 : vector<2x8x124xf32>
    %754 = arith.addf %750, %753 : vector<2x8x124xf32>
    %c161 = arith.constant 161 : index
    %755 = memref.load %arg1[%c161] : memref<250xf32, #tpu.memory_space<smem>>
    %756 = vector.broadcast %755 : f32 to vector<2x8x124xf32>
    %757 = arith.mulf %756, %12 : vector<2x8x124xf32>
    %758 = arith.addf %754, %757 : vector<2x8x124xf32>
    %c162 = arith.constant 162 : index
    %759 = memref.load %arg1[%c162] : memref<250xf32, #tpu.memory_space<smem>>
    %760 = vector.broadcast %759 : f32 to vector<2x8x124xf32>
    %761 = arith.mulf %760, %13 : vector<2x8x124xf32>
    %762 = arith.addf %758, %761 : vector<2x8x124xf32>
    %c163 = arith.constant 163 : index
    %763 = memref.load %arg1[%c163] : memref<250xf32, #tpu.memory_space<smem>>
    %764 = vector.broadcast %763 : f32 to vector<2x8x124xf32>
    %765 = arith.mulf %764, %14 : vector<2x8x124xf32>
    %766 = arith.addf %762, %765 : vector<2x8x124xf32>
    %c164 = arith.constant 164 : index
    %767 = memref.load %arg1[%c164] : memref<250xf32, #tpu.memory_space<smem>>
    %768 = vector.broadcast %767 : f32 to vector<2x8x124xf32>
    %769 = arith.mulf %768, %15 : vector<2x8x124xf32>
    %770 = arith.addf %766, %769 : vector<2x8x124xf32>
    %c165 = arith.constant 165 : index
    %771 = memref.load %arg1[%c165] : memref<250xf32, #tpu.memory_space<smem>>
    %772 = vector.broadcast %771 : f32 to vector<2x8x124xf32>
    %773 = arith.mulf %772, %16 : vector<2x8x124xf32>
    %774 = arith.addf %770, %773 : vector<2x8x124xf32>
    %c166 = arith.constant 166 : index
    %775 = memref.load %arg1[%c166] : memref<250xf32, #tpu.memory_space<smem>>
    %776 = vector.broadcast %775 : f32 to vector<2x8x124xf32>
    %777 = arith.mulf %776, %17 : vector<2x8x124xf32>
    %778 = arith.addf %774, %777 : vector<2x8x124xf32>
    %c167 = arith.constant 167 : index
    %779 = memref.load %arg1[%c167] : memref<250xf32, #tpu.memory_space<smem>>
    %780 = vector.broadcast %779 : f32 to vector<2x8x124xf32>
    %781 = arith.mulf %780, %18 : vector<2x8x124xf32>
    %782 = arith.addf %778, %781 : vector<2x8x124xf32>
    %c168 = arith.constant 168 : index
    %783 = memref.load %arg1[%c168] : memref<250xf32, #tpu.memory_space<smem>>
    %784 = vector.broadcast %783 : f32 to vector<2x8x124xf32>
    %785 = arith.mulf %784, %19 : vector<2x8x124xf32>
    %786 = arith.addf %782, %785 : vector<2x8x124xf32>
    %c169 = arith.constant 169 : index
    %787 = memref.load %arg1[%c169] : memref<250xf32, #tpu.memory_space<smem>>
    %788 = vector.broadcast %787 : f32 to vector<2x8x124xf32>
    %789 = arith.mulf %788, %20 : vector<2x8x124xf32>
    %790 = arith.addf %786, %789 : vector<2x8x124xf32>
    %c170 = arith.constant 170 : index
    %791 = memref.load %arg1[%c170] : memref<250xf32, #tpu.memory_space<smem>>
    %792 = vector.broadcast %791 : f32 to vector<2x8x124xf32>
    %793 = arith.mulf %792, %21 : vector<2x8x124xf32>
    %794 = arith.addf %790, %793 : vector<2x8x124xf32>
    %c171 = arith.constant 171 : index
    %795 = memref.load %arg1[%c171] : memref<250xf32, #tpu.memory_space<smem>>
    %796 = vector.broadcast %795 : f32 to vector<2x8x124xf32>
    %797 = arith.mulf %796, %22 : vector<2x8x124xf32>
    %798 = arith.addf %794, %797 : vector<2x8x124xf32>
    %c172 = arith.constant 172 : index
    %799 = memref.load %arg1[%c172] : memref<250xf32, #tpu.memory_space<smem>>
    %800 = vector.broadcast %799 : f32 to vector<2x8x124xf32>
    %801 = arith.mulf %800, %23 : vector<2x8x124xf32>
    %802 = arith.addf %798, %801 : vector<2x8x124xf32>
    %c173 = arith.constant 173 : index
    %803 = memref.load %arg1[%c173] : memref<250xf32, #tpu.memory_space<smem>>
    %804 = vector.broadcast %803 : f32 to vector<2x8x124xf32>
    %805 = arith.mulf %804, %24 : vector<2x8x124xf32>
    %806 = arith.addf %802, %805 : vector<2x8x124xf32>
    %c174 = arith.constant 174 : index
    %807 = memref.load %arg1[%c174] : memref<250xf32, #tpu.memory_space<smem>>
    %808 = vector.broadcast %807 : f32 to vector<2x8x124xf32>
    %809 = arith.mulf %808, %25 : vector<2x8x124xf32>
    %810 = arith.addf %806, %809 : vector<2x8x124xf32>
    %811 = vector.extract_strided_slice %810 {offsets = [0, 0, 0], sizes = [2, 8, 123], strides = [1, 1, 1]} : vector<2x8x124xf32> to vector<2x8x123xf32>
    %812 = vector.extract_strided_slice %810 {offsets = [0, 0, 1], sizes = [2, 8, 123], strides = [1, 1, 1]} : vector<2x8x124xf32> to vector<2x8x123xf32>
    %813 = arith.maximumf %811, %812 : vector<2x8x123xf32>
    %814 = vector.extract_strided_slice %813 {offsets = [0, 0, 0], sizes = [2, 7, 123], strides = [1, 1, 1]} : vector<2x8x123xf32> to vector<2x7x123xf32>
    %815 = vector.extract_strided_slice %813 {offsets = [0, 1, 0], sizes = [2, 7, 123], strides = [1, 1, 1]} : vector<2x8x123xf32> to vector<2x7x123xf32>
    %816 = arith.maximumf %814, %815 : vector<2x7x123xf32>
    %817 = vector.shape_cast %27 : vector<1x123xf32> to vector<1x1x123xf32>
    %818 = vector.broadcast %817 : vector<1x1x123xf32> to vector<2x7x123xf32>
    %819 = arith.mulf %816, %818 : vector<2x7x123xf32>
    %820 = vector.extract_strided_slice %819 {offsets = [0, 0, 0], sizes = [2, 7, 64], strides = [1, 1, 1]} : vector<2x7x123xf32> to vector<2x7x64xf32>
    %cst_16 = arith.constant dense<0.000000e+00> : vector<2x7xf32>
    %821 = vector.multi_reduction <add>, %820, %cst_16 [2] : vector<2x7x64xf32> to vector<2x7xf32>
    %822 = vector.shape_cast %821 : vector<2x7xf32> to vector<2x7x1xf32>
    %823 = vector.extract_strided_slice %819 {offsets = [0, 0, 64], sizes = [2, 7, 59], strides = [1, 1, 1]} : vector<2x7x123xf32> to vector<2x7x59xf32>
    %cst_17 = arith.constant dense<0.000000e+00> : vector<2x7xf32>
    %824 = vector.multi_reduction <add>, %823, %cst_17 [2] : vector<2x7x59xf32> to vector<2x7xf32>
    %825 = vector.shape_cast %824 : vector<2x7xf32> to vector<2x7x1xf32>
    %c175 = arith.constant 175 : index
    %826 = memref.load %arg1[%c175] : memref<250xf32, #tpu.memory_space<smem>>
    %827 = vector.broadcast %826 : f32 to vector<2x8x124xf32>
    %828 = arith.mulf %827, %1 : vector<2x8x124xf32>
    %c176 = arith.constant 176 : index
    %829 = memref.load %arg1[%c176] : memref<250xf32, #tpu.memory_space<smem>>
    %830 = vector.broadcast %829 : f32 to vector<2x8x124xf32>
    %831 = arith.mulf %830, %2 : vector<2x8x124xf32>
    %832 = arith.addf %828, %831 : vector<2x8x124xf32>
    %c177 = arith.constant 177 : index
    %833 = memref.load %arg1[%c177] : memref<250xf32, #tpu.memory_space<smem>>
    %834 = vector.broadcast %833 : f32 to vector<2x8x124xf32>
    %835 = arith.mulf %834, %3 : vector<2x8x124xf32>
    %836 = arith.addf %832, %835 : vector<2x8x124xf32>
    %c178 = arith.constant 178 : index
    %837 = memref.load %arg1[%c178] : memref<250xf32, #tpu.memory_space<smem>>
    %838 = vector.broadcast %837 : f32 to vector<2x8x124xf32>
    %839 = arith.mulf %838, %4 : vector<2x8x124xf32>
    %840 = arith.addf %836, %839 : vector<2x8x124xf32>
    %c179 = arith.constant 179 : index
    %841 = memref.load %arg1[%c179] : memref<250xf32, #tpu.memory_space<smem>>
    %842 = vector.broadcast %841 : f32 to vector<2x8x124xf32>
    %843 = arith.mulf %842, %5 : vector<2x8x124xf32>
    %844 = arith.addf %840, %843 : vector<2x8x124xf32>
    %c180 = arith.constant 180 : index
    %845 = memref.load %arg1[%c180] : memref<250xf32, #tpu.memory_space<smem>>
    %846 = vector.broadcast %845 : f32 to vector<2x8x124xf32>
    %847 = arith.mulf %846, %6 : vector<2x8x124xf32>
    %848 = arith.addf %844, %847 : vector<2x8x124xf32>
    %c181 = arith.constant 181 : index
    %849 = memref.load %arg1[%c181] : memref<250xf32, #tpu.memory_space<smem>>
    %850 = vector.broadcast %849 : f32 to vector<2x8x124xf32>
    %851 = arith.mulf %850, %7 : vector<2x8x124xf32>
    %852 = arith.addf %848, %851 : vector<2x8x124xf32>
    %c182 = arith.constant 182 : index
    %853 = memref.load %arg1[%c182] : memref<250xf32, #tpu.memory_space<smem>>
    %854 = vector.broadcast %853 : f32 to vector<2x8x124xf32>
    %855 = arith.mulf %854, %8 : vector<2x8x124xf32>
    %856 = arith.addf %852, %855 : vector<2x8x124xf32>
    %c183 = arith.constant 183 : index
    %857 = memref.load %arg1[%c183] : memref<250xf32, #tpu.memory_space<smem>>
    %858 = vector.broadcast %857 : f32 to vector<2x8x124xf32>
    %859 = arith.mulf %858, %9 : vector<2x8x124xf32>
    %860 = arith.addf %856, %859 : vector<2x8x124xf32>
    %c184 = arith.constant 184 : index
    %861 = memref.load %arg1[%c184] : memref<250xf32, #tpu.memory_space<smem>>
    %862 = vector.broadcast %861 : f32 to vector<2x8x124xf32>
    %863 = arith.mulf %862, %10 : vector<2x8x124xf32>
    %864 = arith.addf %860, %863 : vector<2x8x124xf32>
    %c185 = arith.constant 185 : index
    %865 = memref.load %arg1[%c185] : memref<250xf32, #tpu.memory_space<smem>>
    %866 = vector.broadcast %865 : f32 to vector<2x8x124xf32>
    %867 = arith.mulf %866, %11 : vector<2x8x124xf32>
    %868 = arith.addf %864, %867 : vector<2x8x124xf32>
    %c186 = arith.constant 186 : index
    %869 = memref.load %arg1[%c186] : memref<250xf32, #tpu.memory_space<smem>>
    %870 = vector.broadcast %869 : f32 to vector<2x8x124xf32>
    %871 = arith.mulf %870, %12 : vector<2x8x124xf32>
    %872 = arith.addf %868, %871 : vector<2x8x124xf32>
    %c187 = arith.constant 187 : index
    %873 = memref.load %arg1[%c187] : memref<250xf32, #tpu.memory_space<smem>>
    %874 = vector.broadcast %873 : f32 to vector<2x8x124xf32>
    %875 = arith.mulf %874, %13 : vector<2x8x124xf32>
    %876 = arith.addf %872, %875 : vector<2x8x124xf32>
    %c188 = arith.constant 188 : index
    %877 = memref.load %arg1[%c188] : memref<250xf32, #tpu.memory_space<smem>>
    %878 = vector.broadcast %877 : f32 to vector<2x8x124xf32>
    %879 = arith.mulf %878, %14 : vector<2x8x124xf32>
    %880 = arith.addf %876, %879 : vector<2x8x124xf32>
    %c189 = arith.constant 189 : index
    %881 = memref.load %arg1[%c189] : memref<250xf32, #tpu.memory_space<smem>>
    %882 = vector.broadcast %881 : f32 to vector<2x8x124xf32>
    %883 = arith.mulf %882, %15 : vector<2x8x124xf32>
    %884 = arith.addf %880, %883 : vector<2x8x124xf32>
    %c190 = arith.constant 190 : index
    %885 = memref.load %arg1[%c190] : memref<250xf32, #tpu.memory_space<smem>>
    %886 = vector.broadcast %885 : f32 to vector<2x8x124xf32>
    %887 = arith.mulf %886, %16 : vector<2x8x124xf32>
    %888 = arith.addf %884, %887 : vector<2x8x124xf32>
    %c191 = arith.constant 191 : index
    %889 = memref.load %arg1[%c191] : memref<250xf32, #tpu.memory_space<smem>>
    %890 = vector.broadcast %889 : f32 to vector<2x8x124xf32>
    %891 = arith.mulf %890, %17 : vector<2x8x124xf32>
    %892 = arith.addf %888, %891 : vector<2x8x124xf32>
    %c192 = arith.constant 192 : index
    %893 = memref.load %arg1[%c192] : memref<250xf32, #tpu.memory_space<smem>>
    %894 = vector.broadcast %893 : f32 to vector<2x8x124xf32>
    %895 = arith.mulf %894, %18 : vector<2x8x124xf32>
    %896 = arith.addf %892, %895 : vector<2x8x124xf32>
    %c193 = arith.constant 193 : index
    %897 = memref.load %arg1[%c193] : memref<250xf32, #tpu.memory_space<smem>>
    %898 = vector.broadcast %897 : f32 to vector<2x8x124xf32>
    %899 = arith.mulf %898, %19 : vector<2x8x124xf32>
    %900 = arith.addf %896, %899 : vector<2x8x124xf32>
    %c194 = arith.constant 194 : index
    %901 = memref.load %arg1[%c194] : memref<250xf32, #tpu.memory_space<smem>>
    %902 = vector.broadcast %901 : f32 to vector<2x8x124xf32>
    %903 = arith.mulf %902, %20 : vector<2x8x124xf32>
    %904 = arith.addf %900, %903 : vector<2x8x124xf32>
    %c195 = arith.constant 195 : index
    %905 = memref.load %arg1[%c195] : memref<250xf32, #tpu.memory_space<smem>>
    %906 = vector.broadcast %905 : f32 to vector<2x8x124xf32>
    %907 = arith.mulf %906, %21 : vector<2x8x124xf32>
    %908 = arith.addf %904, %907 : vector<2x8x124xf32>
    %c196 = arith.constant 196 : index
    %909 = memref.load %arg1[%c196] : memref<250xf32, #tpu.memory_space<smem>>
    %910 = vector.broadcast %909 : f32 to vector<2x8x124xf32>
    %911 = arith.mulf %910, %22 : vector<2x8x124xf32>
    %912 = arith.addf %908, %911 : vector<2x8x124xf32>
    %c197 = arith.constant 197 : index
    %913 = memref.load %arg1[%c197] : memref<250xf32, #tpu.memory_space<smem>>
    %914 = vector.broadcast %913 : f32 to vector<2x8x124xf32>
    %915 = arith.mulf %914, %23 : vector<2x8x124xf32>
    %916 = arith.addf %912, %915 : vector<2x8x124xf32>
    %c198 = arith.constant 198 : index
    %917 = memref.load %arg1[%c198] : memref<250xf32, #tpu.memory_space<smem>>
    %918 = vector.broadcast %917 : f32 to vector<2x8x124xf32>
    %919 = arith.mulf %918, %24 : vector<2x8x124xf32>
    %920 = arith.addf %916, %919 : vector<2x8x124xf32>
    %c199 = arith.constant 199 : index
    %921 = memref.load %arg1[%c199] : memref<250xf32, #tpu.memory_space<smem>>
    %922 = vector.broadcast %921 : f32 to vector<2x8x124xf32>
    %923 = arith.mulf %922, %25 : vector<2x8x124xf32>
    %924 = arith.addf %920, %923 : vector<2x8x124xf32>
    %925 = vector.extract_strided_slice %924 {offsets = [0, 0, 0], sizes = [2, 8, 123], strides = [1, 1, 1]} : vector<2x8x124xf32> to vector<2x8x123xf32>
    %926 = vector.extract_strided_slice %924 {offsets = [0, 0, 1], sizes = [2, 8, 123], strides = [1, 1, 1]} : vector<2x8x124xf32> to vector<2x8x123xf32>
    %927 = arith.maximumf %925, %926 : vector<2x8x123xf32>
    %928 = vector.extract_strided_slice %927 {offsets = [0, 0, 0], sizes = [2, 7, 123], strides = [1, 1, 1]} : vector<2x8x123xf32> to vector<2x7x123xf32>
    %929 = vector.extract_strided_slice %927 {offsets = [0, 1, 0], sizes = [2, 7, 123], strides = [1, 1, 1]} : vector<2x8x123xf32> to vector<2x7x123xf32>
    %930 = arith.maximumf %928, %929 : vector<2x7x123xf32>
    %931 = vector.shape_cast %27 : vector<1x123xf32> to vector<1x1x123xf32>
    %932 = vector.broadcast %931 : vector<1x1x123xf32> to vector<2x7x123xf32>
    %933 = arith.mulf %930, %932 : vector<2x7x123xf32>
    %934 = vector.extract_strided_slice %933 {offsets = [0, 0, 0], sizes = [2, 7, 64], strides = [1, 1, 1]} : vector<2x7x123xf32> to vector<2x7x64xf32>
    %cst_18 = arith.constant dense<0.000000e+00> : vector<2x7xf32>
    %935 = vector.multi_reduction <add>, %934, %cst_18 [2] : vector<2x7x64xf32> to vector<2x7xf32>
    %936 = vector.shape_cast %935 : vector<2x7xf32> to vector<2x7x1xf32>
    %937 = vector.extract_strided_slice %933 {offsets = [0, 0, 64], sizes = [2, 7, 59], strides = [1, 1, 1]} : vector<2x7x123xf32> to vector<2x7x59xf32>
    %cst_19 = arith.constant dense<0.000000e+00> : vector<2x7xf32>
    %938 = vector.multi_reduction <add>, %937, %cst_19 [2] : vector<2x7x59xf32> to vector<2x7xf32>
    %939 = vector.shape_cast %938 : vector<2x7xf32> to vector<2x7x1xf32>
    %c200 = arith.constant 200 : index
    %940 = memref.load %arg1[%c200] : memref<250xf32, #tpu.memory_space<smem>>
    %941 = vector.broadcast %940 : f32 to vector<2x8x124xf32>
    %942 = arith.mulf %941, %1 : vector<2x8x124xf32>
    %c201 = arith.constant 201 : index
    %943 = memref.load %arg1[%c201] : memref<250xf32, #tpu.memory_space<smem>>
    %944 = vector.broadcast %943 : f32 to vector<2x8x124xf32>
    %945 = arith.mulf %944, %2 : vector<2x8x124xf32>
    %946 = arith.addf %942, %945 : vector<2x8x124xf32>
    %c202 = arith.constant 202 : index
    %947 = memref.load %arg1[%c202] : memref<250xf32, #tpu.memory_space<smem>>
    %948 = vector.broadcast %947 : f32 to vector<2x8x124xf32>
    %949 = arith.mulf %948, %3 : vector<2x8x124xf32>
    %950 = arith.addf %946, %949 : vector<2x8x124xf32>
    %c203 = arith.constant 203 : index
    %951 = memref.load %arg1[%c203] : memref<250xf32, #tpu.memory_space<smem>>
    %952 = vector.broadcast %951 : f32 to vector<2x8x124xf32>
    %953 = arith.mulf %952, %4 : vector<2x8x124xf32>
    %954 = arith.addf %950, %953 : vector<2x8x124xf32>
    %c204 = arith.constant 204 : index
    %955 = memref.load %arg1[%c204] : memref<250xf32, #tpu.memory_space<smem>>
    %956 = vector.broadcast %955 : f32 to vector<2x8x124xf32>
    %957 = arith.mulf %956, %5 : vector<2x8x124xf32>
    %958 = arith.addf %954, %957 : vector<2x8x124xf32>
    %c205 = arith.constant 205 : index
    %959 = memref.load %arg1[%c205] : memref<250xf32, #tpu.memory_space<smem>>
    %960 = vector.broadcast %959 : f32 to vector<2x8x124xf32>
    %961 = arith.mulf %960, %6 : vector<2x8x124xf32>
    %962 = arith.addf %958, %961 : vector<2x8x124xf32>
    %c206 = arith.constant 206 : index
    %963 = memref.load %arg1[%c206] : memref<250xf32, #tpu.memory_space<smem>>
    %964 = vector.broadcast %963 : f32 to vector<2x8x124xf32>
    %965 = arith.mulf %964, %7 : vector<2x8x124xf32>
    %966 = arith.addf %962, %965 : vector<2x8x124xf32>
    %c207 = arith.constant 207 : index
    %967 = memref.load %arg1[%c207] : memref<250xf32, #tpu.memory_space<smem>>
    %968 = vector.broadcast %967 : f32 to vector<2x8x124xf32>
    %969 = arith.mulf %968, %8 : vector<2x8x124xf32>
    %970 = arith.addf %966, %969 : vector<2x8x124xf32>
    %c208 = arith.constant 208 : index
    %971 = memref.load %arg1[%c208] : memref<250xf32, #tpu.memory_space<smem>>
    %972 = vector.broadcast %971 : f32 to vector<2x8x124xf32>
    %973 = arith.mulf %972, %9 : vector<2x8x124xf32>
    %974 = arith.addf %970, %973 : vector<2x8x124xf32>
    %c209 = arith.constant 209 : index
    %975 = memref.load %arg1[%c209] : memref<250xf32, #tpu.memory_space<smem>>
    %976 = vector.broadcast %975 : f32 to vector<2x8x124xf32>
    %977 = arith.mulf %976, %10 : vector<2x8x124xf32>
    %978 = arith.addf %974, %977 : vector<2x8x124xf32>
    %c210 = arith.constant 210 : index
    %979 = memref.load %arg1[%c210] : memref<250xf32, #tpu.memory_space<smem>>
    %980 = vector.broadcast %979 : f32 to vector<2x8x124xf32>
    %981 = arith.mulf %980, %11 : vector<2x8x124xf32>
    %982 = arith.addf %978, %981 : vector<2x8x124xf32>
    %c211 = arith.constant 211 : index
    %983 = memref.load %arg1[%c211] : memref<250xf32, #tpu.memory_space<smem>>
    %984 = vector.broadcast %983 : f32 to vector<2x8x124xf32>
    %985 = arith.mulf %984, %12 : vector<2x8x124xf32>
    %986 = arith.addf %982, %985 : vector<2x8x124xf32>
    %c212 = arith.constant 212 : index
    %987 = memref.load %arg1[%c212] : memref<250xf32, #tpu.memory_space<smem>>
    %988 = vector.broadcast %987 : f32 to vector<2x8x124xf32>
    %989 = arith.mulf %988, %13 : vector<2x8x124xf32>
    %990 = arith.addf %986, %989 : vector<2x8x124xf32>
    %c213 = arith.constant 213 : index
    %991 = memref.load %arg1[%c213] : memref<250xf32, #tpu.memory_space<smem>>
    %992 = vector.broadcast %991 : f32 to vector<2x8x124xf32>
    %993 = arith.mulf %992, %14 : vector<2x8x124xf32>
    %994 = arith.addf %990, %993 : vector<2x8x124xf32>
    %c214 = arith.constant 214 : index
    %995 = memref.load %arg1[%c214] : memref<250xf32, #tpu.memory_space<smem>>
    %996 = vector.broadcast %995 : f32 to vector<2x8x124xf32>
    %997 = arith.mulf %996, %15 : vector<2x8x124xf32>
    %998 = arith.addf %994, %997 : vector<2x8x124xf32>
    %c215 = arith.constant 215 : index
    %999 = memref.load %arg1[%c215] : memref<250xf32, #tpu.memory_space<smem>>
    %1000 = vector.broadcast %999 : f32 to vector<2x8x124xf32>
    %1001 = arith.mulf %1000, %16 : vector<2x8x124xf32>
    %1002 = arith.addf %998, %1001 : vector<2x8x124xf32>
    %c216 = arith.constant 216 : index
    %1003 = memref.load %arg1[%c216] : memref<250xf32, #tpu.memory_space<smem>>
    %1004 = vector.broadcast %1003 : f32 to vector<2x8x124xf32>
    %1005 = arith.mulf %1004, %17 : vector<2x8x124xf32>
    %1006 = arith.addf %1002, %1005 : vector<2x8x124xf32>
    %c217 = arith.constant 217 : index
    %1007 = memref.load %arg1[%c217] : memref<250xf32, #tpu.memory_space<smem>>
    %1008 = vector.broadcast %1007 : f32 to vector<2x8x124xf32>
    %1009 = arith.mulf %1008, %18 : vector<2x8x124xf32>
    %1010 = arith.addf %1006, %1009 : vector<2x8x124xf32>
    %c218 = arith.constant 218 : index
    %1011 = memref.load %arg1[%c218] : memref<250xf32, #tpu.memory_space<smem>>
    %1012 = vector.broadcast %1011 : f32 to vector<2x8x124xf32>
    %1013 = arith.mulf %1012, %19 : vector<2x8x124xf32>
    %1014 = arith.addf %1010, %1013 : vector<2x8x124xf32>
    %c219 = arith.constant 219 : index
    %1015 = memref.load %arg1[%c219] : memref<250xf32, #tpu.memory_space<smem>>
    %1016 = vector.broadcast %1015 : f32 to vector<2x8x124xf32>
    %1017 = arith.mulf %1016, %20 : vector<2x8x124xf32>
    %1018 = arith.addf %1014, %1017 : vector<2x8x124xf32>
    %c220 = arith.constant 220 : index
    %1019 = memref.load %arg1[%c220] : memref<250xf32, #tpu.memory_space<smem>>
    %1020 = vector.broadcast %1019 : f32 to vector<2x8x124xf32>
    %1021 = arith.mulf %1020, %21 : vector<2x8x124xf32>
    %1022 = arith.addf %1018, %1021 : vector<2x8x124xf32>
    %c221 = arith.constant 221 : index
    %1023 = memref.load %arg1[%c221] : memref<250xf32, #tpu.memory_space<smem>>
    %1024 = vector.broadcast %1023 : f32 to vector<2x8x124xf32>
    %1025 = arith.mulf %1024, %22 : vector<2x8x124xf32>
    %1026 = arith.addf %1022, %1025 : vector<2x8x124xf32>
    %c222 = arith.constant 222 : index
    %1027 = memref.load %arg1[%c222] : memref<250xf32, #tpu.memory_space<smem>>
    %1028 = vector.broadcast %1027 : f32 to vector<2x8x124xf32>
    %1029 = arith.mulf %1028, %23 : vector<2x8x124xf32>
    %1030 = arith.addf %1026, %1029 : vector<2x8x124xf32>
    %c223 = arith.constant 223 : index
    %1031 = memref.load %arg1[%c223] : memref<250xf32, #tpu.memory_space<smem>>
    %1032 = vector.broadcast %1031 : f32 to vector<2x8x124xf32>
    %1033 = arith.mulf %1032, %24 : vector<2x8x124xf32>
    %1034 = arith.addf %1030, %1033 : vector<2x8x124xf32>
    %c224 = arith.constant 224 : index
    %1035 = memref.load %arg1[%c224] : memref<250xf32, #tpu.memory_space<smem>>
    %1036 = vector.broadcast %1035 : f32 to vector<2x8x124xf32>
    %1037 = arith.mulf %1036, %25 : vector<2x8x124xf32>
    %1038 = arith.addf %1034, %1037 : vector<2x8x124xf32>
    %1039 = vector.extract_strided_slice %1038 {offsets = [0, 0, 0], sizes = [2, 8, 123], strides = [1, 1, 1]} : vector<2x8x124xf32> to vector<2x8x123xf32>
    %1040 = vector.extract_strided_slice %1038 {offsets = [0, 0, 1], sizes = [2, 8, 123], strides = [1, 1, 1]} : vector<2x8x124xf32> to vector<2x8x123xf32>
    %1041 = arith.maximumf %1039, %1040 : vector<2x8x123xf32>
    %1042 = vector.extract_strided_slice %1041 {offsets = [0, 0, 0], sizes = [2, 7, 123], strides = [1, 1, 1]} : vector<2x8x123xf32> to vector<2x7x123xf32>
    %1043 = vector.extract_strided_slice %1041 {offsets = [0, 1, 0], sizes = [2, 7, 123], strides = [1, 1, 1]} : vector<2x8x123xf32> to vector<2x7x123xf32>
    %1044 = arith.maximumf %1042, %1043 : vector<2x7x123xf32>
    %1045 = vector.shape_cast %27 : vector<1x123xf32> to vector<1x1x123xf32>
    %1046 = vector.broadcast %1045 : vector<1x1x123xf32> to vector<2x7x123xf32>
    %1047 = arith.mulf %1044, %1046 : vector<2x7x123xf32>
    %1048 = vector.extract_strided_slice %1047 {offsets = [0, 0, 0], sizes = [2, 7, 64], strides = [1, 1, 1]} : vector<2x7x123xf32> to vector<2x7x64xf32>
    %cst_20 = arith.constant dense<0.000000e+00> : vector<2x7xf32>
    %1049 = vector.multi_reduction <add>, %1048, %cst_20 [2] : vector<2x7x64xf32> to vector<2x7xf32>
    %1050 = vector.shape_cast %1049 : vector<2x7xf32> to vector<2x7x1xf32>
    %1051 = vector.extract_strided_slice %1047 {offsets = [0, 0, 64], sizes = [2, 7, 59], strides = [1, 1, 1]} : vector<2x7x123xf32> to vector<2x7x59xf32>
    %cst_21 = arith.constant dense<0.000000e+00> : vector<2x7xf32>
    %1052 = vector.multi_reduction <add>, %1051, %cst_21 [2] : vector<2x7x59xf32> to vector<2x7xf32>
    %1053 = vector.shape_cast %1052 : vector<2x7xf32> to vector<2x7x1xf32>
    %c225 = arith.constant 225 : index
    %1054 = memref.load %arg1[%c225] : memref<250xf32, #tpu.memory_space<smem>>
    %1055 = vector.broadcast %1054 : f32 to vector<2x8x124xf32>
    %1056 = arith.mulf %1055, %1 : vector<2x8x124xf32>
    %c226 = arith.constant 226 : index
    %1057 = memref.load %arg1[%c226] : memref<250xf32, #tpu.memory_space<smem>>
    %1058 = vector.broadcast %1057 : f32 to vector<2x8x124xf32>
    %1059 = arith.mulf %1058, %2 : vector<2x8x124xf32>
    %1060 = arith.addf %1056, %1059 : vector<2x8x124xf32>
    %c227 = arith.constant 227 : index
    %1061 = memref.load %arg1[%c227] : memref<250xf32, #tpu.memory_space<smem>>
    %1062 = vector.broadcast %1061 : f32 to vector<2x8x124xf32>
    %1063 = arith.mulf %1062, %3 : vector<2x8x124xf32>
    %1064 = arith.addf %1060, %1063 : vector<2x8x124xf32>
    %c228 = arith.constant 228 : index
    %1065 = memref.load %arg1[%c228] : memref<250xf32, #tpu.memory_space<smem>>
    %1066 = vector.broadcast %1065 : f32 to vector<2x8x124xf32>
    %1067 = arith.mulf %1066, %4 : vector<2x8x124xf32>
    %1068 = arith.addf %1064, %1067 : vector<2x8x124xf32>
    %c229 = arith.constant 229 : index
    %1069 = memref.load %arg1[%c229] : memref<250xf32, #tpu.memory_space<smem>>
    %1070 = vector.broadcast %1069 : f32 to vector<2x8x124xf32>
    %1071 = arith.mulf %1070, %5 : vector<2x8x124xf32>
    %1072 = arith.addf %1068, %1071 : vector<2x8x124xf32>
    %c230 = arith.constant 230 : index
    %1073 = memref.load %arg1[%c230] : memref<250xf32, #tpu.memory_space<smem>>
    %1074 = vector.broadcast %1073 : f32 to vector<2x8x124xf32>
    %1075 = arith.mulf %1074, %6 : vector<2x8x124xf32>
    %1076 = arith.addf %1072, %1075 : vector<2x8x124xf32>
    %c231 = arith.constant 231 : index
    %1077 = memref.load %arg1[%c231] : memref<250xf32, #tpu.memory_space<smem>>
    %1078 = vector.broadcast %1077 : f32 to vector<2x8x124xf32>
    %1079 = arith.mulf %1078, %7 : vector<2x8x124xf32>
    %1080 = arith.addf %1076, %1079 : vector<2x8x124xf32>
    %c232 = arith.constant 232 : index
    %1081 = memref.load %arg1[%c232] : memref<250xf32, #tpu.memory_space<smem>>
    %1082 = vector.broadcast %1081 : f32 to vector<2x8x124xf32>
    %1083 = arith.mulf %1082, %8 : vector<2x8x124xf32>
    %1084 = arith.addf %1080, %1083 : vector<2x8x124xf32>
    %c233 = arith.constant 233 : index
    %1085 = memref.load %arg1[%c233] : memref<250xf32, #tpu.memory_space<smem>>
    %1086 = vector.broadcast %1085 : f32 to vector<2x8x124xf32>
    %1087 = arith.mulf %1086, %9 : vector<2x8x124xf32>
    %1088 = arith.addf %1084, %1087 : vector<2x8x124xf32>
    %c234 = arith.constant 234 : index
    %1089 = memref.load %arg1[%c234] : memref<250xf32, #tpu.memory_space<smem>>
    %1090 = vector.broadcast %1089 : f32 to vector<2x8x124xf32>
    %1091 = arith.mulf %1090, %10 : vector<2x8x124xf32>
    %1092 = arith.addf %1088, %1091 : vector<2x8x124xf32>
    %c235 = arith.constant 235 : index
    %1093 = memref.load %arg1[%c235] : memref<250xf32, #tpu.memory_space<smem>>
    %1094 = vector.broadcast %1093 : f32 to vector<2x8x124xf32>
    %1095 = arith.mulf %1094, %11 : vector<2x8x124xf32>
    %1096 = arith.addf %1092, %1095 : vector<2x8x124xf32>
    %c236 = arith.constant 236 : index
    %1097 = memref.load %arg1[%c236] : memref<250xf32, #tpu.memory_space<smem>>
    %1098 = vector.broadcast %1097 : f32 to vector<2x8x124xf32>
    %1099 = arith.mulf %1098, %12 : vector<2x8x124xf32>
    %1100 = arith.addf %1096, %1099 : vector<2x8x124xf32>
    %c237 = arith.constant 237 : index
    %1101 = memref.load %arg1[%c237] : memref<250xf32, #tpu.memory_space<smem>>
    %1102 = vector.broadcast %1101 : f32 to vector<2x8x124xf32>
    %1103 = arith.mulf %1102, %13 : vector<2x8x124xf32>
    %1104 = arith.addf %1100, %1103 : vector<2x8x124xf32>
    %c238 = arith.constant 238 : index
    %1105 = memref.load %arg1[%c238] : memref<250xf32, #tpu.memory_space<smem>>
    %1106 = vector.broadcast %1105 : f32 to vector<2x8x124xf32>
    %1107 = arith.mulf %1106, %14 : vector<2x8x124xf32>
    %1108 = arith.addf %1104, %1107 : vector<2x8x124xf32>
    %c239 = arith.constant 239 : index
    %1109 = memref.load %arg1[%c239] : memref<250xf32, #tpu.memory_space<smem>>
    %1110 = vector.broadcast %1109 : f32 to vector<2x8x124xf32>
    %1111 = arith.mulf %1110, %15 : vector<2x8x124xf32>
    %1112 = arith.addf %1108, %1111 : vector<2x8x124xf32>
    %c240 = arith.constant 240 : index
    %1113 = memref.load %arg1[%c240] : memref<250xf32, #tpu.memory_space<smem>>
    %1114 = vector.broadcast %1113 : f32 to vector<2x8x124xf32>
    %1115 = arith.mulf %1114, %16 : vector<2x8x124xf32>
    %1116 = arith.addf %1112, %1115 : vector<2x8x124xf32>
    %c241 = arith.constant 241 : index
    %1117 = memref.load %arg1[%c241] : memref<250xf32, #tpu.memory_space<smem>>
    %1118 = vector.broadcast %1117 : f32 to vector<2x8x124xf32>
    %1119 = arith.mulf %1118, %17 : vector<2x8x124xf32>
    %1120 = arith.addf %1116, %1119 : vector<2x8x124xf32>
    %c242 = arith.constant 242 : index
    %1121 = memref.load %arg1[%c242] : memref<250xf32, #tpu.memory_space<smem>>
    %1122 = vector.broadcast %1121 : f32 to vector<2x8x124xf32>
    %1123 = arith.mulf %1122, %18 : vector<2x8x124xf32>
    %1124 = arith.addf %1120, %1123 : vector<2x8x124xf32>
    %c243 = arith.constant 243 : index
    %1125 = memref.load %arg1[%c243] : memref<250xf32, #tpu.memory_space<smem>>
    %1126 = vector.broadcast %1125 : f32 to vector<2x8x124xf32>
    %1127 = arith.mulf %1126, %19 : vector<2x8x124xf32>
    %1128 = arith.addf %1124, %1127 : vector<2x8x124xf32>
    %c244 = arith.constant 244 : index
    %1129 = memref.load %arg1[%c244] : memref<250xf32, #tpu.memory_space<smem>>
    %1130 = vector.broadcast %1129 : f32 to vector<2x8x124xf32>
    %1131 = arith.mulf %1130, %20 : vector<2x8x124xf32>
    %1132 = arith.addf %1128, %1131 : vector<2x8x124xf32>
    %c245 = arith.constant 245 : index
    %1133 = memref.load %arg1[%c245] : memref<250xf32, #tpu.memory_space<smem>>
    %1134 = vector.broadcast %1133 : f32 to vector<2x8x124xf32>
    %1135 = arith.mulf %1134, %21 : vector<2x8x124xf32>
    %1136 = arith.addf %1132, %1135 : vector<2x8x124xf32>
    %c246 = arith.constant 246 : index
    %1137 = memref.load %arg1[%c246] : memref<250xf32, #tpu.memory_space<smem>>
    %1138 = vector.broadcast %1137 : f32 to vector<2x8x124xf32>
    %1139 = arith.mulf %1138, %22 : vector<2x8x124xf32>
    %1140 = arith.addf %1136, %1139 : vector<2x8x124xf32>
    %c247 = arith.constant 247 : index
    %1141 = memref.load %arg1[%c247] : memref<250xf32, #tpu.memory_space<smem>>
    %1142 = vector.broadcast %1141 : f32 to vector<2x8x124xf32>
    %1143 = arith.mulf %1142, %23 : vector<2x8x124xf32>
    %1144 = arith.addf %1140, %1143 : vector<2x8x124xf32>
    %c248 = arith.constant 248 : index
    %1145 = memref.load %arg1[%c248] : memref<250xf32, #tpu.memory_space<smem>>
    %1146 = vector.broadcast %1145 : f32 to vector<2x8x124xf32>
    %1147 = arith.mulf %1146, %24 : vector<2x8x124xf32>
    %1148 = arith.addf %1144, %1147 : vector<2x8x124xf32>
    %c249 = arith.constant 249 : index
    %1149 = memref.load %arg1[%c249] : memref<250xf32, #tpu.memory_space<smem>>
    %1150 = vector.broadcast %1149 : f32 to vector<2x8x124xf32>
    %1151 = arith.mulf %1150, %25 : vector<2x8x124xf32>
    %1152 = arith.addf %1148, %1151 : vector<2x8x124xf32>
    %1153 = vector.extract_strided_slice %1152 {offsets = [0, 0, 0], sizes = [2, 8, 123], strides = [1, 1, 1]} : vector<2x8x124xf32> to vector<2x8x123xf32>
    %1154 = vector.extract_strided_slice %1152 {offsets = [0, 0, 1], sizes = [2, 8, 123], strides = [1, 1, 1]} : vector<2x8x124xf32> to vector<2x8x123xf32>
    %1155 = arith.maximumf %1153, %1154 : vector<2x8x123xf32>
    %1156 = vector.extract_strided_slice %1155 {offsets = [0, 0, 0], sizes = [2, 7, 123], strides = [1, 1, 1]} : vector<2x8x123xf32> to vector<2x7x123xf32>
    %1157 = vector.extract_strided_slice %1155 {offsets = [0, 1, 0], sizes = [2, 7, 123], strides = [1, 1, 1]} : vector<2x8x123xf32> to vector<2x7x123xf32>
    %1158 = arith.maximumf %1156, %1157 : vector<2x7x123xf32>
    %1159 = vector.shape_cast %27 : vector<1x123xf32> to vector<1x1x123xf32>
    %1160 = vector.broadcast %1159 : vector<1x1x123xf32> to vector<2x7x123xf32>
    %1161 = arith.mulf %1158, %1160 : vector<2x7x123xf32>
    %1162 = vector.extract_strided_slice %1161 {offsets = [0, 0, 0], sizes = [2, 7, 64], strides = [1, 1, 1]} : vector<2x7x123xf32> to vector<2x7x64xf32>
    %cst_22 = arith.constant dense<0.000000e+00> : vector<2x7xf32>
    %1163 = vector.multi_reduction <add>, %1162, %cst_22 [2] : vector<2x7x64xf32> to vector<2x7xf32>
    %1164 = vector.shape_cast %1163 : vector<2x7xf32> to vector<2x7x1xf32>
    %1165 = vector.extract_strided_slice %1161 {offsets = [0, 0, 64], sizes = [2, 7, 59], strides = [1, 1, 1]} : vector<2x7x123xf32> to vector<2x7x59xf32>
    %cst_23 = arith.constant dense<0.000000e+00> : vector<2x7xf32>
    %1166 = vector.multi_reduction <add>, %1165, %cst_23 [2] : vector<2x7x59xf32> to vector<2x7xf32>
    %1167 = vector.shape_cast %1166 : vector<2x7xf32> to vector<2x7x1xf32>
    %cst_24 = arith.constant 0.000000e+00 : f32
    %1168 = vector.broadcast %cst_24 : f32 to vector<2x7x108xf32>
    %1169 = tpu.concatenate %138, %252, %366, %480, %594, %708, %822, %936, %1050, %1164, %141, %255, %369, %483, %597, %711 in 2 : vector<2x7x1xf32>, vector<2x7x1xf32>, vector<2x7x1xf32>, vector<2x7x1xf32>, vector<2x7x1xf32>, vector<2x7x1xf32>, vector<2x7x1xf32>, vector<2x7x1xf32>, vector<2x7x1xf32>, vector<2x7x1xf32>, vector<2x7x1xf32>, vector<2x7x1xf32>, vector<2x7x1xf32>, vector<2x7x1xf32>, vector<2x7x1xf32>, vector<2x7x1xf32> -> vector<2x7x16xf32>
    %1170 = tpu.concatenate %825, %939, %1053, %1167, %1168 in 2 : vector<2x7x1xf32>, vector<2x7x1xf32>, vector<2x7x1xf32>, vector<2x7x1xf32>, vector<2x7x108xf32> -> vector<2x7x112xf32>
    %1171 = tpu.concatenate %1169, %1170 in 2 : vector<2x7x16xf32>, vector<2x7x112xf32> -> vector<2x7x128xf32>
    %c0_25 = arith.constant 0 : index
    %c0_26 = arith.constant 0 : index
    %1172 = vector.load %arg4[%c0_25, %c0_26] : memref<1x128xf32, #tpu.memory_space<vmem>>, vector<1x128xf32>
    %1173 = vector.shape_cast %1172 : vector<1x128xf32> to vector<1x1x128xf32>
    %1174 = vector.broadcast %1173 : vector<1x1x128xf32> to vector<2x7x128xf32>
    %1175 = arith.addf %1171, %1174 : vector<2x7x128xf32>
    %c0_27 = arith.constant 0 : index
    %c0_28 = arith.constant 0 : index
    %c0_29 = arith.constant 0 : index
    %1176 = vector.load %arg5[%c0_27, %c0_28, %c0_29] : memref<2x7x128xf32, #tpu.memory_space<vmem>>, vector<2x7x128xf32>
    tpu.vector_store %arg5[%c0_27, %c0_28, %c0_29], %1175 {strides = array<i32>} : memref<2x7x128xf32, #tpu.memory_space<vmem>>, vector<2x7x128xf32>,
    return
  }
  func.func @transform_0(%arg0: i32, %arg1: memref<250xf32, #tpu.memory_space<smem>>) -> (i32, i32, i32) {
    %c0_i32 = arith.constant 0 : i32
    %c0_i32_0 = arith.constant 0 : i32
    %c0_i32_1 = arith.constant 0 : i32
    return %arg0, %c0_i32, %c0_i32_0 : i32, i32, i32
  }
  func.func @transform_1(%arg0: i32, %arg1: memref<250xf32, #tpu.memory_space<smem>>) -> (i32, i32) {
    %c0_i32 = arith.constant 0 : i32
    %c0_i32_0 = arith.constant 0 : i32
    %c0_i32_1 = arith.constant 0 : i32
    return %c0_i32, %c0_i32_0 : i32, i32
  }
  func.func @transform_2(%arg0: i32, %arg1: memref<250xf32, #tpu.memory_space<smem>>) -> (i32, i32) {
    %c0_i32 = arith.constant 0 : i32
    %c0_i32_0 = arith.constant 0 : i32
    %c0_i32_1 = arith.constant 0 : i32
    return %c0_i32, %c0_i32_0 : i32, i32
  }
  func.func @transform_3(%arg0: i32, %arg1: memref<250xf32, #tpu.memory_space<smem>>) -> (i32, i32, i32) {
    %c0_i32 = arith.constant 0 : i32
    %c0_i32_0 = arith.constant 0 : i32
    %c0_i32_1 = arith.constant 0 : i32
    return %arg0, %c0_i32, %c0_i32_0 : i32, i32, i32
  }
}

</mosaic_0001>

<llo_original>
// kernel: toy_model_forward.1
$region0: #{toy_model_forward.1}
  #allocation0 [shape = 'u32[]', space=smem, size = 0x4, offset = 0x4, fixed_abs, tag = 'smem constant byte address 0x4 - core index']
  #allocation1 [shape = 'u32[144,128]{1,0:T(1,128)}', space=vmem, size = 0x12000, scoped, tag = 'internal scratch']
  #allocation2 [shape = 's32[1]{0}', space=sflag, size = 0x4, scoped, tag = 'scoped memory for toy_model_forward.1']
  #allocation3 [shape = 'u8[1024]{0}', space=smem, size = 0x400, scoped, tag = 'prefetched SMEM operand 0']
  %s0 = inlined_call_operand.vmem [shape: f32[250], index: 0, kind: input, shape index: {}]
  %s1 = inlined_call_operand.vmem [shape: f32[4,12,128], index: 1, kind: input, shape index: {}]
  %s2 = inlined_call_operand.vmem [shape: f32[1,128], index: 2, kind: input, shape index: {}]
  %s3 = inlined_call_operand.vmem [shape: f32[1,128], index: 3, kind: input, shape index: {}]
  %s4 = inlined_call_operand.vmem [shape: f32[4,7,128], index: 4, kind: output, shape index: {}]
  %s5 = sld [smem:[#allocation0]]
  $region45: #{toy_model_forward.1} parent=0
    _
  %s7 = ssub.s32 1, %s5
  %s8 = scalar_select 0, %s7, %s5
  %s9 = sshll.u32 %s0, 4
  %s10 = int_to_ptr.vmem [resolvable:$true] %s9
  %12 = dma.vmem_to_smem %s10, 32, [#allocation3], [#allocation2]
  %13 = dma.done [#allocation2], 32
  %14 = sfence
  loop: start=0, step=1, limit=4
  $region2: #{toy_model_forward.1} parent=0 // loop_pre_header
    _
  $region3: #{toy_model_forward.1} parent=0 // loop_header
    %s16 = sphi 0, %s20
    %p17 = scmp.ge.s32.totalorder %s16, 4
    %s26 = sphi 0, %s28
    %s29 = sphi 0, %s26
    %s30 = sphi 0, %s29
    %s46 = sphi 0, %s30
    %s50 = sphi 0, %s50
    %s52 = sphi 0, %s50
    %s53 = sphi 0, %s52
    %s67 = sphi 0, %s53
    %s71 = sphi 0, %s71
    %s73 = sphi 0, %s71
    %s74 = sphi 0, %s73
    %s88 = sphi 0, %s74
    %s94 = sphi 0, %s96
    %s97 = sphi 0, %s94
    %s98 = sphi 0, %s97
    %s114 = sphi 0, %s98
  $region4: #{toy_model_forward.1} parent=0 // loop_header_branch
    %19 = sbr.rel (%p17) target = $region8
  $region5: #{toy_model_forward.1} parent=0 // loop_body
    %s21 = ssub.s32 %s16, 1
    %s22 = ssub.s32 %s16, 2
    %s23 = sadd.s32 %s16, 1
    %s24 = ssub.s32 %s16, %s23
    %p25 = scmp.eq.s32.totalorder %s24, 0
    %s27 = sadd.s32 %s26, 1
    %s28 = scalar_select %p25, %s26, %s27
    %p31 = pneg %p25
    %p32 = scmp.eq.s32.totalorder %s16, 1
    %p33 = por %p31, %p32
    %p34 = scmp.ne.s32.totalorder %s26, %s29
    %p35 = scmp.eq.s32.totalorder %s16, 0
    %p36 = por %p34, %p35
    %p37 = scmp.ne.s32.totalorder %s26, %s29
    %p38 = scmp.eq.s32.totalorder %s21, 1
    %p39 = por %p37, %p38
    %p40 = scmp.ne.s32.totalorder %s29, %s30
    %p41 = scmp.eq.s32.totalorder %s21, 0
    %p42 = por %p40, %p41
    %p43 = scmp.ne.s32.totalorder %s29, %s30
    %p44 = scmp.eq.s32.totalorder %s22, 1
    %p45 = por %p43, %p44
    %p47 = scmp.ne.s32.totalorder %s30, %s46
    %p48 = scmp.eq.s32.totalorder %s22, 0
    %p49 = por %p47, %p48
    %s51 = sadd.s32 %s50, 1
    %p54 = scmp.eq.s32.totalorder %s16, 1
    %p55 = scmp.ne.s32.totalorder %s50, %s52
    %p56 = scmp.eq.s32.totalorder %s16, 0
    %p57 = por %p55, %p56
    %p58 = scmp.ne.s32.totalorder %s50, %s52
    %p59 = scmp.eq.s32.totalorder %s21, 1
    %p60 = por %p58, %p59
    %p61 = scmp.ne.s32.totalorder %s52, %s53
    %p62 = scmp.eq.s32.totalorder %s21, 0
    %p63 = por %p61, %p62
    %p64 = scmp.ne.s32.totalorder %s52, %s53
    %p65 = scmp.eq.s32.totalorder %s22, 1
    %p66 = por %p64, %p65
    %p68 = scmp.ne.s32.totalorder %s53, %s67
    %p69 = scmp.eq.s32.totalorder %s22, 0
    %p70 = por %p68, %p69
    %s72 = sadd.s32 %s71, 1
    %p75 = scmp.eq.s32.totalorder %s16, 1
    %p76 = scmp.ne.s32.totalorder %s71, %s73
    %p77 = scmp.eq.s32.totalorder %s16, 0
    %p78 = por %p76, %p77
    %p79 = scmp.ne.s32.totalorder %s71, %s73
    %p80 = scmp.eq.s32.totalorder %s21, 1
    %p81 = por %p79, %p80
    %p82 = scmp.ne.s32.totalorder %s73, %s74
    %p83 = scmp.eq.s32.totalorder %s21, 0
    %p84 = por %p82, %p83
    %p85 = scmp.ne.s32.totalorder %s73, %s74
    %p86 = scmp.eq.s32.totalorder %s22, 1
    %p87 = por %p85, %p86
    %p89 = scmp.ne.s32.totalorder %s74, %s88
    %p90 = scmp.eq.s32.totalorder %s22, 0
    %p91 = por %p89, %p90
    %s92 = ssub.s32 %s16, %s23
    %p93 = scmp.eq.s32.totalorder %s92, 0
    %s95 = sadd.s32 %s94, 1
    %s96 = scalar_select %p93, %s94, %s95
    %p99 = pneg %p93
    %p100 = scmp.eq.s32.totalorder %s16, 1
    %p101 = por %p99, %p100
    %p102 = scmp.ne.s32.totalorder %s94, %s97
    %p103 = scmp.eq.s32.totalorder %s16, 0
    %p104 = por %p102, %p103
    %p105 = scmp.ne.s32.totalorder %s94, %s97
    %p106 = scmp.eq.s32.totalorder %s21, 1
    %p107 = por %p105, %p106
    %p108 = scmp.ne.s32.totalorder %s97, %s98
    %p109 = scmp.eq.s32.totalorder %s21, 0
    %p110 = por %p108, %p109
    %p111 = scmp.ne.s32.totalorder %s97, %s98
    %p112 = scmp.eq.s32.totalorder %s22, 1
    %p113 = por %p111, %p112
    %p115 = scmp.ne.s32.totalorder %s98, %s114
    %p116 = scmp.eq.s32.totalorder %s22, 0
    %p117 = por %p115, %p116
    %p118 = scmp.le.s32.totalorder 1, %s16
    %p119 = scmp.lt.s32.totalorder %s16, 3
    %p120 = pnand %p118, %p119
    %p121 = pneg %p120
    // Predicated region
    $region9: #{toy_model_forward.1} parent=5 // pred_check
      _
    $region10: #{toy_model_forward.1} parent=5 // pred_check_branch
      %123 = sbr.rel (%p120) target = $region12
    $region11: #{toy_model_forward.1} parent=5 // pred_region
      %s124 = ssub.s32 %s16, 1
      // Predicated region
      $region13: #{toy_model_forward.1} parent=11 // pred_check
        %p125 = pneg %p63
      $region14: #{toy_model_forward.1} parent=11 // pred_check_branch
        %127 = sbr.rel (%p125) target = $region16
      $region15: #{toy_model_forward.1} parent=11 // pred_region
        _
      $region16: #{toy_model_forward.1} parent=11 // pred_fallthru
        _
      // Predicated region
      $region17: #{toy_model_forward.1} parent=11 // pred_check
        %p128 = pneg %p84
      $region18: #{toy_model_forward.1} parent=11 // pred_check_branch
        %130 = sbr.rel (%p128) target = $region20
      $region19: #{toy_model_forward.1} parent=11 // pred_region
        _
      $region20: #{toy_model_forward.1} parent=11 // pred_fallthru
        _
    $region12: #{toy_model_forward.1} parent=5 // pred_fallthru
      _
    %p131 = scmp.lt.s32.totalorder %s16, 2
    // Predicated region
    $region21: #{toy_model_forward.1} parent=5 // pred_check
      %p132 = pneg %p131
    $region22: #{toy_model_forward.1} parent=5 // pred_check_branch
      %134 = sbr.rel (%p132) target = $region24
    $region23: #{toy_model_forward.1} parent=5 // pred_region
      // Predicated region
      $region25: #{toy_model_forward.1} parent=23 // pred_check
        %p135 = pneg %p36
      $region26: #{toy_model_forward.1} parent=23 // pred_check_branch
        %137 = sbr.rel (%p135) target = $region28
      $region27: #{toy_model_forward.1} parent=23 // pred_region
        %s138 = smul.u32 2, %s16
        %p139 = scmp.lt.s32.totalorder %s138, 3
        %s140 = scalar_select %p139, %s138, 3
        %s141 = smul.addr %s140, 2
        %s142 = smul.addr %s141, 8
        %s143 = scalar_lea.vmem %s1, %s142
        %s144 = smul.u32 2, %s16
      $region28: #{toy_model_forward.1} parent=23 // pred_fallthru
        _
    $region24: #{toy_model_forward.1} parent=5 // pred_fallthru
      _
    %p145 = scmp.le.s32.totalorder 1, %s16
    %p146 = scmp.lt.s32.totalorder %s16, 3
    %p147 = pnand %p145, %p146
    %p148 = pneg %p147
    // Predicated region
    $region29: #{toy_model_forward.1} parent=5 // pred_check
      _
    $region30: #{toy_model_forward.1} parent=5 // pred_check_branch
      %150 = sbr.rel (%p147) target = $region32
    $region31: #{toy_model_forward.1} parent=5 // pred_region
      %s151 = ssub.s32 %s16, 1
      %s152 = smul.u32 2, %s21
      %p153 = scmp.lt.s32.totalorder %s152, 3
      %s154 = scalar_select %p153, %s152, 3
      %s155 = smul.addr %s154, 2
      %s156 = smul.addr %s155, 8
      %s157 = scalar_lea.vmem %s1, %s156
      %p158 = pneg %p42
      %p159 = pneg %p39
      %p160 = pneg %p63
      %p161 = pneg %p60
      %p162 = pneg %p84
      %p163 = pneg %p81
      %p164 = pneg %p110
      %p165 = pneg %p107
      %s166 = smul.u32 2, %s21
      %p167 = scmp.lt.s32.totalorder %s166, 3
      %s168 = scalar_select %p167, %s166, 3
      %s169 = smul.addr %s168, 8
      %s170 = scalar_lea.vmem %s4, %s169
      %s171 = smul.u32 2, %s21
      %p172 = scmp.lt.s32.totalorder %s171, 3
      %s173 = scalar_select %p172, %s171, 3
      %s174 = smul.addr %s173, 2
      %s175 = smul.addr %s174, 8
      %s176 = scalar_lea.vmem %s1, %s175
      %s177 = smul.u32 2, %s21
      %s178 = smul.u32 2, %s21
      %p179 = scmp.lt.s32.totalorder %s178, 3
      %s180 = scalar_select %p179, %s178, 3
      %s181 = smul.addr %s180, 8
      %s182 = scalar_lea.vmem %s4, %s181
      %s183 = smul.u32 2, %s21
      %v184 = vld [vmem:[%s176] sm:$0xff]
      %v185 = vld [vmem:[%s176 + $0x8] sm:$0xf]
      %v186 = vld [vmem:[%s176 + $0x10] sm:$0xff]
      %v187 = vld [vmem:[%s176 + $0x18] sm:$0xf]
      %v188 = vld [vmem:[%s2] sm:$0x1]
      %s189 = sld [smem:[#allocation3]]
      %v190 = vstv %s189
      %v191 = vmul.f32 %v190, %v184
      %v192 = vmul.f32 %v190, %v186
      %s193 = sld [smem:[#allocation3 + $0x1]]
      %v194 = vstv %s193
      %v195 = vmul.f32 %v194, %v184
      %v196 = vmul.f32 %v194, %v186
      %199 = vrot.lane.b32.xlu0 %v195, 127
      %v200 = vpop.permute.xlu0 %199
      %201 = vrot.lane.b32.xlu0 %v196, 127
      %v202 = vpop.permute.xlu0 %201
      %v205 = vadd.f32 %v191, %v200
      %v206 = vadd.f32 %v192, %v202
      %s207 = sld [smem:[#allocation3 + $0x2]]
      %v208 = vstv %s207
      %v209 = vmul.f32 %v208, %v184
      %v210 = vmul.f32 %v208, %v186
      %213 = vrot.lane.b32.xlu0 %v209, 126
      %v214 = vpop.permute.xlu0 %213
      %215 = vrot.lane.b32.xlu0 %v210, 126
      %v216 = vpop.permute.xlu0 %215
      %v219 = vadd.f32 %v205, %v214
      %v220 = vadd.f32 %v206, %v216
      %s221 = sld [smem:[#allocation3 + $0x3]]
      %v222 = vstv %s221
      %v223 = vmul.f32 %v222, %v184
      %v224 = vmul.f32 %v222, %v186
      %227 = vrot.lane.b32.xlu0 %v223, 125
      %v228 = vpop.permute.xlu0 %227
      %229 = vrot.lane.b32.xlu0 %v224, 125
      %v230 = vpop.permute.xlu0 %229
      %v233 = vadd.f32 %v219, %v228
      %v234 = vadd.f32 %v220, %v230
      %s235 = sld [smem:[#allocation3 + $0x4]]
      %v236 = vstv %s235
      %v237 = vmul.f32 %v236, %v184
      %v238 = vmul.f32 %v236, %v186
      %241 = vrot.lane.b32.xlu0 %v237, 124
      %v242 = vpop.permute.xlu0 %241
      %243 = vrot.lane.b32.xlu0 %v238, 124
      %v244 = vpop.permute.xlu0 %243
      %v247 = vadd.f32 %v233, %v242
      %v248 = vadd.f32 %v234, %v244
      %s249 = sld [smem:[#allocation3 + $0x5]]
      %v250 = vstv %s249
      %v251 = vmul.f32 %v250, %v184
      %v252 = vmul.f32 %v250, %v185
      %v253 = vmul.f32 %v250, %v186
      %v254 = vmul.f32 %v250, %v187
      %vm259 = vcmask 1046528
      %v260 = vrot.slane %v251, 1
      %v261 = vrot.slane %v252, 1
      %v262 = vsel %vm259, %v260, %v261
      %v263 = vrot.slane %v253, 1
      %v264 = vrot.slane %v254, 1
      %v265 = vsel %vm259, %v263, %v264
      %v268 = vadd.f32 %v247, %v262
      %v269 = vadd.f32 %v248, %v265
      %s270 = sld [smem:[#allocation3 + $0x6]]
      %v271 = vstv %s270
      %v272 = vmul.f32 %v271, %v184
      %v273 = vmul.f32 %v271, %v185
      %v274 = vmul.f32 %v271, %v186
      %v275 = vmul.f32 %v271, %v187
      %v280 = vrot.slane %v272, 1
      %v281 = vrot.slane %v273, 1
      %v282 = vsel %vm259, %v280, %v281
      %v283 = vrot.slane %v274, 1
      %v284 = vrot.slane %v275, 1
      %v285 = vsel %vm259, %v283, %v284
      %286 = vrot.lane.b32.xlu0 %v282, 127
      %v287 = vpop.permute.xlu0 %286
      %288 = vrot.lane.b32.xlu0 %v285, 127
      %v289 = vpop.permute.xlu0 %288
      %v292 = vadd.f32 %v268, %v287
      %v293 = vadd.f32 %v269, %v289
      %s294 = sld [smem:[#allocation3 + $0x7]]
      %v295 = vstv %s294
      %v296 = vmul.f32 %v295, %v184
      %v297 = vmul.f32 %v295, %v185
      %v298 = vmul.f32 %v295, %v186
      %v299 = vmul.f32 %v295, %v187
      %v304 = vrot.slane %v296, 1
      %v305 = vrot.slane %v297, 1
      %v306 = vsel %vm259, %v304, %v305
      %v307 = vrot.slane %v298, 1
      %v308 = vrot.slane %v299, 1
      %v309 = vsel %vm259, %v307, %v308
      %310 = vrot.lane.b32.xlu0 %v306, 126
      %v311 = vpop.permute.xlu0 %310
      %312 = vrot.lane.b32.xlu0 %v309, 126
      %v313 = vpop.permute.xlu0 %312
      %v316 = vadd.f32 %v292, %v311
      %v317 = vadd.f32 %v293, %v313
      %s318 = sld [smem:[#allocation3 + $0x8]]
      %v319 = vstv %s318
      %v320 = vmul.f32 %v319, %v184
      %v321 = vmul.f32 %v319, %v185
      %v322 = vmul.f32 %v319, %v186
      %v323 = vmul.f32 %v319, %v187
      %v328 = vrot.slane %v320, 1
      %v329 = vrot.slane %v321, 1
      %v330 = vsel %vm259, %v328, %v329
      %v331 = vrot.slane %v322, 1
      %v332 = vrot.slane %v323, 1
      %v333 = vsel %vm259, %v331, %v332
      %334 = vrot.lane.b32.xlu0 %v330, 125
      %v335 = vpop.permute.xlu0 %334
      %336 = vrot.lane.b32.xlu0 %v333, 125
      %v337 = vpop.permute.xlu0 %336
      %v340 = vadd.f32 %v316, %v335
      %v341 = vadd.f32 %v317, %v337
      %s342 = sld [smem:[#allocation3 + $0x9]]
      %v343 = vstv %s342
      %v344 = vmul.f32 %v343, %v184
      %v345 = vmul.f32 %v343, %v185
      %v346 = vmul.f32 %v343, %v186
      %v347 = vmul.f32 %v343, %v187
      %v352 = vrot.slane %v344, 1
      %v353 = vrot.slane %v345, 1
      %v354 = vsel %vm259, %v352, %v353
      %v355 = vrot.slane %v346, 1
      %v356 = vrot.slane %v347, 1
      %v357 = vsel %vm259, %v355, %v356
      %358 = vrot.lane.b32.xlu0 %v354, 124
      %v359 = vpop.permute.xlu0 %358
      %360 = vrot.lane.b32.xlu0 %v357, 124
      %v361 = vpop.permute.xlu0 %360
      %v364 = vadd.f32 %v340, %v359
      %v365 = vadd.f32 %v341, %v361
      %s366 = sld [smem:[#allocation3 + $0xa]]
      %v367 = vstv %s366
      %v368 = vmul.f32 %v367, %v184
      %v369 = vmul.f32 %v367, %v185
      %v370 = vmul.f32 %v367, %v186
      %v371 = vmul.f32 %v367, %v187
      %vm376 = vcmask 1045504
      %v377 = vrot.slane %v368, 2
      %v378 = vrot.slane %v369, 2
      %v379 = vsel %vm376, %v377, %v378
      %v380 = vrot.slane %v370, 2
      %v381 = vrot.slane %v371, 2
      %v382 = vsel %vm376, %v380, %v381
      %v385 = vadd.f32 %v364, %v379
      %v386 = vadd.f32 %v365, %v382
      %s387 = sld [smem:[#allocation3 + $0xb]]
      %v388 = vstv %s387
      %v389 = vmul.f32 %v388, %v184
      %v390 = vmul.f32 %v388, %v185
      %v391 = vmul.f32 %v388, %v186
      %v392 = vmul.f32 %v388, %v187
      %v397 = vrot.slane %v389, 2
      %v398 = vrot.slane %v390, 2
      %v399 = vsel %vm376, %v397, %v398
      %v400 = vrot.slane %v391, 2
      %v401 = vrot.slane %v392, 2
      %v402 = vsel %vm376, %v400, %v401
      %403 = vrot.lane.b32.xlu0 %v399, 127
      %v404 = vpop.permute.xlu0 %403
      %405 = vrot.lane.b32.xlu0 %v402, 127
      %v406 = vpop.permute.xlu0 %405
      %v409 = vadd.f32 %v385, %v404
      %v410 = vadd.f32 %v386, %v406
      %s411 = sld [smem:[#allocation3 + $0xc]]
      %v412 = vstv %s411
      %v413 = vmul.f32 %v412, %v184
      %v414 = vmul.f32 %v412, %v185
      %v415 = vmul.f32 %v412, %v186
      %v416 = vmul.f32 %v412, %v187
      %v421 = vrot.slane %v413, 2
      %v422 = vrot.slane %v414, 2
      %v423 = vsel %vm376, %v421, %v422
      %v424 = vrot.slane %v415, 2
      %v425 = vrot.slane %v416, 2
      %v426 = vsel %vm376, %v424, %v425
      %427 = vrot.lane.b32.xlu0 %v423, 126
      %v428 = vpop.permute.xlu0 %427
      %429 = vrot.lane.b32.xlu0 %v426, 126
      %v430 = vpop.permute.xlu0 %429
      %v433 = vadd.f32 %v409, %v428
      %v434 = vadd.f32 %v410, %v430
      %s435 = sld [smem:[#allocation3 + $0xd]]
      %v436 = vstv %s435
      %v437 = vmul.f32 %v436, %v184
      %v438 = vmul.f32 %v436, %v185
      %v439 = vmul.f32 %v436, %v186
      %v440 = vmul.f32 %v436, %v187
      %v445 = vrot.slane %v437, 2
      %v446 = vrot.slane %v438, 2
      %v447 = vsel %vm376, %v445, %v446
      %v448 = vrot.slane %v439, 2
      %v449 = vrot.slane %v440, 2
      %v450 = vsel %vm376, %v448, %v449
      %451 = vrot.lane.b32.xlu0 %v447, 125
      %v452 = vpop.permute.xlu0 %451
      %453 = vrot.lane.b32.xlu0 %v450, 125
      %v454 = vpop.permute.xlu0 %453
      %v457 = vadd.f32 %v433, %v452
      %v458 = vadd.f32 %v434, %v454
      %s459 = sld [smem:[#allocation3 + $0xe]]
      %v460 = vstv %s459
      %v461 = vmul.f32 %v460, %v184
      %v462 = vmul.f32 %v460, %v185
      %v463 = vmul.f32 %v460, %v186
      %v464 = vmul.f32 %v460, %v187
      %v469 = vrot.slane %v461, 2
      %v470 = vrot.slane %v462, 2
      %v471 = vsel %vm376, %v469, %v470
      %v472 = vrot.slane %v463, 2
      %v473 = vrot.slane %v464, 2
      %v474 = vsel %vm376, %v472, %v473
      %475 = vrot.lane.b32.xlu0 %v471, 124
      %v476 = vpop.permute.xlu0 %475
      %477 = vrot.lane.b32.xlu0 %v474, 124
      %v478 = vpop.permute.xlu0 %477
      %v481 = vadd.f32 %v457, %v476
      %v482 = vadd.f32 %v458, %v478
      %s483 = sld [smem:[#allocation3 + $0xf]]
      %v484 = vstv %s483
      %v485 = vmul.f32 %v484, %v184
      %v486 = vmul.f32 %v484, %v185
      %v487 = vmul.f32 %v484, %v186
      %v488 = vmul.f32 %v484, %v187
      %vm493 = vcmask 1044480
      %v494 = vrot.slane %v485, 3
      %v495 = vrot.slane %v486, 3
      %v496 = vsel %vm493, %v494, %v495
      %v497 = vrot.slane %v487, 3
      %v498 = vrot.slane %v488, 3
      %v499 = vsel %vm493, %v497, %v498
      %v502 = vadd.f32 %v481, %v496
      %v503 = vadd.f32 %v482, %v499
      %s504 = sld [smem:[#allocation3 + $0x10]]
      %v505 = vstv %s504
      %v506 = vmul.f32 %v505, %v184
      %v507 = vmul.f32 %v505, %v185
      %v508 = vmul.f32 %v505, %v186
      %v509 = vmul.f32 %v505, %v187
      %v514 = vrot.slane %v506, 3
      %v515 = vrot.slane %v507, 3
      %v516 = vsel %vm493, %v514, %v515
      %v517 = vrot.slane %v508, 3
      %v518 = vrot.slane %v509, 3
      %v519 = vsel %vm493, %v517, %v518
      %520 = vrot.lane.b32.xlu0 %v516, 127
      %v521 = vpop.permute.xlu0 %520
      %522 = vrot.lane.b32.xlu0 %v519, 127
      %v523 = vpop.permute.xlu0 %522
      %v526 = vadd.f32 %v502, %v521
      %v527 = vadd.f32 %v503, %v523
      %s528 = sld [smem:[#allocation3 + $0x11]]
      %v529 = vstv %s528
      %v530 = vmul.f32 %v529, %v184
      %v531 = vmul.f32 %v529, %v185
      %v532 = vmul.f32 %v529, %v186
      %v533 = vmul.f32 %v529, %v187
      %v538 = vrot.slane %v530, 3
      %v539 = vrot.slane %v531, 3
      %v540 = vsel %vm493, %v538, %v539
      %v541 = vrot.slane %v532, 3
      %v542 = vrot.slane %v533, 3
      %v543 = vsel %vm493, %v541, %v542
      %544 = vrot.lane.b32.xlu0 %v540, 126
      %v545 = vpop.permute.xlu0 %544
      %546 = vrot.lane.b32.xlu0 %v543, 126
      %v547 = vpop.permute.xlu0 %546
      %v550 = vadd.f32 %v526, %v545
      %v551 = vadd.f32 %v527, %v547
      %s552 = sld [smem:[#allocation3 + $0x12]]
      %v553 = vstv %s552
      %v554 = vmul.f32 %v553, %v184
      %v555 = vmul.f32 %v553, %v185
      %v556 = vmul.f32 %v553, %v186
      %v557 = vmul.f32 %v553, %v187
      %v562 = vrot.slane %v554, 3
      %v563 = vrot.slane %v555, 3
      %v564 = vsel %vm493, %v562, %v563
      %v565 = vrot.slane %v556, 3
      %v566 = vrot.slane %v557, 3
      %v567 = vsel %vm493, %v565, %v566
      %568 = vrot.lane.b32.xlu0 %v564, 125
      %v569 = vpop.permute.xlu0 %568
      %570 = vrot.lane.b32.xlu0 %v567, 125
      %v571 = vpop.permute.xlu0 %570
      %v574 = vadd.f32 %v550, %v569
      %v575 = vadd.f32 %v551, %v571
      %s576 = sld [smem:[#allocation3 + $0x13]]
      %v577 = vstv %s576
      %v578 = vmul.f32 %v577, %v184
      %v579 = vmul.f32 %v577, %v185
      %v580 = vmul.f32 %v577, %v186
      %v581 = vmul.f32 %v577, %v187
      %v586 = vrot.slane %v578, 3
      %v587 = vrot.slane %v579, 3
      %v588 = vsel %vm493, %v586, %v587
      %v589 = vrot.slane %v580, 3
      %v590 = vrot.slane %v581, 3
      %v591 = vsel %vm493, %v589, %v590
      %592 = vrot.lane.b32.xlu0 %v588, 124
      %v593 = vpop.permute.xlu0 %592
      %594 = vrot.lane.b32.xlu0 %v591, 124
      %v595 = vpop.permute.xlu0 %594
      %v598 = vadd.f32 %v574, %v593
      %v599 = vadd.f32 %v575, %v595
      %s600 = sld [smem:[#allocation3 + $0x14]]
      %v601 = vstv %s600
      %v602 = vmul.f32 %v601, %v184
      %v603 = vmul.f32 %v601, %v185
      %v604 = vmul.f32 %v601, %v186
      %v605 = vmul.f32 %v601, %v187
      %vm610 = vcmask 1043456
      %v611 = vrot.slane %v602, 4
      %v612 = vrot.slane %v603, 4
      %v613 = vsel %vm610, %v611, %v612
      %v614 = vrot.slane %v604, 4
      %v615 = vrot.slane %v605, 4
      %v616 = vsel %vm610, %v614, %v615
      %v619 = vadd.f32 %v598, %v613
      %v620 = vadd.f32 %v599, %v616
      %s621 = sld [smem:[#allocation3 + $0x15]]
      %v622 = vstv %s621
      %v623 = vmul.f32 %v622, %v184
      %v624 = vmul.f32 %v622, %v185
      %v625 = vmul.f32 %v622, %v186
      %v626 = vmul.f32 %v622, %v187
      %v631 = vrot.slane %v623, 4
      %v632 = vrot.slane %v624, 4
      %v633 = vsel %vm610, %v631, %v632
      %v634 = vrot.slane %v625, 4
      %v635 = vrot.slane %v626, 4
      %v636 = vsel %vm610, %v634, %v635
      %637 = vrot.lane.b32.xlu0 %v633, 127
      %v638 = vpop.permute.xlu0 %637
      %639 = vrot.lane.b32.xlu0 %v636, 127
      %v640 = vpop.permute.xlu0 %639
      %v643 = vadd.f32 %v619, %v638
      %v644 = vadd.f32 %v620, %v640
      %s645 = sld [smem:[#allocation3 + $0x16]]
      %v646 = vstv %s645
      %v647 = vmul.f32 %v646, %v184
      %v648 = vmul.f32 %v646, %v185
      %v649 = vmul.f32 %v646, %v186
      %v650 = vmul.f32 %v646, %v187
      %v655 = vrot.slane %v647, 4
      %v656 = vrot.slane %v648, 4
      %v657 = vsel %vm610, %v655, %v656
      %v658 = vrot.slane %v649, 4
      %v659 = vrot.slane %v650, 4
      %v660 = vsel %vm610, %v658, %v659
      %661 = vrot.lane.b32.xlu0 %v657, 126
      %v662 = vpop.permute.xlu0 %661
      %663 = vrot.lane.b32.xlu0 %v660, 126
      %v664 = vpop.permute.xlu0 %663
      %v667 = vadd.f32 %v643, %v662
      %v668 = vadd.f32 %v644, %v664
      %s669 = sld [smem:[#allocation3 + $0x17]]
      %v670 = vstv %s669
      %v671 = vmul.f32 %v670, %v184
      %v672 = vmul.f32 %v670, %v185
      %v673 = vmul.f32 %v670, %v186
      %v674 = vmul.f32 %v670, %v187
      %v679 = vrot.slane %v671, 4
      %v680 = vrot.slane %v672, 4
      %v681 = vsel %vm610, %v679, %v680
      %v682 = vrot.slane %v673, 4
      %v683 = vrot.slane %v674, 4
      %v684 = vsel %vm610, %v682, %v683
      %685 = vrot.lane.b32.xlu0 %v681, 125
      %v686 = vpop.permute.xlu0 %685
      %687 = vrot.lane.b32.xlu0 %v684, 125
      %v688 = vpop.permute.xlu0 %687
      %v691 = vadd.f32 %v667, %v686
      %v692 = vadd.f32 %v668, %v688
      %s693 = sld [smem:[#allocation3 + $0x18]]
      %v694 = vstv %s693
      %v695 = vmul.f32 %v694, %v184
      %v696 = vmul.f32 %v694, %v185
      %v697 = vmul.f32 %v694, %v186
      %v698 = vmul.f32 %v694, %v187
      %v703 = vrot.slane %v695, 4
      %v704 = vrot.slane %v696, 4
      %v705 = vsel %vm610, %v703, %v704
      %v706 = vrot.slane %v697, 4
      %v707 = vrot.slane %v698, 4
      %v708 = vsel %vm610, %v706, %v707
      %709 = vrot.lane.b32.xlu0 %v705, 124
      %v710 = vpop.permute.xlu0 %709
      %711 = vrot.lane.b32.xlu0 %v708, 124
      %v712 = vpop.permute.xlu0 %711
      %v715 = vadd.f32 %v691, %v710
      %v716 = vadd.f32 %v692, %v712
      %719 = vrot.lane.b32.xlu0 %v715, 127
      %v720 = vpop.permute.xlu0 %719
      %721 = vrot.lane.b32.xlu0 %v716, 127
      %v722 = vpop.permute.xlu0 %721
      %v725 = vmax.f32 %v715, %v720
      %v726 = vmax.f32 %v716, %v722
      %v729 = vrot.slane %v725, 1
      %v730 = vrot.slane %v726, 1
      %v733 = vmax.f32 %v725, %v729
      %v734 = vmax.f32 %v726, %v730
      %v736 = vlaneseq
      %v737 = vshrl.u32 %v736, 7
      %v738 = vsub.s32 0, %v737
      %v739 = vrot.slane %v188, %v738
      %v741 = vmul.f32 %v733, %v739
      %v742 = vmul.f32 %v734, %v739
      %vm743 = vcmask 522240
      %v744 = vsel %vm743, %v741, 0.0
      %745 = vadd.xlane.f32.xlu0 %v744
      %v746 = vpop.xlane.xlu0 %745
      %v747 = vsel %vm743, %v742, 0.0
      %748 = vadd.xlane.f32.xlu0 %v747
      %v749 = vpop.xlane.xlu0 %748
      %752 = vrot.lane.b32.xlu0 %v741, 64
      %v753 = vpop.permute.xlu0 %752
      %754 = vrot.lane.b32.xlu0 %v742, 64
      %v755 = vpop.permute.xlu0 %754
      %vm758 = vcmask 481280
      %v759 = vsel %vm758, %v753, 0.0
      %760 = vadd.xlane.f32.xlu0 %v759
      %v761 = vpop.xlane.xlu0 %760
      %v762 = vsel %vm758, %v755, 0.0
      %763 = vadd.xlane.f32.xlu0 %v762
      %v764 = vpop.xlane.xlu0 %763
      %s765 = sld [smem:[#allocation3 + $0x19]]
      %v766 = vstv %s765
      %v767 = vmul.f32 %v766, %v184
      %v768 = vmul.f32 %v766, %v186
      %s769 = sld [smem:[#allocation3 + $0x1a]]
      %v770 = vstv %s769
      %v771 = vmul.f32 %v770, %v184
      %v772 = vmul.f32 %v770, %v186
      %775 = vrot.lane.b32.xlu0 %v771, 127
      %v776 = vpop.permute.xlu0 %775
      %777 = vrot.lane.b32.xlu0 %v772, 127
      %v778 = vpop.permute.xlu0 %777
      %v781 = vadd.f32 %v767, %v776
      %v782 = vadd.f32 %v768, %v778
      %s783 = sld [smem:[#allocation3 + $0x1b]]
      %v784 = vstv %s783
      %v785 = vmul.f32 %v784, %v184
      %v786 = vmul.f32 %v784, %v186
      %789 = vrot.lane.b32.xlu0 %v785, 126
      %v790 = vpop.permute.xlu0 %789
      %791 = vrot.lane.b32.xlu0 %v786, 126
      %v792 = vpop.permute.xlu0 %791
      %v795 = vadd.f32 %v781, %v790
      %v796 = vadd.f32 %v782, %v792
      %s797 = sld [smem:[#allocation3 + $0x1c]]
      %v798 = vstv %s797
      %v799 = vmul.f32 %v798, %v184
      %v800 = vmul.f32 %v798, %v186
      %803 = vrot.lane.b32.xlu0 %v799, 125
      %v804 = vpop.permute.xlu0 %803
      %805 = vrot.lane.b32.xlu0 %v800, 125
      %v806 = vpop.permute.xlu0 %805
      %v809 = vadd.f32 %v795, %v804
      %v810 = vadd.f32 %v796, %v806
      %s811 = sld [smem:[#allocation3 + $0x1d]]
      %v812 = vstv %s811
      %v813 = vmul.f32 %v812, %v184
      %v814 = vmul.f32 %v812, %v186
      %817 = vrot.lane.b32.xlu0 %v813, 124
      %v818 = vpop.permute.xlu0 %817
      %819 = vrot.lane.b32.xlu0 %v814, 124
      %v820 = vpop.permute.xlu0 %819
      %v823 = vadd.f32 %v809, %v818
      %v824 = vadd.f32 %v810, %v820
      %s825 = sld [smem:[#allocation3 + $0x1e]]
      %v826 = vstv %s825
      %v827 = vmul.f32 %v826, %v184
      %v828 = vmul.f32 %v826, %v185
      %v829 = vmul.f32 %v826, %v186
      %v830 = vmul.f32 %v826, %v187
      %v835 = vrot.slane %v827, 1
      %v836 = vrot.slane %v828, 1
      %v837 = vsel %vm259, %v835, %v836
      %v838 = vrot.slane %v829, 1
      %v839 = vrot.slane %v830, 1
      %v840 = vsel %vm259, %v838, %v839
      %v843 = vadd.f32 %v823, %v837
      %v844 = vadd.f32 %v824, %v840
      %s845 = sld [smem:[#allocation3 + $0x1f]]
      %v846 = vstv %s845
      %v847 = vmul.f32 %v846, %v184
      %v848 = vmul.f32 %v846, %v185
      %v849 = vmul.f32 %v846, %v186
      %v850 = vmul.f32 %v846, %v187
      %v855 = vrot.slane %v847, 1
      %v856 = vrot.slane %v848, 1
      %v857 = vsel %vm259, %v855, %v856
      %v858 = vrot.slane %v849, 1
      %v859 = vrot.slane %v850, 1
      %v860 = vsel %vm259, %v858, %v859
      %861 = vrot.lane.b32.xlu0 %v857, 127
      %v862 = vpop.permute.xlu0 %861
      %863 = vrot.lane.b32.xlu0 %v860, 127
      %v864 = vpop.permute.xlu0 %863
      %v867 = vadd.f32 %v843, %v862
      %v868 = vadd.f32 %v844, %v864
      %s869 = sld [smem:[#allocation3 + $0x20]]
      %v870 = vstv %s869
      %v871 = vmul.f32 %v870, %v184
      %v872 = vmul.f32 %v870, %v185
      %v873 = vmul.f32 %v870, %v186
      %v874 = vmul.f32 %v870, %v187
      %v879 = vrot.slane %v871, 1
      %v880 = vrot.slane %v872, 1
      %v881 = vsel %vm259, %v879, %v880
      %v882 = vrot.slane %v873, 1
      %v883 = vrot.slane %v874, 1
      %v884 = vsel %vm259, %v882, %v883
      %885 = vrot.lane.b32.xlu0 %v881, 126
      %v886 = vpop.permute.xlu0 %885
      %887 = vrot.lane.b32.xlu0 %v884, 126
      %v888 = vpop.permute.xlu0 %887
      %v891 = vadd.f32 %v867, %v886
      %v892 = vadd.f32 %v868, %v888
      %s893 = sld [smem:[#allocation3 + $0x21]]
      %v894 = vstv %s893
      %v895 = vmul.f32 %v894, %v184
      %v896 = vmul.f32 %v894, %v185
      %v897 = vmul.f32 %v894, %v186
      %v898 = vmul.f32 %v894, %v187
      %v903 = vrot.slane %v895, 1
      %v904 = vrot.slane %v896, 1
      %v905 = vsel %vm259, %v903, %v904
      %v906 = vrot.slane %v897, 1
      %v907 = vrot.slane %v898, 1
      %v908 = vsel %vm259, %v906, %v907
      %909 = vrot.lane.b32.xlu0 %v905, 125
      %v910 = vpop.permute.xlu0 %909
      %911 = vrot.lane.b32.xlu0 %v908, 125
      %v912 = vpop.permute.xlu0 %911
      %v915 = vadd.f32 %v891, %v910
      %v916 = vadd.f32 %v892, %v912
      %s917 = sld [smem:[#allocation3 + $0x22]]
      %v918 = vstv %s917
      %v919 = vmul.f32 %v918, %v184
      %v920 = vmul.f32 %v918, %v185
      %v921 = vmul.f32 %v918, %v186
      %v922 = vmul.f32 %v918, %v187
      %v927 = vrot.slane %v919, 1
      %v928 = vrot.slane %v920, 1
      %v929 = vsel %vm259, %v927, %v928
      %v930 = vrot.slane %v921, 1
      %v931 = vrot.slane %v922, 1
      %v932 = vsel %vm259, %v930, %v931
      %933 = vrot.lane.b32.xlu0 %v929, 124
      %v934 = vpop.permute.xlu0 %933
      %935 = vrot.lane.b32.xlu0 %v932, 124
      %v936 = vpop.permute.xlu0 %935
      %v939 = vadd.f32 %v915, %v934
      %v940 = vadd.f32 %v916, %v936
      %s941 = sld [smem:[#allocation3 + $0x23]]
      %v942 = vstv %s941
      %v943 = vmul.f32 %v942, %v184
      %v944 = vmul.f32 %v942, %v185
      %v945 = vmul.f32 %v942, %v186
      %v946 = vmul.f32 %v942, %v187
      %v951 = vrot.slane %v943, 2
      %v952 = vrot.slane %v944, 2
      %v953 = vsel %vm376, %v951, %v952
      %v954 = vrot.slane %v945, 2
      %v955 = vrot.slane %v946, 2
      %v956 = vsel %vm376, %v954, %v955
      %v959 = vadd.f32 %v939, %v953
      %v960 = vadd.f32 %v940, %v956
      %s961 = sld [smem:[#allocation3 + $0x24]]
      %v962 = vstv %s961
      %v963 = vmul.f32 %v962, %v184
      %v964 = vmul.f32 %v962, %v185
      %v965 = vmul.f32 %v962, %v186
      %v966 = vmul.f32 %v962, %v187
      %v971 = vrot.slane %v963, 2
      %v972 = vrot.slane %v964, 2
      %v973 = vsel %vm376, %v971, %v972
      %v974 = vrot.slane %v965, 2
      %v975 = vrot.slane %v966, 2
      %v976 = vsel %vm376, %v974, %v975
      %977 = vrot.lane.b32.xlu0 %v973, 127
      %v978 = vpop.permute.xlu0 %977
      %979 = vrot.lane.b32.xlu0 %v976, 127
      %v980 = vpop.permute.xlu0 %979
      %v983 = vadd.f32 %v959, %v978
      %v984 = vadd.f32 %v960, %v980
      %s985 = sld [smem:[#allocation3 + $0x25]]
      %v986 = vstv %s985
      %v987 = vmul.f32 %v986, %v184
      %v988 = vmul.f32 %v986, %v185
      %v989 = vmul.f32 %v986, %v186
      %v990 = vmul.f32 %v986, %v187
      %v995 = vrot.slane %v987, 2
      %v996 = vrot.slane %v988, 2
      %v997 = vsel %vm376, %v995, %v996
      %v998 = vrot.slane %v989, 2
      %v999 = vrot.slane %v990, 2
      %v1000 = vsel %vm376, %v998, %v999
      %1001 = vrot.lane.b32.xlu0 %v997, 126
      %v1002 = vpop.permute.xlu0 %1001
      %1003 = vrot.lane.b32.xlu0 %v1000, 126
      %v1004 = vpop.permute.xlu0 %1003
      %v1007 = vadd.f32 %v983, %v1002
      %v1008 = vadd.f32 %v984, %v1004
      %s1009 = sld [smem:[#allocation3 + $0x26]]
      %v1010 = vstv %s1009
      %v1011 = vmul.f32 %v1010, %v184
      %v1012 = vmul.f32 %v1010, %v185
      %v1013 = vmul.f32 %v1010, %v186
      %v1014 = vmul.f32 %v1010, %v187
      %v1019 = vrot.slane %v1011, 2
      %v1020 = vrot.slane %v1012, 2
      %v1021 = vsel %vm376, %v1019, %v1020
      %v1022 = vrot.slane %v1013, 2
      %v1023 = vrot.slane %v1014, 2
      %v1024 = vsel %vm376, %v1022, %v1023
      %1025 = vrot.lane.b32.xlu0 %v1021, 125
      %v1026 = vpop.permute.xlu0 %1025
      %1027 = vrot.lane.b32.xlu0 %v1024, 125
      %v1028 = vpop.permute.xlu0 %1027
      %v1031 = vadd.f32 %v1007, %v1026
      %v1032 = vadd.f32 %v1008, %v1028
      %s1033 = sld [smem:[#allocation3 + $0x27]]
      %v1034 = vstv %s1033
      %v1035 = vmul.f32 %v1034, %v184
      %v1036 = vmul.f32 %v1034, %v185
      %v1037 = vmul.f32 %v1034, %v186
      %v1038 = vmul.f32 %v1034, %v187
      %v1043 = vrot.slane %v1035, 2
      %v1044 = vrot.slane %v1036, 2
      %v1045 = vsel %vm376, %v1043, %v1044
      %v1046 = vrot.slane %v1037, 2
      %v1047 = vrot.slane %v1038, 2
      %v1048 = vsel %vm376, %v1046, %v1047
      %1049 = vrot.lane.b32.xlu0 %v1045, 124
      %v1050 = vpop.permute.xlu0 %1049
      %1051 = vrot.lane.b32.xlu0 %v1048, 124
      %v1052 = vpop.permute.xlu0 %1051
      %v1055 = vadd.f32 %v1031, %v1050
      %v1056 = vadd.f32 %v1032, %v1052
      %s1057 = sld [smem:[#allocation3 + $0x28]]
      %v1058 = vstv %s1057
      %v1059 = vmul.f32 %v1058, %v184
      %v1060 = vmul.f32 %v1058, %v185
      %v1061 = vmul.f32 %v1058, %v186
      %v1062 = vmul.f32 %v1058, %v187
      %v1067 = vrot.slane %v1059, 3
      %v1068 = vrot.slane %v1060, 3
      %v1069 = vsel %vm493, %v1067, %v1068
      %v1070 = vrot.slane %v1061, 3
      %v1071 = vrot.slane %v1062, 3
      %v1072 = vsel %vm493, %v1070, %v1071
      %v1075 = vadd.f32 %v1055, %v1069
      %v1076 = vadd.f32 %v1056, %v1072
      %s1077 = sld [smem:[#allocation3 + $0x29]]
      %v1078 = vstv %s1077
      %v1079 = vmul.f32 %v1078, %v184
      %v1080 = vmul.f32 %v1078, %v185
      %v1081 = vmul.f32 %v1078, %v186
      %v1082 = vmul.f32 %v1078, %v187
      %v1087 = vrot.slane %v1079, 3
      %v1088 = vrot.slane %v1080, 3
      %v1089 = vsel %vm493, %v1087, %v1088
      %v1090 = vrot.slane %v1081, 3
      %v1091 = vrot.slane %v1082, 3
      %v1092 = vsel %vm493, %v1090, %v1091
      %1093 = vrot.lane.b32.xlu0 %v1089, 127
      %v1094 = vpop.permute.xlu0 %1093
      %1095 = vrot.lane.b32.xlu0 %v1092, 127
      %v1096 = vpop.permute.xlu0 %1095
      %v1099 = vadd.f32 %v1075, %v1094
      %v1100 = vadd.f32 %v1076, %v1096
      %s1101 = sld [smem:[#allocation3 + $0x2a]]
      %v1102 = vstv %s1101
      %v1103 = vmul.f32 %v1102, %v184
      %v1104 = vmul.f32 %v1102, %v185
      %v1105 = vmul.f32 %v1102, %v186
      %v1106 = vmul.f32 %v1102, %v187
      %v1111 = vrot.slane %v1103, 3
      %v1112 = vrot.slane %v1104, 3
      %v1113 = vsel %vm493, %v1111, %v1112
      %v1114 = vrot.slane %v1105, 3
      %v1115 = vrot.slane %v1106, 3
      %v1116 = vsel %vm493, %v1114, %v1115
      %1117 = vrot.lane.b32.xlu0 %v1113, 126
      %v1118 = vpop.permute.xlu0 %1117
      %1119 = vrot.lane.b32.xlu0 %v1116, 126
      %v1120 = vpop.permute.xlu0 %1119
      %v1123 = vadd.f32 %v1099, %v1118
      %v1124 = vadd.f32 %v1100, %v1120
      %s1125 = sld [smem:[#allocation3 + $0x2b]]
      %v1126 = vstv %s1125
      %v1127 = vmul.f32 %v1126, %v184
      %v1128 = vmul.f32 %v1126, %v185
      %v1129 = vmul.f32 %v1126, %v186
      %v1130 = vmul.f32 %v1126, %v187
      %v1135 = vrot.slane %v1127, 3
      %v1136 = vrot.slane %v1128, 3
      %v1137 = vsel %vm493, %v1135, %v1136
      %v1138 = vrot.slane %v1129, 3
      %v1139 = vrot.slane %v1130, 3
      %v1140 = vsel %vm493, %v1138, %v1139
      %1141 = vrot.lane.b32.xlu0 %v1137, 125
      %v1142 = vpop.permute.xlu0 %1141
      %1143 = vrot.lane.b32.xlu0 %v1140, 125
      %v1144 = vpop.permute.xlu0 %1143
      %v1147 = vadd.f32 %v1123, %v1142
      %v1148 = vadd.f32 %v1124, %v1144
      %s1149 = sld [smem:[#allocation3 + $0x2c]]
      %v1150 = vstv %s1149
      %v1151 = vmul.f32 %v1150, %v184
      %v1152 = vmul.f32 %v1150, %v185
      %v1153 = vmul.f32 %v1150, %v186
      %v1154 = vmul.f32 %v1150, %v187
      %v1159 = vrot.slane %v1151, 3
      %v1160 = vrot.slane %v1152, 3
      %v1161 = vsel %vm493, %v1159, %v1160
      %v1162 = vrot.slane %v1153, 3
      %v1163 = vrot.slane %v1154, 3
      %v1164 = vsel %vm493, %v1162, %v1163
      %1165 = vrot.lane.b32.xlu0 %v1161, 124
      %v1166 = vpop.permute.xlu0 %1165
      %1167 = vrot.lane.b32.xlu0 %v1164, 124
      %v1168 = vpop.permute.xlu0 %1167
      %v1171 = vadd.f32 %v1147, %v1166
      %v1172 = vadd.f32 %v1148, %v1168
      %s1173 = sld [smem:[#allocation3 + $0x2d]]
      %v1174 = vstv %s1173
      %v1175 = vmul.f32 %v1174, %v184
      %v1176 = vmul.f32 %v1174, %v185
      %v1177 = vmul.f32 %v1174, %v186
      %v1178 = vmul.f32 %v1174, %v187
      %v1183 = vrot.slane %v1175, 4
      %v1184 = vrot.slane %v1176, 4
      %v1185 = vsel %vm610, %v1183, %v1184
      %v1186 = vrot.slane %v1177, 4
      %v1187 = vrot.slane %v1178, 4
      %v1188 = vsel %vm610, %v1186, %v1187
      %v1191 = vadd.f32 %v1171, %v1185
      %v1192 = vadd.f32 %v1172, %v1188
      %s1193 = sld [smem:[#allocation3 + $0x2e]]
      %v1194 = vstv %s1193
      %v1195 = vmul.f32 %v1194, %v184
      %v1196 = vmul.f32 %v1194, %v185
      %v1197 = vmul.f32 %v1194, %v186
      %v1198 = vmul.f32 %v1194, %v187
      %v1203 = vrot.slane %v1195, 4
      %v1204 = vrot.slane %v1196, 4
      %v1205 = vsel %vm610, %v1203, %v1204
      %v1206 = vrot.slane %v1197, 4
      %v1207 = vrot.slane %v1198, 4
      %v1208 = vsel %vm610, %v1206, %v1207
      %1209 = vrot.lane.b32.xlu0 %v1205, 127
      %v1210 = vpop.permute.xlu0 %1209
      %1211 = vrot.lane.b32.xlu0 %v1208, 127
      %v1212 = vpop.permute.xlu0 %1211
      %v1215 = vadd.f32 %v1191, %v1210
      %v1216 = vadd.f32 %v1192, %v1212
      %s1217 = sld [smem:[#allocation3 + $0x2f]]
      %v1218 = vstv %s1217
      %v1219 = vmul.f32 %v1218, %v184
      %v1220 = vmul.f32 %v1218, %v185
      %v1221 = vmul.f32 %v1218, %v186
      %v1222 = vmul.f32 %v1218, %v187
      %v1227 = vrot.slane %v1219, 4
      %v1228 = vrot.slane %v1220, 4
      %v1229 = vsel %vm610, %v1227, %v1228
      %v1230 = vrot.slane %v1221, 4
      %v1231 = vrot.slane %v1222, 4
      %v1232 = vsel %vm610, %v1230, %v1231
      %1233 = vrot.lane.b32.xlu0 %v1229, 126
      %v1234 = vpop.permute.xlu0 %1233
      %1235 = vrot.lane.b32.xlu0 %v1232, 126
      %v1236 = vpop.permute.xlu0 %1235
      %v1239 = vadd.f32 %v1215, %v1234
      %v1240 = vadd.f32 %v1216, %v1236
      %s1241 = sld [smem:[#allocation3 + $0x30]]
      %v1242 = vstv %s1241
      %v1243 = vmul.f32 %v1242, %v184
      %v1244 = vmul.f32 %v1242, %v185
      %v1245 = vmul.f32 %v1242, %v186
      %v1246 = vmul.f32 %v1242, %v187
      %v1251 = vrot.slane %v1243, 4
      %v1252 = vrot.slane %v1244, 4
      %v1253 = vsel %vm610, %v1251, %v1252
      %v1254 = vrot.slane %v1245, 4
      %v1255 = vrot.slane %v1246, 4
      %v1256 = vsel %vm610, %v1254, %v1255
      %1257 = vrot.lane.b32.xlu0 %v1253, 125
      %v1258 = vpop.permute.xlu0 %1257
      %1259 = vrot.lane.b32.xlu0 %v1256, 125
      %v1260 = vpop.permute.xlu0 %1259
      %v1263 = vadd.f32 %v1239, %v1258
      %v1264 = vadd.f32 %v1240, %v1260
      %s1265 = sld [smem:[#allocation3 + $0x31]]
      %v1266 = vstv %s1265
      %v1267 = vmul.f32 %v1266, %v184
      %v1268 = vmul.f32 %v1266, %v185
      %v1269 = vmul.f32 %v1266, %v186
      %v1270 = vmul.f32 %v1266, %v187
      %v1275 = vrot.slane %v1267, 4
      %v1276 = vrot.slane %v1268, 4
      %v1277 = vsel %vm610, %v1275, %v1276
      %v1278 = vrot.slane %v1269, 4
      %v1279 = vrot.slane %v1270, 4
      %v1280 = vsel %vm610, %v1278, %v1279
      %1281 = vrot.lane.b32.xlu0 %v1277, 124
      %v1282 = vpop.permute.xlu0 %1281
      %1283 = vrot.lane.b32.xlu0 %v1280, 124
      %v1284 = vpop.permute.xlu0 %1283
      %v1287 = vadd.f32 %v1263, %v1282
      %v1288 = vadd.f32 %v1264, %v1284
      %1291 = vrot.lane.b32.xlu0 %v1287, 127
      %v1292 = vpop.permute.xlu0 %1291
      %1293 = vrot.lane.b32.xlu0 %v1288, 127
      %v1294 = vpop.permute.xlu0 %1293
      %v1297 = vmax.f32 %v1287, %v1292
      %v1298 = vmax.f32 %v1288, %v1294
      %v1301 = vrot.slane %v1297, 1
      %v1302 = vrot.slane %v1298, 1
      %v1305 = vmax.f32 %v1297, %v1301
      %v1306 = vmax.f32 %v1298, %v1302
      %v1307 = vmul.f32 %v1305, %v739
      %v1308 = vmul.f32 %v1306, %v739
      %v1309 = vsel %vm743, %v1307, 0.0
      %1310 = vadd.xlane.f32.xlu0 %v1309
      %v1311 = vpop.xlane.xlu0 %1310
      %v1312 = vsel %vm743, %v1308, 0.0
      %1313 = vadd.xlane.f32.xlu0 %v1312
      %v1314 = vpop.xlane.xlu0 %1313
      %1317 = vrot.lane.b32.xlu0 %v1307, 64
      %v1318 = vpop.permute.xlu0 %1317
      %1319 = vrot.lane.b32.xlu0 %v1308, 64
      %v1320 = vpop.permute.xlu0 %1319
      %v1323 = vsel %vm758, %v1318, 0.0
      %1324 = vadd.xlane.f32.xlu0 %v1323
      %v1325 = vpop.xlane.xlu0 %1324
      %v1326 = vsel %vm758, %v1320, 0.0
      %1327 = vadd.xlane.f32.xlu0 %v1326
      %v1328 = vpop.xlane.xlu0 %1327
      %s1329 = sld [smem:[#allocation3 + $0x32]]
      %v1330 = vstv %s1329
      %v1331 = vmul.f32 %v1330, %v184
      %v1332 = vmul.f32 %v1330, %v186
      %s1333 = sld [smem:[#allocation3 + $0x33]]
      %v1334 = vstv %s1333
      %v1335 = vmul.f32 %v1334, %v184
      %v1336 = vmul.f32 %v1334, %v186
      %1339 = vrot.lane.b32.xlu0 %v1335, 127
      %v1340 = vpop.permute.xlu0 %1339
      %1341 = vrot.lane.b32.xlu0 %v1336, 127
      %v1342 = vpop.permute.xlu0 %1341
      %v1345 = vadd.f32 %v1331, %v1340
      %v1346 = vadd.f32 %v1332, %v1342
      %s1347 = sld [smem:[#allocation3 + $0x34]]
      %v1348 = vstv %s1347
      %v1349 = vmul.f32 %v1348, %v184
      %v1350 = vmul.f32 %v1348, %v186
      %1353 = vrot.lane.b32.xlu0 %v1349, 126
      %v1354 = vpop.permute.xlu0 %1353
      %1355 = vrot.lane.b32.xlu0 %v1350, 126
      %v1356 = vpop.permute.xlu0 %1355
      %v1359 = vadd.f32 %v1345, %v1354
      %v1360 = vadd.f32 %v1346, %v1356
      %s1361 = sld [smem:[#allocation3 + $0x35]]
      %v1362 = vstv %s1361
      %v1363 = vmul.f32 %v1362, %v184
      %v1364 = vmul.f32 %v1362, %v186
      %1367 = vrot.lane.b32.xlu0 %v1363, 125
      %v1368 = vpop.permute.xlu0 %1367
      %1369 = vrot.lane.b32.xlu0 %v1364, 125
      %v1370 = vpop.permute.xlu0 %1369
      %v1373 = vadd.f32 %v1359, %v1368
      %v1374 = vadd.f32 %v1360, %v1370
      %s1375 = sld [smem:[#allocation3 + $0x36]]
      %v1376 = vstv %s1375
      %v1377 = vmul.f32 %v1376, %v184
      %v1378 = vmul.f32 %v1376, %v186
      %1381 = vrot.lane.b32.xlu0 %v1377, 124
      %v1382 = vpop.permute.xlu0 %1381
      %1383 = vrot.lane.b32.xlu0 %v1378, 124
      %v1384 = vpop.permute.xlu0 %1383
      %v1387 = vadd.f32 %v1373, %v1382
      %v1388 = vadd.f32 %v1374, %v1384
      %s1389 = sld [smem:[#allocation3 + $0x37]]
      %v1390 = vstv %s1389
      %v1391 = vmul.f32 %v1390, %v184
      %v1392 = vmul.f32 %v1390, %v185
      %v1393 = vmul.f32 %v1390, %v186
      %v1394 = vmul.f32 %v1390, %v187
      %v1399 = vrot.slane %v1391, 1
      %v1400 = vrot.slane %v1392, 1
      %v1401 = vsel %vm259, %v1399, %v1400
      %v1402 = vrot.slane %v1393, 1
      %v1403 = vrot.slane %v1394, 1
      %v1404 = vsel %vm259, %v1402, %v1403
      %v1407 = vadd.f32 %v1387, %v1401
      %v1408 = vadd.f32 %v1388, %v1404
      %s1409 = sld [smem:[#allocation3 + $0x38]]
      %v1410 = vstv %s1409
      %v1411 = vmul.f32 %v1410, %v184
      %v1412 = vmul.f32 %v1410, %v185
      %v1413 = vmul.f32 %v1410, %v186
      %v1414 = vmul.f32 %v1410, %v187
      %v1419 = vrot.slane %v1411, 1
      %v1420 = vrot.slane %v1412, 1
      %v1421 = vsel %vm259, %v1419, %v1420
      %v1422 = vrot.slane %v1413, 1
      %v1423 = vrot.slane %v1414, 1
      %v1424 = vsel %vm259, %v1422, %v1423
      %1425 = vrot.lane.b32.xlu0 %v1421, 127
      %v1426 = vpop.permute.xlu0 %1425
      %1427 = vrot.lane.b32.xlu0 %v1424, 127
      %v1428 = vpop.permute.xlu0 %1427
      %v1431 = vadd.f32 %v1407, %v1426
      %v1432 = vadd.f32 %v1408, %v1428
      %s1433 = sld [smem:[#allocation3 + $0x39]]
      %v1434 = vstv %s1433
      %v1435 = vmul.f32 %v1434, %v184
      %v1436 = vmul.f32 %v1434, %v185
      %v1437 = vmul.f32 %v1434, %v186
      %v1438 = vmul.f32 %v1434, %v187
      %v1443 = vrot.slane %v1435, 1
      %v1444 = vrot.slane %v1436, 1
      %v1445 = vsel %vm259, %v1443, %v1444
      %v1446 = vrot.slane %v1437, 1
      %v1447 = vrot.slane %v1438, 1
      %v1448 = vsel %vm259, %v1446, %v1447
      %1449 = vrot.lane.b32.xlu0 %v1445, 126
      %v1450 = vpop.permute.xlu0 %1449
      %1451 = vrot.lane.b32.xlu0 %v1448, 126
      %v1452 = vpop.permute.xlu0 %1451
      %v1455 = vadd.f32 %v1431, %v1450
      %v1456 = vadd.f32 %v1432, %v1452
      %s1457 = sld [smem:[#allocation3 + $0x3a]]
      %v1458 = vstv %s1457
      %v1459 = vmul.f32 %v1458, %v184
      %v1460 = vmul.f32 %v1458, %v185
      %v1461 = vmul.f32 %v1458, %v186
      %v1462 = vmul.f32 %v1458, %v187
      %v1467 = vrot.slane %v1459, 1
      %v1468 = vrot.slane %v1460, 1
      %v1469 = vsel %vm259, %v1467, %v1468
      %v1470 = vrot.slane %v1461, 1
      %v1471 = vrot.slane %v1462, 1
      %v1472 = vsel %vm259, %v1470, %v1471
      %1473 = vrot.lane.b32.xlu0 %v1469, 125
      %v1474 = vpop.permute.xlu0 %1473
      %1475 = vrot.lane.b32.xlu0 %v1472, 125
      %v1476 = vpop.permute.xlu0 %1475
      %v1479 = vadd.f32 %v1455, %v1474
      %v1480 = vadd.f32 %v1456, %v1476
      %s1481 = sld [smem:[#allocation3 + $0x3b]]
      %v1482 = vstv %s1481
      %v1483 = vmul.f32 %v1482, %v184
      %v1484 = vmul.f32 %v1482, %v185
      %v1485 = vmul.f32 %v1482, %v186
      %v1486 = vmul.f32 %v1482, %v187
      %v1491 = vrot.slane %v1483, 1
      %v1492 = vrot.slane %v1484, 1
      %v1493 = vsel %vm259, %v1491, %v1492
      %v1494 = vrot.slane %v1485, 1
      %v1495 = vrot.slane %v1486, 1
      %v1496 = vsel %vm259, %v1494, %v1495
      %1497 = vrot.lane.b32.xlu0 %v1493, 124
      %v1498 = vpop.permute.xlu0 %1497
      %1499 = vrot.lane.b32.xlu0 %v1496, 124
      %v1500 = vpop.permute.xlu0 %1499
      %v1503 = vadd.f32 %v1479, %v1498
      %v1504 = vadd.f32 %v1480, %v1500
      %s1505 = sld [smem:[#allocation3 + $0x3c]]
      %v1506 = vstv %s1505
      %v1507 = vmul.f32 %v1506, %v184
      %v1508 = vmul.f32 %v1506, %v185
      %v1509 = vmul.f32 %v1506, %v186
      %v1510 = vmul.f32 %v1506, %v187
      %v1515 = vrot.slane %v1507, 2
      %v1516 = vrot.slane %v1508, 2
      %v1517 = vsel %vm376, %v1515, %v1516
      %v1518 = vrot.slane %v1509, 2
      %v1519 = vrot.slane %v1510, 2
      %v1520 = vsel %vm376, %v1518, %v1519
      %v1523 = vadd.f32 %v1503, %v1517
      %v1524 = vadd.f32 %v1504, %v1520
      %s1525 = sld [smem:[#allocation3 + $0x3d]]
      %v1526 = vstv %s1525
      %v1527 = vmul.f32 %v1526, %v184
      %v1528 = vmul.f32 %v1526, %v185
      %v1529 = vmul.f32 %v1526, %v186
      %v1530 = vmul.f32 %v1526, %v187
      %v1535 = vrot.slane %v1527, 2
      %v1536 = vrot.slane %v1528, 2
      %v1537 = vsel %vm376, %v1535, %v1536
      %v1538 = vrot.slane %v1529, 2
      %v1539 = vrot.slane %v1530, 2
      %v1540 = vsel %vm376, %v1538, %v1539
      %1541 = vrot.lane.b32.xlu0 %v1537, 127
      %v1542 = vpop.permute.xlu0 %1541
      %1543 = vrot.lane.b32.xlu0 %v1540, 127
      %v1544 = vpop.permute.xlu0 %1543
      %v1547 = vadd.f32 %v1523, %v1542
      %v1548 = vadd.f32 %v1524, %v1544
      %s1549 = sld [smem:[#allocation3 + $0x3e]]
      %v1550 = vstv %s1549
      %v1551 = vmul.f32 %v1550, %v184
      %v1552 = vmul.f32 %v1550, %v185
      %v1553 = vmul.f32 %v1550, %v186
      %v1554 = vmul.f32 %v1550, %v187
      %v1559 = vrot.slane %v1551, 2
      %v1560 = vrot.slane %v1552, 2
      %v1561 = vsel %vm376, %v1559, %v1560
      %v1562 = vrot.slane %v1553, 2
      %v1563 = vrot.slane %v1554, 2
      %v1564 = vsel %vm376, %v1562, %v1563
      %1565 = vrot.lane.b32.xlu0 %v1561, 126
      %v1566 = vpop.permute.xlu0 %1565
      %1567 = vrot.lane.b32.xlu0 %v1564, 126
      %v1568 = vpop.permute.xlu0 %1567
      %v1571 = vadd.f32 %v1547, %v1566
      %v1572 = vadd.f32 %v1548, %v1568
      %s1573 = sld [smem:[#allocation3 + $0x3f]]
      %v1574 = vstv %s1573
      %v1575 = vmul.f32 %v1574, %v184
      %v1576 = vmul.f32 %v1574, %v185
      %v1577 = vmul.f32 %v1574, %v186
      %v1578 = vmul.f32 %v1574, %v187
      %v1583 = vrot.slane %v1575, 2
      %v1584 = vrot.slane %v1576, 2
      %v1585 = vsel %vm376, %v1583, %v1584
      %v1586 = vrot.slane %v1577, 2
      %v1587 = vrot.slane %v1578, 2
      %v1588 = vsel %vm376, %v1586, %v1587
      %1589 = vrot.lane.b32.xlu0 %v1585, 125
      %v1590 = vpop.permute.xlu0 %1589
      %1591 = vrot.lane.b32.xlu0 %v1588, 125
      %v1592 = vpop.permute.xlu0 %1591
      %v1595 = vadd.f32 %v1571, %v1590
      %v1596 = vadd.f32 %v1572, %v1592
      %s1597 = sld [smem:[#allocation3 + $0x40]]
      %v1598 = vstv %s1597
      %v1599 = vmul.f32 %v1598, %v184
      %v1600 = vmul.f32 %v1598, %v185
      %v1601 = vmul.f32 %v1598, %v186
      %v1602 = vmul.f32 %v1598, %v187
      %v1607 = vrot.slane %v1599, 2
      %v1608 = vrot.slane %v1600, 2
      %v1609 = vsel %vm376, %v1607, %v1608
      %v1610 = vrot.slane %v1601, 2
      %v1611 = vrot.slane %v1602, 2
      %v1612 = vsel %vm376, %v1610, %v1611
      %1613 = vrot.lane.b32.xlu0 %v1609, 124
      %v1614 = vpop.permute.xlu0 %1613
      %1615 = vrot.lane.b32.xlu0 %v1612, 124
      %v1616 = vpop.permute.xlu0 %1615
      %v1619 = vadd.f32 %v1595, %v1614
      %v1620 = vadd.f32 %v1596, %v1616
      %s1621 = sld [smem:[#allocation3 + $0x41]]
      %v1622 = vstv %s1621
      %v1623 = vmul.f32 %v1622, %v184
      %v1624 = vmul.f32 %v1622, %v185
      %v1625 = vmul.f32 %v1622, %v186
      %v1626 = vmul.f32 %v1622, %v187
      %v1631 = vrot.slane %v1623, 3
      %v1632 = vrot.slane %v1624, 3
      %v1633 = vsel %vm493, %v1631, %v1632
      %v1634 = vrot.slane %v1625, 3
      %v1635 = vrot.slane %v1626, 3
      %v1636 = vsel %vm493, %v1634, %v1635
      %v1639 = vadd.f32 %v1619, %v1633
      %v1640 = vadd.f32 %v1620, %v1636
      %s1641 = sld [smem:[#allocation3 + $0x42]]
      %v1642 = vstv %s1641
      %v1643 = vmul.f32 %v1642, %v184
      %v1644 = vmul.f32 %v1642, %v185
      %v1645 = vmul.f32 %v1642, %v186
      %v1646 = vmul.f32 %v1642, %v187
      %v1651 = vrot.slane %v1643, 3
      %v1652 = vrot.slane %v1644, 3
      %v1653 = vsel %vm493, %v1651, %v1652
      %v1654 = vrot.slane %v1645, 3
      %v1655 = vrot.slane %v1646, 3
      %v1656 = vsel %vm493, %v1654, %v1655
      %1657 = vrot.lane.b32.xlu0 %v1653, 127
      %v1658 = vpop.permute.xlu0 %1657
      %1659 = vrot.lane.b32.xlu0 %v1656, 127
      %v1660 = vpop.permute.xlu0 %1659
      %v1663 = vadd.f32 %v1639, %v1658
      %v1664 = vadd.f32 %v1640, %v1660
      %s1665 = sld [smem:[#allocation3 + $0x43]]
      %v1666 = vstv %s1665
      %v1667 = vmul.f32 %v1666, %v184
      %v1668 = vmul.f32 %v1666, %v185
      %v1669 = vmul.f32 %v1666, %v186
      %v1670 = vmul.f32 %v1666, %v187
      %v1675 = vrot.slane %v1667, 3
      %v1676 = vrot.slane %v1668, 3
      %v1677 = vsel %vm493, %v1675, %v1676
      %v1678 = vrot.slane %v1669, 3
      %v1679 = vrot.slane %v1670, 3
      %v1680 = vsel %vm493, %v1678, %v1679
      %1681 = vrot.lane.b32.xlu0 %v1677, 126
      %v1682 = vpop.permute.xlu0 %1681
      %1683 = vrot.lane.b32.xlu0 %v1680, 126
      %v1684 = vpop.permute.xlu0 %1683
      %v1687 = vadd.f32 %v1663, %v1682
      %v1688 = vadd.f32 %v1664, %v1684
      %s1689 = sld [smem:[#allocation3 + $0x44]]
      %v1690 = vstv %s1689
      %v1691 = vmul.f32 %v1690, %v184
      %v1692 = vmul.f32 %v1690, %v185
      %v1693 = vmul.f32 %v1690, %v186
      %v1694 = vmul.f32 %v1690, %v187
      %v1699 = vrot.slane %v1691, 3
      %v1700 = vrot.slane %v1692, 3
      %v1701 = vsel %vm493, %v1699, %v1700
      %v1702 = vrot.slane %v1693, 3
      %v1703 = vrot.slane %v1694, 3
      %v1704 = vsel %vm493, %v1702, %v1703
      %1705 = vrot.lane.b32.xlu0 %v1701, 125
      %v1706 = vpop.permute.xlu0 %1705
      %1707 = vrot.lane.b32.xlu0 %v1704, 125
      %v1708 = vpop.permute.xlu0 %1707
      %v1711 = vadd.f32 %v1687, %v1706
      %v1712 = vadd.f32 %v1688, %v1708
      %s1713 = sld [smem:[#allocation3 + $0x45]]
      %v1714 = vstv %s1713
      %v1715 = vmul.f32 %v1714, %v184
      %v1716 = vmul.f32 %v1714, %v185
      %v1717 = vmul.f32 %v1714, %v186
      %v1718 = vmul.f32 %v1714, %v187
      %v1723 = vrot.slane %v1715, 3
      %v1724 = vrot.slane %v1716, 3
      %v1725 = vsel %vm493, %v1723, %v1724
      %v1726 = vrot.slane %v1717, 3
      %v1727 = vrot.slane %v1718, 3
      %v1728 = vsel %vm493, %v1726, %v1727
      %1729 = vrot.lane.b32.xlu0 %v1725, 124
      %v1730 = vpop.permute.xlu0 %1729
      %1731 = vrot.lane.b32.xlu0 %v1728, 124
      %v1732 = vpop.permute.xlu0 %1731
      %v1735 = vadd.f32 %v1711, %v1730
      %v1736 = vadd.f32 %v1712, %v1732
      %s1737 = sld [smem:[#allocation3 + $0x46]]
      %v1738 = vstv %s1737
      %v1739 = vmul.f32 %v1738, %v184
      %v1740 = vmul.f32 %v1738, %v185
      %v1741 = vmul.f32 %v1738, %v186
      %v1742 = vmul.f32 %v1738, %v187
      %v1747 = vrot.slane %v1739, 4
      %v1748 = vrot.slane %v1740, 4
      %v1749 = vsel %vm610, %v1747, %v1748
      %v1750 = vrot.slane %v1741, 4
      %v1751 = vrot.slane %v1742, 4
      %v1752 = vsel %vm610, %v1750, %v1751
      %v1755 = vadd.f32 %v1735, %v1749
      %v1756 = vadd.f32 %v1736, %v1752
      %s1757 = sld [smem:[#allocation3 + $0x47]]
      %v1758 = vstv %s1757
      %v1759 = vmul.f32 %v1758, %v184
      %v1760 = vmul.f32 %v1758, %v185
      %v1761 = vmul.f32 %v1758, %v186
      %v1762 = vmul.f32 %v1758, %v187
      %v1767 = vrot.slane %v1759, 4
      %v1768 = vrot.slane %v1760, 4
      %v1769 = vsel %vm610, %v1767, %v1768
      %v1770 = vrot.slane %v1761, 4
      %v1771 = vrot.slane %v1762, 4
      %v1772 = vsel %vm610, %v1770, %v1771
      %1773 = vrot.lane.b32.xlu0 %v1769, 127
      %v1774 = vpop.permute.xlu0 %1773
      %1775 = vrot.lane.b32.xlu0 %v1772, 127
      %v1776 = vpop.permute.xlu0 %1775
      %v1779 = vadd.f32 %v1755, %v1774
      %v1780 = vadd.f32 %v1756, %v1776
      %s1781 = sld [smem:[#allocation3 + $0x48]]
      %v1782 = vstv %s1781
      %v1783 = vmul.f32 %v1782, %v184
      %v1784 = vmul.f32 %v1782, %v185
      %v1785 = vmul.f32 %v1782, %v186
      %v1786 = vmul.f32 %v1782, %v187
      %v1791 = vrot.slane %v1783, 4
      %v1792 = vrot.slane %v1784, 4
      %v1793 = vsel %vm610, %v1791, %v1792
      %v1794 = vrot.slane %v1785, 4
      %v1795 = vrot.slane %v1786, 4
      %v1796 = vsel %vm610, %v1794, %v1795
      %1797 = vrot.lane.b32.xlu0 %v1793, 126
      %v1798 = vpop.permute.xlu0 %1797
      %1799 = vrot.lane.b32.xlu0 %v1796, 126
      %v1800 = vpop.permute.xlu0 %1799
      %v1803 = vadd.f32 %v1779, %v1798
      %v1804 = vadd.f32 %v1780, %v1800
      %s1805 = sld [smem:[#allocation3 + $0x49]]
      %v1806 = vstv %s1805
      %v1807 = vmul.f32 %v1806, %v184
      %v1808 = vmul.f32 %v1806, %v185
      %v1809 = vmul.f32 %v1806, %v186
      %v1810 = vmul.f32 %v1806, %v187
      %v1815 = vrot.slane %v1807, 4
      %v1816 = vrot.slane %v1808, 4
      %v1817 = vsel %vm610, %v1815, %v1816
      %v1818 = vrot.slane %v1809, 4
      %v1819 = vrot.slane %v1810, 4
      %v1820 = vsel %vm610, %v1818, %v1819
      %1821 = vrot.lane.b32.xlu0 %v1817, 125
      %v1822 = vpop.permute.xlu0 %1821
      %1823 = vrot.lane.b32.xlu0 %v1820, 125
      %v1824 = vpop.permute.xlu0 %1823
      %v1827 = vadd.f32 %v1803, %v1822
      %v1828 = vadd.f32 %v1804, %v1824
      %s1829 = sld [smem:[#allocation3 + $0x4a]]
      %v1830 = vstv %s1829
      %v1831 = vmul.f32 %v1830, %v184
      %v1832 = vmul.f32 %v1830, %v185
      %v1833 = vmul.f32 %v1830, %v186
      %v1834 = vmul.f32 %v1830, %v187
      %v1839 = vrot.slane %v1831, 4
      %v1840 = vrot.slane %v1832, 4
      %v1841 = vsel %vm610, %v1839, %v1840
      %v1842 = vrot.slane %v1833, 4
      %v1843 = vrot.slane %v1834, 4
      %v1844 = vsel %vm610, %v1842, %v1843
      %1845 = vrot.lane.b32.xlu0 %v1841, 124
      %v1846 = vpop.permute.xlu0 %1845
      %1847 = vrot.lane.b32.xlu0 %v1844, 124
      %v1848 = vpop.permute.xlu0 %1847
      %v1851 = vadd.f32 %v1827, %v1846
      %v1852 = vadd.f32 %v1828, %v1848
      %1855 = vrot.lane.b32.xlu0 %v1851, 127
      %v1856 = vpop.permute.xlu0 %1855
      %1857 = vrot.lane.b32.xlu0 %v1852, 127
      %v1858 = vpop.permute.xlu0 %1857
      %v1861 = vmax.f32 %v1851, %v1856
      %v1862 = vmax.f32 %v1852, %v1858
      %v1865 = vrot.slane %v1861, 1
      %v1866 = vrot.slane %v1862, 1
      %v1869 = vmax.f32 %v1861, %v1865
      %v1870 = vmax.f32 %v1862, %v1866
      %v1871 = vmul.f32 %v1869, %v739
      %v1872 = vmul.f32 %v1870, %v739
      %v1873 = vsel %vm743, %v1871, 0.0
      %1874 = vadd.xlane.f32.xlu0 %v1873
      %v1875 = vpop.xlane.xlu0 %1874
      %v1876 = vsel %vm743, %v1872, 0.0
      %1877 = vadd.xlane.f32.xlu0 %v1876
      %v1878 = vpop.xlane.xlu0 %1877
      %1881 = vrot.lane.b32.xlu0 %v1871, 64
      %v1882 = vpop.permute.xlu0 %1881
      %1883 = vrot.lane.b32.xlu0 %v1872, 64
      %v1884 = vpop.permute.xlu0 %1883
      %v1887 = vsel %vm758, %v1882, 0.0
      %1888 = vadd.xlane.f32.xlu0 %v1887
      %v1889 = vpop.xlane.xlu0 %1888
      %v1890 = vsel %vm758, %v1884, 0.0
      %1891 = vadd.xlane.f32.xlu0 %v1890
      %v1892 = vpop.xlane.xlu0 %1891
      %s1893 = sld [smem:[#allocation3 + $0x4b]]
      %v1894 = vstv %s1893
      %v1895 = vmul.f32 %v1894, %v184
      %v1896 = vmul.f32 %v1894, %v186
      %s1897 = sld [smem:[#allocation3 + $0x4c]]
      %v1898 = vstv %s1897
      %v1899 = vmul.f32 %v1898, %v184
      %v1900 = vmul.f32 %v1898, %v186
      %1903 = vrot.lane.b32.xlu0 %v1899, 127
      %v1904 = vpop.permute.xlu0 %1903
      %1905 = vrot.lane.b32.xlu0 %v1900, 127
      %v1906 = vpop.permute.xlu0 %1905
      %v1909 = vadd.f32 %v1895, %v1904
      %v1910 = vadd.f32 %v1896, %v1906
      %s1911 = sld [smem:[#allocation3 + $0x4d]]
      %v1912 = vstv %s1911
      %v1913 = vmul.f32 %v1912, %v184
      %v1914 = vmul.f32 %v1912, %v186
      %1917 = vrot.lane.b32.xlu0 %v1913, 126
      %v1918 = vpop.permute.xlu0 %1917
      %1919 = vrot.lane.b32.xlu0 %v1914, 126
      %v1920 = vpop.permute.xlu0 %1919
      %v1923 = vadd.f32 %v1909, %v1918
      %v1924 = vadd.f32 %v1910, %v1920
      %s1925 = sld [smem:[#allocation3 + $0x4e]]
      %v1926 = vstv %s1925
      %v1927 = vmul.f32 %v1926, %v184
      %v1928 = vmul.f32 %v1926, %v186
      %1931 = vrot.lane.b32.xlu0 %v1927, 125
      %v1932 = vpop.permute.xlu0 %1931
      %1933 = vrot.lane.b32.xlu0 %v1928, 125
      %v1934 = vpop.permute.xlu0 %1933
      %v1937 = vadd.f32 %v1923, %v1932
      %v1938 = vadd.f32 %v1924, %v1934
      %s1939 = sld [smem:[#allocation3 + $0x4f]]
      %v1940 = vstv %s1939
      %v1941 = vmul.f32 %v1940, %v184
      %v1942 = vmul.f32 %v1940, %v186
      %1945 = vrot.lane.b32.xlu0 %v1941, 124
      %v1946 = vpop.permute.xlu0 %1945
      %1947 = vrot.lane.b32.xlu0 %v1942, 124
      %v1948 = vpop.permute.xlu0 %1947
      %v1951 = vadd.f32 %v1937, %v1946
      %v1952 = vadd.f32 %v1938, %v1948
      %s1953 = sld [smem:[#allocation3 + $0x50]]
      %v1954 = vstv %s1953
      %v1955 = vmul.f32 %v1954, %v184
      %v1956 = vmul.f32 %v1954, %v185
      %v1957 = vmul.f32 %v1954, %v186
      %v1958 = vmul.f32 %v1954, %v187
      %v1963 = vrot.slane %v1955, 1
      %v1964 = vrot.slane %v1956, 1
      %v1965 = vsel %vm259, %v1963, %v1964
      %v1966 = vrot.slane %v1957, 1
      %v1967 = vrot.slane %v1958, 1
      %v1968 = vsel %vm259, %v1966, %v1967
      %v1971 = vadd.f32 %v1951, %v1965
      %v1972 = vadd.f32 %v1952, %v1968
      %s1973 = sld [smem:[#allocation3 + $0x51]]
      %v1974 = vstv %s1973
      %v1975 = vmul.f32 %v1974, %v184
      %v1976 = vmul.f32 %v1974, %v185
      %v1977 = vmul.f32 %v1974, %v186
      %v1978 = vmul.f32 %v1974, %v187
      %v1983 = vrot.slane %v1975, 1
      %v1984 = vrot.slane %v1976, 1
      %v1985 = vsel %vm259, %v1983, %v1984
      %v1986 = vrot.slane %v1977, 1
      %v1987 = vrot.slane %v1978, 1
      %v1988 = vsel %vm259, %v1986, %v1987
      %1989 = vrot.lane.b32.xlu0 %v1985, 127
      %v1990 = vpop.permute.xlu0 %1989
      %1991 = vrot.lane.b32.xlu0 %v1988, 127
      %v1992 = vpop.permute.xlu0 %1991
      %v1995 = vadd.f32 %v1971, %v1990
      %v1996 = vadd.f32 %v1972, %v1992
      %s1997 = sld [smem:[#allocation3 + $0x52]]
      %v1998 = vstv %s1997
      %v1999 = vmul.f32 %v1998, %v184
      %v2000 = vmul.f32 %v1998, %v185
      %v2001 = vmul.f32 %v1998, %v186
      %v2002 = vmul.f32 %v1998, %v187
      %v2007 = vrot.slane %v1999, 1
      %v2008 = vrot.slane %v2000, 1
      %v2009 = vsel %vm259, %v2007, %v2008
      %v2010 = vrot.slane %v2001, 1
      %v2011 = vrot.slane %v2002, 1
      %v2012 = vsel %vm259, %v2010, %v2011
      %2013 = vrot.lane.b32.xlu0 %v2009, 126
      %v2014 = vpop.permute.xlu0 %2013
      %2015 = vrot.lane.b32.xlu0 %v2012, 126
      %v2016 = vpop.permute.xlu0 %2015
      %v2019 = vadd.f32 %v1995, %v2014
      %v2020 = vadd.f32 %v1996, %v2016
      %s2021 = sld [smem:[#allocation3 + $0x53]]
      %v2022 = vstv %s2021
      %v2023 = vmul.f32 %v2022, %v184
      %v2024 = vmul.f32 %v2022, %v185
      %v2025 = vmul.f32 %v2022, %v186
      %v2026 = vmul.f32 %v2022, %v187
      %v2031 = vrot.slane %v2023, 1
      %v2032 = vrot.slane %v2024, 1
      %v2033 = vsel %vm259, %v2031, %v2032
      %v2034 = vrot.slane %v2025, 1
      %v2035 = vrot.slane %v2026, 1
      %v2036 = vsel %vm259, %v2034, %v2035
      %2037 = vrot.lane.b32.xlu0 %v2033, 125
      %v2038 = vpop.permute.xlu0 %2037
      %2039 = vrot.lane.b32.xlu0 %v2036, 125
      %v2040 = vpop.permute.xlu0 %2039
      %v2043 = vadd.f32 %v2019, %v2038
      %v2044 = vadd.f32 %v2020, %v2040
      %s2045 = sld [smem:[#allocation3 + $0x54]]
      %v2046 = vstv %s2045
      %v2047 = vmul.f32 %v2046, %v184
      %v2048 = vmul.f32 %v2046, %v185
      %v2049 = vmul.f32 %v2046, %v186
      %v2050 = vmul.f32 %v2046, %v187
      %v2055 = vrot.slane %v2047, 1
      %v2056 = vrot.slane %v2048, 1
      %v2057 = vsel %vm259, %v2055, %v2056
      %v2058 = vrot.slane %v2049, 1
      %v2059 = vrot.slane %v2050, 1
      %v2060 = vsel %vm259, %v2058, %v2059
      %2061 = vrot.lane.b32.xlu0 %v2057, 124
      %v2062 = vpop.permute.xlu0 %2061
      %2063 = vrot.lane.b32.xlu0 %v2060, 124
      %v2064 = vpop.permute.xlu0 %2063
      %v2067 = vadd.f32 %v2043, %v2062
      %v2068 = vadd.f32 %v2044, %v2064
      %s2069 = sld [smem:[#allocation3 + $0x55]]
      %v2070 = vstv %s2069
      %v2071 = vmul.f32 %v2070, %v184
      %v2072 = vmul.f32 %v2070, %v185
      %v2073 = vmul.f32 %v2070, %v186
      %v2074 = vmul.f32 %v2070, %v187
      %v2079 = vrot.slane %v2071, 2
      %v2080 = vrot.slane %v2072, 2
      %v2081 = vsel %vm376, %v2079, %v2080
      %v2082 = vrot.slane %v2073, 2
      %v2083 = vrot.slane %v2074, 2
      %v2084 = vsel %vm376, %v2082, %v2083
      %v2087 = vadd.f32 %v2067, %v2081
      %v2088 = vadd.f32 %v2068, %v2084
      %s2089 = sld [smem:[#allocation3 + $0x56]]
      %v2090 = vstv %s2089
      %v2091 = vmul.f32 %v2090, %v184
      %v2092 = vmul.f32 %v2090, %v185
      %v2093 = vmul.f32 %v2090, %v186
      %v2094 = vmul.f32 %v2090, %v187
      %v2099 = vrot.slane %v2091, 2
      %v2100 = vrot.slane %v2092, 2
      %v2101 = vsel %vm376, %v2099, %v2100
      %v2102 = vrot.slane %v2093, 2
      %v2103 = vrot.slane %v2094, 2
      %v2104 = vsel %vm376, %v2102, %v2103
      %2105 = vrot.lane.b32.xlu0 %v2101, 127
      %v2106 = vpop.permute.xlu0 %2105
      %2107 = vrot.lane.b32.xlu0 %v2104, 127
      %v2108 = vpop.permute.xlu0 %2107
      %v2111 = vadd.f32 %v2087, %v2106
      %v2112 = vadd.f32 %v2088, %v2108
      %s2113 = sld [smem:[#allocation3 + $0x57]]
      %v2114 = vstv %s2113
      %v2115 = vmul.f32 %v2114, %v184
      %v2116 = vmul.f32 %v2114, %v185
      %v2117 = vmul.f32 %v2114, %v186
      %v2118 = vmul.f32 %v2114, %v187
      %v2123 = vrot.slane %v2115, 2
      %v2124 = vrot.slane %v2116, 2
      %v2125 = vsel %vm376, %v2123, %v2124
      %v2126 = vrot.slane %v2117, 2
      %v2127 = vrot.slane %v2118, 2
      %v2128 = vsel %vm376, %v2126, %v2127
      %2129 = vrot.lane.b32.xlu0 %v2125, 126
      %v2130 = vpop.permute.xlu0 %2129
      %2131 = vrot.lane.b32.xlu0 %v2128, 126
      %v2132 = vpop.permute.xlu0 %2131
      %v2135 = vadd.f32 %v2111, %v2130
      %v2136 = vadd.f32 %v2112, %v2132
      %s2137 = sld [smem:[#allocation3 + $0x58]]
      %v2138 = vstv %s2137
      %v2139 = vmul.f32 %v2138, %v184
      %v2140 = vmul.f32 %v2138, %v185
      %v2141 = vmul.f32 %v2138, %v186
      %v2142 = vmul.f32 %v2138, %v187
      %v2147 = vrot.slane %v2139, 2
      %v2148 = vrot.slane %v2140, 2
      %v2149 = vsel %vm376, %v2147, %v2148
      %v2150 = vrot.slane %v2141, 2
      %v2151 = vrot.slane %v2142, 2
      %v2152 = vsel %vm376, %v2150, %v2151
      %2153 = vrot.lane.b32.xlu0 %v2149, 125
      %v2154 = vpop.permute.xlu0 %2153
      %2155 = vrot.lane.b32.xlu0 %v2152, 125
      %v2156 = vpop.permute.xlu0 %2155
      %v2159 = vadd.f32 %v2135, %v2154
      %v2160 = vadd.f32 %v2136, %v2156
      %s2161 = sld [smem:[#allocation3 + $0x59]]
      %v2162 = vstv %s2161
      %v2163 = vmul.f32 %v2162, %v184
      %v2164 = vmul.f32 %v2162, %v185
      %v2165 = vmul.f32 %v2162, %v186
      %v2166 = vmul.f32 %v2162, %v187
      %v2171 = vrot.slane %v2163, 2
      %v2172 = vrot.slane %v2164, 2
      %v2173 = vsel %vm376, %v2171, %v2172
      %v2174 = vrot.slane %v2165, 2
      %v2175 = vrot.slane %v2166, 2
      %v2176 = vsel %vm376, %v2174, %v2175
      %2177 = vrot.lane.b32.xlu0 %v2173, 124
      %v2178 = vpop.permute.xlu0 %2177
      %2179 = vrot.lane.b32.xlu0 %v2176, 124
      %v2180 = vpop.permute.xlu0 %2179
      %v2183 = vadd.f32 %v2159, %v2178
      %v2184 = vadd.f32 %v2160, %v2180
      %s2185 = sld [smem:[#allocation3 + $0x5a]]
      %v2186 = vstv %s2185
      %v2187 = vmul.f32 %v2186, %v184
      %v2188 = vmul.f32 %v2186, %v185
      %v2189 = vmul.f32 %v2186, %v186
      %v2190 = vmul.f32 %v2186, %v187
      %v2195 = vrot.slane %v2187, 3
      %v2196 = vrot.slane %v2188, 3
      %v2197 = vsel %vm493, %v2195, %v2196
      %v2198 = vrot.slane %v2189, 3
      %v2199 = vrot.slane %v2190, 3
      %v2200 = vsel %vm493, %v2198, %v2199
      %v2203 = vadd.f32 %v2183, %v2197
      %v2204 = vadd.f32 %v2184, %v2200
      %s2205 = sld [smem:[#allocation3 + $0x5b]]
      %v2206 = vstv %s2205
      %v2207 = vmul.f32 %v2206, %v184
      %v2208 = vmul.f32 %v2206, %v185
      %v2209 = vmul.f32 %v2206, %v186
      %v2210 = vmul.f32 %v2206, %v187
      %v2215 = vrot.slane %v2207, 3
      %v2216 = vrot.slane %v2208, 3
      %v2217 = vsel %vm493, %v2215, %v2216
      %v2218 = vrot.slane %v2209, 3
      %v2219 = vrot.slane %v2210, 3
      %v2220 = vsel %vm493, %v2218, %v2219
      %2221 = vrot.lane.b32.xlu0 %v2217, 127
      %v2222 = vpop.permute.xlu0 %2221
      %2223 = vrot.lane.b32.xlu0 %v2220, 127
      %v2224 = vpop.permute.xlu0 %2223
      %v2227 = vadd.f32 %v2203, %v2222
      %v2228 = vadd.f32 %v2204, %v2224
      %s2229 = sld [smem:[#allocation3 + $0x5c]]
      %v2230 = vstv %s2229
      %v2231 = vmul.f32 %v2230, %v184
      %v2232 = vmul.f32 %v2230, %v185
      %v2233 = vmul.f32 %v2230, %v186
      %v2234 = vmul.f32 %v2230, %v187
      %v2239 = vrot.slane %v2231, 3
      %v2240 = vrot.slane %v2232, 3
      %v2241 = vsel %vm493, %v2239, %v2240
      %v2242 = vrot.slane %v2233, 3
      %v2243 = vrot.slane %v2234, 3
      %v2244 = vsel %vm493, %v2242, %v2243
      %2245 = vrot.lane.b32.xlu0 %v2241, 126
      %v2246 = vpop.permute.xlu0 %2245
      %2247 = vrot.lane.b32.xlu0 %v2244, 126
      %v2248 = vpop.permute.xlu0 %2247
      %v2251 = vadd.f32 %v2227, %v2246
      %v2252 = vadd.f32 %v2228, %v2248
      %s2253 = sld [smem:[#allocation3 + $0x5d]]
      %v2254 = vstv %s2253
      %v2255 = vmul.f32 %v2254, %v184
      %v2256 = vmul.f32 %v2254, %v185
      %v2257 = vmul.f32 %v2254, %v186
      %v2258 = vmul.f32 %v2254, %v187
      %v2263 = vrot.slane %v2255, 3
      %v2264 = vrot.slane %v2256, 3
      %v2265 = vsel %vm493, %v2263, %v2264
      %v2266 = vrot.slane %v2257, 3
      %v2267 = vrot.slane %v2258, 3
      %v2268 = vsel %vm493, %v2266, %v2267
      %2269 = vrot.lane.b32.xlu0 %v2265, 125
      %v2270 = vpop.permute.xlu0 %2269
      %2271 = vrot.lane.b32.xlu0 %v2268, 125
      %v2272 = vpop.permute.xlu0 %2271
      %v2275 = vadd.f32 %v2251, %v2270
      %v2276 = vadd.f32 %v2252, %v2272
      %s2277 = sld [smem:[#allocation3 + $0x5e]]
      %v2278 = vstv %s2277
      %v2279 = vmul.f32 %v2278, %v184
      %v2280 = vmul.f32 %v2278, %v185
      %v2281 = vmul.f32 %v2278, %v186
      %v2282 = vmul.f32 %v2278, %v187
      %v2287 = vrot.slane %v2279, 3
      %v2288 = vrot.slane %v2280, 3
      %v2289 = vsel %vm493, %v2287, %v2288
      %v2290 = vrot.slane %v2281, 3
      %v2291 = vrot.slane %v2282, 3
      %v2292 = vsel %vm493, %v2290, %v2291
      %2293 = vrot.lane.b32.xlu0 %v2289, 124
      %v2294 = vpop.permute.xlu0 %2293
      %2295 = vrot.lane.b32.xlu0 %v2292, 124
      %v2296 = vpop.permute.xlu0 %2295
      %v2299 = vadd.f32 %v2275, %v2294
      %v2300 = vadd.f32 %v2276, %v2296
      %s2301 = sld [smem:[#allocation3 + $0x5f]]
      %v2302 = vstv %s2301
      %v2303 = vmul.f32 %v2302, %v184
      %v2304 = vmul.f32 %v2302, %v185
      %v2305 = vmul.f32 %v2302, %v186
      %v2306 = vmul.f32 %v2302, %v187
      %v2311 = vrot.slane %v2303, 4
      %v2312 = vrot.slane %v2304, 4
      %v2313 = vsel %vm610, %v2311, %v2312
      %v2314 = vrot.slane %v2305, 4
      %v2315 = vrot.slane %v2306, 4
      %v2316 = vsel %vm610, %v2314, %v2315
      %v2319 = vadd.f32 %v2299, %v2313
      %v2320 = vadd.f32 %v2300, %v2316
      %s2321 = sld [smem:[#allocation3 + $0x60]]
      %v2322 = vstv %s2321
      %v2323 = vmul.f32 %v2322, %v184
      %v2324 = vmul.f32 %v2322, %v185
      %v2325 = vmul.f32 %v2322, %v186
      %v2326 = vmul.f32 %v2322, %v187
      %v2331 = vrot.slane %v2323, 4
      %v2332 = vrot.slane %v2324, 4
      %v2333 = vsel %vm610, %v2331, %v2332
      %v2334 = vrot.slane %v2325, 4
      %v2335 = vrot.slane %v2326, 4
      %v2336 = vsel %vm610, %v2334, %v2335
      %2337 = vrot.lane.b32.xlu0 %v2333, 127
      %v2338 = vpop.permute.xlu0 %2337
      %2339 = vrot.lane.b32.xlu0 %v2336, 127
      %v2340 = vpop.permute.xlu0 %2339
      %v2343 = vadd.f32 %v2319, %v2338
      %v2344 = vadd.f32 %v2320, %v2340
      %s2345 = sld [smem:[#allocation3 + $0x61]]
      %v2346 = vstv %s2345
      %v2347 = vmul.f32 %v2346, %v184
      %v2348 = vmul.f32 %v2346, %v185
      %v2349 = vmul.f32 %v2346, %v186
      %v2350 = vmul.f32 %v2346, %v187
      %v2355 = vrot.slane %v2347, 4
      %v2356 = vrot.slane %v2348, 4
      %v2357 = vsel %vm610, %v2355, %v2356
      %v2358 = vrot.slane %v2349, 4
      %v2359 = vrot.slane %v2350, 4
      %v2360 = vsel %vm610, %v2358, %v2359
      %2361 = vrot.lane.b32.xlu0 %v2357, 126
      %v2362 = vpop.permute.xlu0 %2361
      %2363 = vrot.lane.b32.xlu0 %v2360, 126
      %v2364 = vpop.permute.xlu0 %2363
      %v2367 = vadd.f32 %v2343, %v2362
      %v2368 = vadd.f32 %v2344, %v2364
      %s2369 = sld [smem:[#allocation3 + $0x62]]
      %v2370 = vstv %s2369
      %v2371 = vmul.f32 %v2370, %v184
      %v2372 = vmul.f32 %v2370, %v185
      %v2373 = vmul.f32 %v2370, %v186
      %v2374 = vmul.f32 %v2370, %v187
      %v2379 = vrot.slane %v2371, 4
      %v2380 = vrot.slane %v2372, 4
      %v2381 = vsel %vm610, %v2379, %v2380
      %v2382 = vrot.slane %v2373, 4
      %v2383 = vrot.slane %v2374, 4
      %v2384 = vsel %vm610, %v2382, %v2383
      %2385 = vrot.lane.b32.xlu0 %v2381, 125
      %v2386 = vpop.permute.xlu0 %2385
      %2387 = vrot.lane.b32.xlu0 %v2384, 125
      %v2388 = vpop.permute.xlu0 %2387
      %v2391 = vadd.f32 %v2367, %v2386
      %v2392 = vadd.f32 %v2368, %v2388
      %s2393 = sld [smem:[#allocation3 + $0x63]]
      %v2394 = vstv %s2393
      %v2395 = vmul.f32 %v2394, %v184
      %v2396 = vmul.f32 %v2394, %v185
      %v2397 = vmul.f32 %v2394, %v186
      %v2398 = vmul.f32 %v2394, %v187
      %v2403 = vrot.slane %v2395, 4
      %v2404 = vrot.slane %v2396, 4
      %v2405 = vsel %vm610, %v2403, %v2404
      %v2406 = vrot.slane %v2397, 4
      %v2407 = vrot.slane %v2398, 4
      %v2408 = vsel %vm610, %v2406, %v2407
      %2409 = vrot.lane.b32.xlu0 %v2405, 124
      %v2410 = vpop.permute.xlu0 %2409
      %2411 = vrot.lane.b32.xlu0 %v2408, 124
      %v2412 = vpop.permute.xlu0 %2411
      %v2415 = vadd.f32 %v2391, %v2410
      %v2416 = vadd.f32 %v2392, %v2412
      %2419 = vrot.lane.b32.xlu0 %v2415, 127
      %v2420 = vpop.permute.xlu0 %2419
      %2421 = vrot.lane.b32.xlu0 %v2416, 127
      %v2422 = vpop.permute.xlu0 %2421
      %v2425 = vmax.f32 %v2415, %v2420
      %v2426 = vmax.f32 %v2416, %v2422
      %v2429 = vrot.slane %v2425, 1
      %v2430 = vrot.slane %v2426, 1
      %v2433 = vmax.f32 %v2425, %v2429
      %v2434 = vmax.f32 %v2426, %v2430
      %v2435 = vmul.f32 %v2433, %v739
      %v2436 = vmul.f32 %v2434, %v739
      %v2437 = vsel %vm743, %v2435, 0.0
      %2438 = vadd.xlane.f32.xlu0 %v2437
      %v2439 = vpop.xlane.xlu0 %2438
      %v2440 = vsel %vm743, %v2436, 0.0
      %2441 = vadd.xlane.f32.xlu0 %v2440
      %v2442 = vpop.xlane.xlu0 %2441
      %2445 = vrot.lane.b32.xlu0 %v2435, 64
      %v2446 = vpop.permute.xlu0 %2445
      %2447 = vrot.lane.b32.xlu0 %v2436, 64
      %v2448 = vpop.permute.xlu0 %2447
      %v2451 = vsel %vm758, %v2446, 0.0
      %2452 = vadd.xlane.f32.xlu0 %v2451
      %v2453 = vpop.xlane.xlu0 %2452
      %v2454 = vsel %vm758, %v2448, 0.0
      %2455 = vadd.xlane.f32.xlu0 %v2454
      %v2456 = vpop.xlane.xlu0 %2455
      %s2457 = sld [smem:[#allocation3 + $0x64]]
      %v2458 = vstv %s2457
      %v2459 = vmul.f32 %v2458, %v184
      %v2460 = vmul.f32 %v2458, %v186
      %s2461 = sld [smem:[#allocation3 + $0x65]]
      %v2462 = vstv %s2461
      %v2463 = vmul.f32 %v2462, %v184
      %v2464 = vmul.f32 %v2462, %v186
      %2467 = vrot.lane.b32.xlu0 %v2463, 127
      %v2468 = vpop.permute.xlu0 %2467
      %2469 = vrot.lane.b32.xlu0 %v2464, 127
      %v2470 = vpop.permute.xlu0 %2469
      %v2473 = vadd.f32 %v2459, %v2468
      %v2474 = vadd.f32 %v2460, %v2470
      %s2475 = sld [smem:[#allocation3 + $0x66]]
      %v2476 = vstv %s2475
      %v2477 = vmul.f32 %v2476, %v184
      %v2478 = vmul.f32 %v2476, %v186
      %2481 = vrot.lane.b32.xlu0 %v2477, 126
      %v2482 = vpop.permute.xlu0 %2481
      %2483 = vrot.lane.b32.xlu0 %v2478, 126
      %v2484 = vpop.permute.xlu0 %2483
      %v2487 = vadd.f32 %v2473, %v2482
      %v2488 = vadd.f32 %v2474, %v2484
      %s2489 = sld [smem:[#allocation3 + $0x67]]
      %v2490 = vstv %s2489
      %v2491 = vmul.f32 %v2490, %v184
      %v2492 = vmul.f32 %v2490, %v186
      %2495 = vrot.lane.b32.xlu0 %v2491, 125
      %v2496 = vpop.permute.xlu0 %2495
      %2497 = vrot.lane.b32.xlu0 %v2492, 125
      %v2498 = vpop.permute.xlu0 %2497
      %v2501 = vadd.f32 %v2487, %v2496
      %v2502 = vadd.f32 %v2488, %v2498
      %s2503 = sld [smem:[#allocation3 + $0x68]]
      %v2504 = vstv %s2503
      %v2505 = vmul.f32 %v2504, %v184
      %v2506 = vmul.f32 %v2504, %v186
      %2509 = vrot.lane.b32.xlu0 %v2505, 124
      %v2510 = vpop.permute.xlu0 %2509
      %2511 = vrot.lane.b32.xlu0 %v2506, 124
      %v2512 = vpop.permute.xlu0 %2511
      %v2515 = vadd.f32 %v2501, %v2510
      %v2516 = vadd.f32 %v2502, %v2512
      %s2517 = sld [smem:[#allocation3 + $0x69]]
      %v2518 = vstv %s2517
      %v2519 = vmul.f32 %v2518, %v184
      %v2520 = vmul.f32 %v2518, %v185
      %v2521 = vmul.f32 %v2518, %v186
      %v2522 = vmul.f32 %v2518, %v187
      %v2527 = vrot.slane %v2519, 1
      %v2528 = vrot.slane %v2520, 1
      %v2529 = vsel %vm259, %v2527, %v2528
      %v2530 = vrot.slane %v2521, 1
      %v2531 = vrot.slane %v2522, 1
      %v2532 = vsel %vm259, %v2530, %v2531
      %v2535 = vadd.f32 %v2515, %v2529
      %v2536 = vadd.f32 %v2516, %v2532
      %s2537 = sld [smem:[#allocation3 + $0x6a]]
      %v2538 = vstv %s2537
      %v2539 = vmul.f32 %v2538, %v184
      %v2540 = vmul.f32 %v2538, %v185
      %v2541 = vmul.f32 %v2538, %v186
      %v2542 = vmul.f32 %v2538, %v187
      %v2547 = vrot.slane %v2539, 1
      %v2548 = vrot.slane %v2540, 1
      %v2549 = vsel %vm259, %v2547, %v2548
      %v2550 = vrot.slane %v2541, 1
      %v2551 = vrot.slane %v2542, 1
      %v2552 = vsel %vm259, %v2550, %v2551
      %2553 = vrot.lane.b32.xlu0 %v2549, 127
      %v2554 = vpop.permute.xlu0 %2553
      %2555 = vrot.lane.b32.xlu0 %v2552, 127
      %v2556 = vpop.permute.xlu0 %2555
      %v2559 = vadd.f32 %v2535, %v2554
      %v2560 = vadd.f32 %v2536, %v2556
      %s2561 = sld [smem:[#allocation3 + $0x6b]]
      %v2562 = vstv %s2561
      %v2563 = vmul.f32 %v2562, %v184
      %v2564 = vmul.f32 %v2562, %v185
      %v2565 = vmul.f32 %v2562, %v186
      %v2566 = vmul.f32 %v2562, %v187
      %v2571 = vrot.slane %v2563, 1
      %v2572 = vrot.slane %v2564, 1
      %v2573 = vsel %vm259, %v2571, %v2572
      %v2574 = vrot.slane %v2565, 1
      %v2575 = vrot.slane %v2566, 1
      %v2576 = vsel %vm259, %v2574, %v2575
      %2577 = vrot.lane.b32.xlu0 %v2573, 126
      %v2578 = vpop.permute.xlu0 %2577
      %2579 = vrot.lane.b32.xlu0 %v2576, 126
      %v2580 = vpop.permute.xlu0 %2579
      %v2583 = vadd.f32 %v2559, %v2578
      %v2584 = vadd.f32 %v2560, %v2580
      %s2585 = sld [smem:[#allocation3 + $0x6c]]
      %v2586 = vstv %s2585
      %v2587 = vmul.f32 %v2586, %v184
      %v2588 = vmul.f32 %v2586, %v185
      %v2589 = vmul.f32 %v2586, %v186
      %v2590 = vmul.f32 %v2586, %v187
      %v2595 = vrot.slane %v2587, 1
      %v2596 = vrot.slane %v2588, 1
      %v2597 = vsel %vm259, %v2595, %v2596
      %v2598 = vrot.slane %v2589, 1
      %v2599 = vrot.slane %v2590, 1
      %v2600 = vsel %vm259, %v2598, %v2599
      %2601 = vrot.lane.b32.xlu0 %v2597, 125
      %v2602 = vpop.permute.xlu0 %2601
      %2603 = vrot.lane.b32.xlu0 %v2600, 125
      %v2604 = vpop.permute.xlu0 %2603
      %v2607 = vadd.f32 %v2583, %v2602
      %v2608 = vadd.f32 %v2584, %v2604
      %s2609 = sld [smem:[#allocation3 + $0x6d]]
      %v2610 = vstv %s2609
      %v2611 = vmul.f32 %v2610, %v184
      %v2612 = vmul.f32 %v2610, %v185
      %v2613 = vmul.f32 %v2610, %v186
      %v2614 = vmul.f32 %v2610, %v187
      %v2619 = vrot.slane %v2611, 1
      %v2620 = vrot.slane %v2612, 1
      %v2621 = vsel %vm259, %v2619, %v2620
      %v2622 = vrot.slane %v2613, 1
      %v2623 = vrot.slane %v2614, 1
      %v2624 = vsel %vm259, %v2622, %v2623
      %2625 = vrot.lane.b32.xlu0 %v2621, 124
      %v2626 = vpop.permute.xlu0 %2625
      %2627 = vrot.lane.b32.xlu0 %v2624, 124
      %v2628 = vpop.permute.xlu0 %2627
      %v2631 = vadd.f32 %v2607, %v2626
      %v2632 = vadd.f32 %v2608, %v2628
      %s2633 = sld [smem:[#allocation3 + $0x6e]]
      %v2634 = vstv %s2633
      %v2635 = vmul.f32 %v2634, %v184
      %v2636 = vmul.f32 %v2634, %v185
      %v2637 = vmul.f32 %v2634, %v186
      %v2638 = vmul.f32 %v2634, %v187
      %v2643 = vrot.slane %v2635, 2
      %v2644 = vrot.slane %v2636, 2
      %v2645 = vsel %vm376, %v2643, %v2644
      %v2646 = vrot.slane %v2637, 2
      %v2647 = vrot.slane %v2638, 2
      %v2648 = vsel %vm376, %v2646, %v2647
      %v2651 = vadd.f32 %v2631, %v2645
      %v2652 = vadd.f32 %v2632, %v2648
      %s2653 = sld [smem:[#allocation3 + $0x6f]]
      %v2654 = vstv %s2653
      %v2655 = vmul.f32 %v2654, %v184
      %v2656 = vmul.f32 %v2654, %v185
      %v2657 = vmul.f32 %v2654, %v186
      %v2658 = vmul.f32 %v2654, %v187
      %v2663 = vrot.slane %v2655, 2
      %v2664 = vrot.slane %v2656, 2
      %v2665 = vsel %vm376, %v2663, %v2664
      %v2666 = vrot.slane %v2657, 2
      %v2667 = vrot.slane %v2658, 2
      %v2668 = vsel %vm376, %v2666, %v2667
      %2669 = vrot.lane.b32.xlu0 %v2665, 127
      %v2670 = vpop.permute.xlu0 %2669
      %2671 = vrot.lane.b32.xlu0 %v2668, 127
      %v2672 = vpop.permute.xlu0 %2671
      %v2675 = vadd.f32 %v2651, %v2670
      %v2676 = vadd.f32 %v2652, %v2672
      %s2677 = sld [smem:[#allocation3 + $0x70]]
      %v2678 = vstv %s2677
      %v2679 = vmul.f32 %v2678, %v184
      %v2680 = vmul.f32 %v2678, %v185
      %v2681 = vmul.f32 %v2678, %v186
      %v2682 = vmul.f32 %v2678, %v187
      %v2687 = vrot.slane %v2679, 2
      %v2688 = vrot.slane %v2680, 2
      %v2689 = vsel %vm376, %v2687, %v2688
      %v2690 = vrot.slane %v2681, 2
      %v2691 = vrot.slane %v2682, 2
      %v2692 = vsel %vm376, %v2690, %v2691
      %2693 = vrot.lane.b32.xlu0 %v2689, 126
      %v2694 = vpop.permute.xlu0 %2693
      %2695 = vrot.lane.b32.xlu0 %v2692, 126
      %v2696 = vpop.permute.xlu0 %2695
      %v2699 = vadd.f32 %v2675, %v2694
      %v2700 = vadd.f32 %v2676, %v2696
      %s2701 = sld [smem:[#allocation3 + $0x71]]
      %v2702 = vstv %s2701
      %v2703 = vmul.f32 %v2702, %v184
      %v2704 = vmul.f32 %v2702, %v185
      %v2705 = vmul.f32 %v2702, %v186
      %v2706 = vmul.f32 %v2702, %v187
      %v2711 = vrot.slane %v2703, 2
      %v2712 = vrot.slane %v2704, 2
      %v2713 = vsel %vm376, %v2711, %v2712
      %v2714 = vrot.slane %v2705, 2
      %v2715 = vrot.slane %v2706, 2
      %v2716 = vsel %vm376, %v2714, %v2715
      %2717 = vrot.lane.b32.xlu0 %v2713, 125
      %v2718 = vpop.permute.xlu0 %2717
      %2719 = vrot.lane.b32.xlu0 %v2716, 125
      %v2720 = vpop.permute.xlu0 %2719
      %v2723 = vadd.f32 %v2699, %v2718
      %v2724 = vadd.f32 %v2700, %v2720
      %s2725 = sld [smem:[#allocation3 + $0x72]]
      %v2726 = vstv %s2725
      %v2727 = vmul.f32 %v2726, %v184
      %v2728 = vmul.f32 %v2726, %v185
      %v2729 = vmul.f32 %v2726, %v186
      %v2730 = vmul.f32 %v2726, %v187
      %v2735 = vrot.slane %v2727, 2
      %v2736 = vrot.slane %v2728, 2
      %v2737 = vsel %vm376, %v2735, %v2736
      %v2738 = vrot.slane %v2729, 2
      %v2739 = vrot.slane %v2730, 2
      %v2740 = vsel %vm376, %v2738, %v2739
      %2741 = vrot.lane.b32.xlu0 %v2737, 124
      %v2742 = vpop.permute.xlu0 %2741
      %2743 = vrot.lane.b32.xlu0 %v2740, 124
      %v2744 = vpop.permute.xlu0 %2743
      %v2747 = vadd.f32 %v2723, %v2742
      %v2748 = vadd.f32 %v2724, %v2744
      %s2749 = sld [smem:[#allocation3 + $0x73]]
      %v2750 = vstv %s2749
      %v2751 = vmul.f32 %v2750, %v184
      %v2752 = vmul.f32 %v2750, %v185
      %v2753 = vmul.f32 %v2750, %v186
      %v2754 = vmul.f32 %v2750, %v187
      %v2759 = vrot.slane %v2751, 3
      %v2760 = vrot.slane %v2752, 3
      %v2761 = vsel %vm493, %v2759, %v2760
      %v2762 = vrot.slane %v2753, 3
      %v2763 = vrot.slane %v2754, 3
      %v2764 = vsel %vm493, %v2762, %v2763
      %v2767 = vadd.f32 %v2747, %v2761
      %v2768 = vadd.f32 %v2748, %v2764
      %s2769 = sld [smem:[#allocation3 + $0x74]]
      %v2770 = vstv %s2769
      %v2771 = vmul.f32 %v2770, %v184
      %v2772 = vmul.f32 %v2770, %v185
      %v2773 = vmul.f32 %v2770, %v186
      %v2774 = vmul.f32 %v2770, %v187
      %v2779 = vrot.slane %v2771, 3
      %v2780 = vrot.slane %v2772, 3
      %v2781 = vsel %vm493, %v2779, %v2780
      %v2782 = vrot.slane %v2773, 3
      %v2783 = vrot.slane %v2774, 3
      %v2784 = vsel %vm493, %v2782, %v2783
      %2785 = vrot.lane.b32.xlu0 %v2781, 127
      %v2786 = vpop.permute.xlu0 %2785
      %2787 = vrot.lane.b32.xlu0 %v2784, 127
      %v2788 = vpop.permute.xlu0 %2787
      %v2791 = vadd.f32 %v2767, %v2786
      %v2792 = vadd.f32 %v2768, %v2788
      %s2793 = sld [smem:[#allocation3 + $0x75]]
      %v2794 = vstv %s2793
      %v2795 = vmul.f32 %v2794, %v184
      %v2796 = vmul.f32 %v2794, %v185
      %v2797 = vmul.f32 %v2794, %v186
      %v2798 = vmul.f32 %v2794, %v187
      %v2803 = vrot.slane %v2795, 3
      %v2804 = vrot.slane %v2796, 3
      %v2805 = vsel %vm493, %v2803, %v2804
      %v2806 = vrot.slane %v2797, 3
      %v2807 = vrot.slane %v2798, 3
      %v2808 = vsel %vm493, %v2806, %v2807
      %2809 = vrot.lane.b32.xlu0 %v2805, 126
      %v2810 = vpop.permute.xlu0 %2809
      %2811 = vrot.lane.b32.xlu0 %v2808, 126
      %v2812 = vpop.permute.xlu0 %2811
      %v2815 = vadd.f32 %v2791, %v2810
      %v2816 = vadd.f32 %v2792, %v2812
      %s2817 = sld [smem:[#allocation3 + $0x76]]
      %v2818 = vstv %s2817
      %v2819 = vmul.f32 %v2818, %v184
      %v2820 = vmul.f32 %v2818, %v185
      %v2821 = vmul.f32 %v2818, %v186
      %v2822 = vmul.f32 %v2818, %v187
      %v2827 = vrot.slane %v2819, 3
      %v2828 = vrot.slane %v2820, 3
      %v2829 = vsel %vm493, %v2827, %v2828
      %v2830 = vrot.slane %v2821, 3
      %v2831 = vrot.slane %v2822, 3
      %v2832 = vsel %vm493, %v2830, %v2831
      %2833 = vrot.lane.b32.xlu0 %v2829, 125
      %v2834 = vpop.permute.xlu0 %2833
      %2835 = vrot.lane.b32.xlu0 %v2832, 125
      %v2836 = vpop.permute.xlu0 %2835
      %v2839 = vadd.f32 %v2815, %v2834
      %v2840 = vadd.f32 %v2816, %v2836
      %s2841 = sld [smem:[#allocation3 + $0x77]]
      %v2842 = vstv %s2841
      %v2843 = vmul.f32 %v2842, %v184
      %v2844 = vmul.f32 %v2842, %v185
      %v2845 = vmul.f32 %v2842, %v186
      %v2846 = vmul.f32 %v2842, %v187
      %v2851 = vrot.slane %v2843, 3
      %v2852 = vrot.slane %v2844, 3
      %v2853 = vsel %vm493, %v2851, %v2852
      %v2854 = vrot.slane %v2845, 3
      %v2855 = vrot.slane %v2846, 3
      %v2856 = vsel %vm493, %v2854, %v2855
      %2857 = vrot.lane.b32.xlu0 %v2853, 124
      %v2858 = vpop.permute.xlu0 %2857
      %2859 = vrot.lane.b32.xlu0 %v2856, 124
      %v2860 = vpop.permute.xlu0 %2859
      %v2863 = vadd.f32 %v2839, %v2858
      %v2864 = vadd.f32 %v2840, %v2860
      %s2865 = sld [smem:[#allocation3 + $0x78]]
      %v2866 = vstv %s2865
      %v2867 = vmul.f32 %v2866, %v184
      %v2868 = vmul.f32 %v2866, %v185
      %v2869 = vmul.f32 %v2866, %v186
      %v2870 = vmul.f32 %v2866, %v187
      %v2875 = vrot.slane %v2867, 4
      %v2876 = vrot.slane %v2868, 4
      %v2877 = vsel %vm610, %v2875, %v2876
      %v2878 = vrot.slane %v2869, 4
      %v2879 = vrot.slane %v2870, 4
      %v2880 = vsel %vm610, %v2878, %v2879
      %v2883 = vadd.f32 %v2863, %v2877
      %v2884 = vadd.f32 %v2864, %v2880
      %s2885 = sld [smem:[#allocation3 + $0x79]]
      %v2886 = vstv %s2885
      %v2887 = vmul.f32 %v2886, %v184
      %v2888 = vmul.f32 %v2886, %v185
      %v2889 = vmul.f32 %v2886, %v186
      %v2890 = vmul.f32 %v2886, %v187
      %v2895 = vrot.slane %v2887, 4
      %v2896 = vrot.slane %v2888, 4
      %v2897 = vsel %vm610, %v2895, %v2896
      %v2898 = vrot.slane %v2889, 4
      %v2899 = vrot.slane %v2890, 4
      %v2900 = vsel %vm610, %v2898, %v2899
      %2901 = vrot.lane.b32.xlu0 %v2897, 127
      %v2902 = vpop.permute.xlu0 %2901
      %2903 = vrot.lane.b32.xlu0 %v2900, 127
      %v2904 = vpop.permute.xlu0 %2903
      %v2907 = vadd.f32 %v2883, %v2902
      %v2908 = vadd.f32 %v2884, %v2904
      %s2909 = sld [smem:[#allocation3 + $0x7a]]
      %v2910 = vstv %s2909
      %v2911 = vmul.f32 %v2910, %v184
      %v2912 = vmul.f32 %v2910, %v185
      %v2913 = vmul.f32 %v2910, %v186
      %v2914 = vmul.f32 %v2910, %v187
      %v2919 = vrot.slane %v2911, 4
      %v2920 = vrot.slane %v2912, 4
      %v2921 = vsel %vm610, %v2919, %v2920
      %v2922 = vrot.slane %v2913, 4
      %v2923 = vrot.slane %v2914, 4
      %v2924 = vsel %vm610, %v2922, %v2923
      %2925 = vrot.lane.b32.xlu0 %v2921, 126
      %v2926 = vpop.permute.xlu0 %2925
      %2927 = vrot.lane.b32.xlu0 %v2924, 126
      %v2928 = vpop.permute.xlu0 %2927
      %v2931 = vadd.f32 %v2907, %v2926
      %v2932 = vadd.f32 %v2908, %v2928
      %s2933 = sld [smem:[#allocation3 + $0x7b]]
      %v2934 = vstv %s2933
      %v2935 = vmul.f32 %v2934, %v184
      %v2936 = vmul.f32 %v2934, %v185
      %v2937 = vmul.f32 %v2934, %v186
      %v2938 = vmul.f32 %v2934, %v187
      %v2943 = vrot.slane %v2935, 4
      %v2944 = vrot.slane %v2936, 4
      %v2945 = vsel %vm610, %v2943, %v2944
      %v2946 = vrot.slane %v2937, 4
      %v2947 = vrot.slane %v2938, 4
      %v2948 = vsel %vm610, %v2946, %v2947
      %2949 = vrot.lane.b32.xlu0 %v2945, 125
      %v2950 = vpop.permute.xlu0 %2949
      %2951 = vrot.lane.b32.xlu0 %v2948, 125
      %v2952 = vpop.permute.xlu0 %2951
      %v2955 = vadd.f32 %v2931, %v2950
      %v2956 = vadd.f32 %v2932, %v2952
      %s2957 = sld [smem:[#allocation3 + $0x7c]]
      %v2958 = vstv %s2957
      %v2959 = vmul.f32 %v2958, %v184
      %v2960 = vmul.f32 %v2958, %v185
      %v2961 = vmul.f32 %v2958, %v186
      %v2962 = vmul.f32 %v2958, %v187
      %v2967 = vrot.slane %v2959, 4
      %v2968 = vrot.slane %v2960, 4
      %v2969 = vsel %vm610, %v2967, %v2968
      %v2970 = vrot.slane %v2961, 4
      %v2971 = vrot.slane %v2962, 4
      %v2972 = vsel %vm610, %v2970, %v2971
      %2973 = vrot.lane.b32.xlu0 %v2969, 124
      %v2974 = vpop.permute.xlu0 %2973
      %2975 = vrot.lane.b32.xlu0 %v2972, 124
      %v2976 = vpop.permute.xlu0 %2975
      %v2979 = vadd.f32 %v2955, %v2974
      %v2980 = vadd.f32 %v2956, %v2976
      %2983 = vrot.lane.b32.xlu0 %v2979, 127
      %v2984 = vpop.permute.xlu0 %2983
      %2985 = vrot.lane.b32.xlu0 %v2980, 127
      %v2986 = vpop.permute.xlu0 %2985
      %v2989 = vmax.f32 %v2979, %v2984
      %v2990 = vmax.f32 %v2980, %v2986
      %v2993 = vrot.slane %v2989, 1
      %v2994 = vrot.slane %v2990, 1
      %v2997 = vmax.f32 %v2989, %v2993
      %v2998 = vmax.f32 %v2990, %v2994
      %v2999 = vmul.f32 %v2997, %v739
      %v3000 = vmul.f32 %v2998, %v739
      %v3001 = vsel %vm743, %v2999, 0.0
      %3002 = vadd.xlane.f32.xlu0 %v3001
      %v3003 = vpop.xlane.xlu0 %3002
      %v3004 = vsel %vm743, %v3000, 0.0
      %3005 = vadd.xlane.f32.xlu0 %v3004
      %v3006 = vpop.xlane.xlu0 %3005
      %3009 = vrot.lane.b32.xlu0 %v2999, 64
      %v3010 = vpop.permute.xlu0 %3009
      %3011 = vrot.lane.b32.xlu0 %v3000, 64
      %v3012 = vpop.permute.xlu0 %3011
      %v3015 = vsel %vm758, %v3010, 0.0
      %3016 = vadd.xlane.f32.xlu0 %v3015
      %v3017 = vpop.xlane.xlu0 %3016
      %v3018 = vsel %vm758, %v3012, 0.0
      %3019 = vadd.xlane.f32.xlu0 %v3018
      %v3020 = vpop.xlane.xlu0 %3019
      %s3021 = sld [smem:[#allocation3 + $0x7d]]
      %v3022 = vstv %s3021
      %v3023 = vmul.f32 %v3022, %v184
      %v3024 = vmul.f32 %v3022, %v186
      %s3025 = sld [smem:[#allocation3 + $0x7e]]
      %v3026 = vstv %s3025
      %v3027 = vmul.f32 %v3026, %v184
      %v3028 = vmul.f32 %v3026, %v186
      %3031 = vrot.lane.b32.xlu0 %v3027, 127
      %v3032 = vpop.permute.xlu0 %3031
      %3033 = vrot.lane.b32.xlu0 %v3028, 127
      %v3034 = vpop.permute.xlu0 %3033
      %v3037 = vadd.f32 %v3023, %v3032
      %v3038 = vadd.f32 %v3024, %v3034
      %s3039 = sld [smem:[#allocation3 + $0x7f]]
      %v3040 = vstv %s3039
      %v3041 = vmul.f32 %v3040, %v184
      %v3042 = vmul.f32 %v3040, %v186
      %3045 = vrot.lane.b32.xlu0 %v3041, 126
      %v3046 = vpop.permute.xlu0 %3045
      %3047 = vrot.lane.b32.xlu0 %v3042, 126
      %v3048 = vpop.permute.xlu0 %3047
      %v3051 = vadd.f32 %v3037, %v3046
      %v3052 = vadd.f32 %v3038, %v3048
      %s3053 = sld [smem:[#allocation3 + $0x80]]
      %v3054 = vstv %s3053
      %v3055 = vmul.f32 %v3054, %v184
      %v3056 = vmul.f32 %v3054, %v186
      %3059 = vrot.lane.b32.xlu0 %v3055, 125
      %v3060 = vpop.permute.xlu0 %3059
      %3061 = vrot.lane.b32.xlu0 %v3056, 125
      %v3062 = vpop.permute.xlu0 %3061
      %v3065 = vadd.f32 %v3051, %v3060
      %v3066 = vadd.f32 %v3052, %v3062
      %s3067 = sld [smem:[#allocation3 + $0x81]]
      %v3068 = vstv %s3067
      %v3069 = vmul.f32 %v3068, %v184
      %v3070 = vmul.f32 %v3068, %v186
      %3073 = vrot.lane.b32.xlu0 %v3069, 124
      %v3074 = vpop.permute.xlu0 %3073
      %3075 = vrot.lane.b32.xlu0 %v3070, 124
      %v3076 = vpop.permute.xlu0 %3075
      %v3079 = vadd.f32 %v3065, %v3074
      %v3080 = vadd.f32 %v3066, %v3076
      %s3081 = sld [smem:[#allocation3 + $0x82]]
      %v3082 = vstv %s3081
      %v3083 = vmul.f32 %v3082, %v184
      %v3084 = vmul.f32 %v3082, %v185
      %v3085 = vmul.f32 %v3082, %v186
      %v3086 = vmul.f32 %v3082, %v187
      %v3091 = vrot.slane %v3083, 1
      %v3092 = vrot.slane %v3084, 1
      %v3093 = vsel %vm259, %v3091, %v3092
      %v3094 = vrot.slane %v3085, 1
      %v3095 = vrot.slane %v3086, 1
      %v3096 = vsel %vm259, %v3094, %v3095
      %v3099 = vadd.f32 %v3079, %v3093
      %v3100 = vadd.f32 %v3080, %v3096
      %s3101 = sld [smem:[#allocation3 + $0x83]]
      %v3102 = vstv %s3101
      %v3103 = vmul.f32 %v3102, %v184
      %v3104 = vmul.f32 %v3102, %v185
      %v3105 = vmul.f32 %v3102, %v186
      %v3106 = vmul.f32 %v3102, %v187
      %v3111 = vrot.slane %v3103, 1
      %v3112 = vrot.slane %v3104, 1
      %v3113 = vsel %vm259, %v3111, %v3112
      %v3114 = vrot.slane %v3105, 1
      %v3115 = vrot.slane %v3106, 1
      %v3116 = vsel %vm259, %v3114, %v3115
      %3117 = vrot.lane.b32.xlu0 %v3113, 127
      %v3118 = vpop.permute.xlu0 %3117
      %3119 = vrot.lane.b32.xlu0 %v3116, 127
      %v3120 = vpop.permute.xlu0 %3119
      %v3123 = vadd.f32 %v3099, %v3118
      %v3124 = vadd.f32 %v3100, %v3120
      %s3125 = sld [smem:[#allocation3 + $0x84]]
      %v3126 = vstv %s3125
      %v3127 = vmul.f32 %v3126, %v184
      %v3128 = vmul.f32 %v3126, %v185
      %v3129 = vmul.f32 %v3126, %v186
      %v3130 = vmul.f32 %v3126, %v187
      %v3135 = vrot.slane %v3127, 1
      %v3136 = vrot.slane %v3128, 1
      %v3137 = vsel %vm259, %v3135, %v3136
      %v3138 = vrot.slane %v3129, 1
      %v3139 = vrot.slane %v3130, 1
      %v3140 = vsel %vm259, %v3138, %v3139
      %3141 = vrot.lane.b32.xlu0 %v3137, 126
      %v3142 = vpop.permute.xlu0 %3141
      %3143 = vrot.lane.b32.xlu0 %v3140, 126
      %v3144 = vpop.permute.xlu0 %3143
      %v3147 = vadd.f32 %v3123, %v3142
      %v3148 = vadd.f32 %v3124, %v3144
      %s3149 = sld [smem:[#allocation3 + $0x85]]
      %v3150 = vstv %s3149
      %v3151 = vmul.f32 %v3150, %v184
      %v3152 = vmul.f32 %v3150, %v185
      %v3153 = vmul.f32 %v3150, %v186
      %v3154 = vmul.f32 %v3150, %v187
      %v3159 = vrot.slane %v3151, 1
      %v3160 = vrot.slane %v3152, 1
      %v3161 = vsel %vm259, %v3159, %v3160
      %v3162 = vrot.slane %v3153, 1
      %v3163 = vrot.slane %v3154, 1
      %v3164 = vsel %vm259, %v3162, %v3163
      %3165 = vrot.lane.b32.xlu0 %v3161, 125
      %v3166 = vpop.permute.xlu0 %3165
      %3167 = vrot.lane.b32.xlu0 %v3164, 125
      %v3168 = vpop.permute.xlu0 %3167
      %v3171 = vadd.f32 %v3147, %v3166
      %v3172 = vadd.f32 %v3148, %v3168
      %s3173 = sld [smem:[#allocation3 + $0x86]]
      %v3174 = vstv %s3173
      %v3175 = vmul.f32 %v3174, %v184
      %v3176 = vmul.f32 %v3174, %v185
      %v3177 = vmul.f32 %v3174, %v186
      %v3178 = vmul.f32 %v3174, %v187
      %v3183 = vrot.slane %v3175, 1
      %v3184 = vrot.slane %v3176, 1
      %v3185 = vsel %vm259, %v3183, %v3184
      %v3186 = vrot.slane %v3177, 1
      %v3187 = vrot.slane %v3178, 1
      %v3188 = vsel %vm259, %v3186, %v3187
      %3189 = vrot.lane.b32.xlu0 %v3185, 124
      %v3190 = vpop.permute.xlu0 %3189
      %3191 = vrot.lane.b32.xlu0 %v3188, 124
      %v3192 = vpop.permute.xlu0 %3191
      %v3195 = vadd.f32 %v3171, %v3190
      %v3196 = vadd.f32 %v3172, %v3192
      %s3197 = sld [smem:[#allocation3 + $0x87]]
      %v3198 = vstv %s3197
      %v3199 = vmul.f32 %v3198, %v184
      %v3200 = vmul.f32 %v3198, %v185
      %v3201 = vmul.f32 %v3198, %v186
      %v3202 = vmul.f32 %v3198, %v187
      %v3207 = vrot.slane %v3199, 2
      %v3208 = vrot.slane %v3200, 2
      %v3209 = vsel %vm376, %v3207, %v3208
      %v3210 = vrot.slane %v3201, 2
      %v3211 = vrot.slane %v3202, 2
      %v3212 = vsel %vm376, %v3210, %v3211
      %v3215 = vadd.f32 %v3195, %v3209
      %v3216 = vadd.f32 %v3196, %v3212
      %s3217 = sld [smem:[#allocation3 + $0x88]]
      %v3218 = vstv %s3217
      %v3219 = vmul.f32 %v3218, %v184
      %v3220 = vmul.f32 %v3218, %v185
      %v3221 = vmul.f32 %v3218, %v186
      %v3222 = vmul.f32 %v3218, %v187
      %v3227 = vrot.slane %v3219, 2
      %v3228 = vrot.slane %v3220, 2
      %v3229 = vsel %vm376, %v3227, %v3228
      %v3230 = vrot.slane %v3221, 2
      %v3231 = vrot.slane %v3222, 2
      %v3232 = vsel %vm376, %v3230, %v3231
      %3233 = vrot.lane.b32.xlu0 %v3229, 127
      %v3234 = vpop.permute.xlu0 %3233
      %3235 = vrot.lane.b32.xlu0 %v3232, 127
      %v3236 = vpop.permute.xlu0 %3235
      %v3239 = vadd.f32 %v3215, %v3234
      %v3240 = vadd.f32 %v3216, %v3236
      %s3241 = sld [smem:[#allocation3 + $0x89]]
      %v3242 = vstv %s3241
      %v3243 = vmul.f32 %v3242, %v184
      %v3244 = vmul.f32 %v3242, %v185
      %v3245 = vmul.f32 %v3242, %v186
      %v3246 = vmul.f32 %v3242, %v187
      %v3251 = vrot.slane %v3243, 2
      %v3252 = vrot.slane %v3244, 2
      %v3253 = vsel %vm376, %v3251, %v3252
      %v3254 = vrot.slane %v3245, 2
      %v3255 = vrot.slane %v3246, 2
      %v3256 = vsel %vm376, %v3254, %v3255
      %3257 = vrot.lane.b32.xlu0 %v3253, 126
      %v3258 = vpop.permute.xlu0 %3257
      %3259 = vrot.lane.b32.xlu0 %v3256, 126
      %v3260 = vpop.permute.xlu0 %3259
      %v3263 = vadd.f32 %v3239, %v3258
      %v3264 = vadd.f32 %v3240, %v3260
      %s3265 = sld [smem:[#allocation3 + $0x8a]]
      %v3266 = vstv %s3265
      %v3267 = vmul.f32 %v3266, %v184
      %v3268 = vmul.f32 %v3266, %v185
      %v3269 = vmul.f32 %v3266, %v186
      %v3270 = vmul.f32 %v3266, %v187
      %v3275 = vrot.slane %v3267, 2
      %v3276 = vrot.slane %v3268, 2
      %v3277 = vsel %vm376, %v3275, %v3276
      %v3278 = vrot.slane %v3269, 2
      %v3279 = vrot.slane %v3270, 2
      %v3280 = vsel %vm376, %v3278, %v3279
      %3281 = vrot.lane.b32.xlu0 %v3277, 125
      %v3282 = vpop.permute.xlu0 %3281
      %3283 = vrot.lane.b32.xlu0 %v3280, 125
      %v3284 = vpop.permute.xlu0 %3283
      %v3287 = vadd.f32 %v3263, %v3282
      %v3288 = vadd.f32 %v3264, %v3284
      %s3289 = sld [smem:[#allocation3 + $0x8b]]
      %v3290 = vstv %s3289
      %v3291 = vmul.f32 %v3290, %v184
      %v3292 = vmul.f32 %v3290, %v185
      %v3293 = vmul.f32 %v3290, %v186
      %v3294 = vmul.f32 %v3290, %v187
      %v3299 = vrot.slane %v3291, 2
      %v3300 = vrot.slane %v3292, 2
      %v3301 = vsel %vm376, %v3299, %v3300
      %v3302 = vrot.slane %v3293, 2
      %v3303 = vrot.slane %v3294, 2
      %v3304 = vsel %vm376, %v3302, %v3303
      %3305 = vrot.lane.b32.xlu0 %v3301, 124
      %v3306 = vpop.permute.xlu0 %3305
      %3307 = vrot.lane.b32.xlu0 %v3304, 124
      %v3308 = vpop.permute.xlu0 %3307
      %v3311 = vadd.f32 %v3287, %v3306
      %v3312 = vadd.f32 %v3288, %v3308
      %s3313 = sld [smem:[#allocation3 + $0x8c]]
      %v3314 = vstv %s3313
      %v3315 = vmul.f32 %v3314, %v184
      %v3316 = vmul.f32 %v3314, %v185
      %v3317 = vmul.f32 %v3314, %v186
      %v3318 = vmul.f32 %v3314, %v187
      %v3323 = vrot.slane %v3315, 3
      %v3324 = vrot.slane %v3316, 3
      %v3325 = vsel %vm493, %v3323, %v3324
      %v3326 = vrot.slane %v3317, 3
      %v3327 = vrot.slane %v3318, 3
      %v3328 = vsel %vm493, %v3326, %v3327
      %v3331 = vadd.f32 %v3311, %v3325
      %v3332 = vadd.f32 %v3312, %v3328
      %s3333 = sld [smem:[#allocation3 + $0x8d]]
      %v3334 = vstv %s3333
      %v3335 = vmul.f32 %v3334, %v184
      %v3336 = vmul.f32 %v3334, %v185
      %v3337 = vmul.f32 %v3334, %v186
      %v3338 = vmul.f32 %v3334, %v187
      %v3343 = vrot.slane %v3335, 3
      %v3344 = vrot.slane %v3336, 3
      %v3345 = vsel %vm493, %v3343, %v3344
      %v3346 = vrot.slane %v3337, 3
      %v3347 = vrot.slane %v3338, 3
      %v3348 = vsel %vm493, %v3346, %v3347
      %3349 = vrot.lane.b32.xlu0 %v3345, 127
      %v3350 = vpop.permute.xlu0 %3349
      %3351 = vrot.lane.b32.xlu0 %v3348, 127
      %v3352 = vpop.permute.xlu0 %3351
      %v3355 = vadd.f32 %v3331, %v3350
      %v3356 = vadd.f32 %v3332, %v3352
      %s3357 = sld [smem:[#allocation3 + $0x8e]]
      %v3358 = vstv %s3357
      %v3359 = vmul.f32 %v3358, %v184
      %v3360 = vmul.f32 %v3358, %v185
      %v3361 = vmul.f32 %v3358, %v186
      %v3362 = vmul.f32 %v3358, %v187
      %v3367 = vrot.slane %v3359, 3
      %v3368 = vrot.slane %v3360, 3
      %v3369 = vsel %vm493, %v3367, %v3368
      %v3370 = vrot.slane %v3361, 3
      %v3371 = vrot.slane %v3362, 3
      %v3372 = vsel %vm493, %v3370, %v3371
      %3373 = vrot.lane.b32.xlu0 %v3369, 126
      %v3374 = vpop.permute.xlu0 %3373
      %3375 = vrot.lane.b32.xlu0 %v3372, 126
      %v3376 = vpop.permute.xlu0 %3375
      %v3379 = vadd.f32 %v3355, %v3374
      %v3380 = vadd.f32 %v3356, %v3376
      %s3381 = sld [smem:[#allocation3 + $0x8f]]
      %v3382 = vstv %s3381
      %v3383 = vmul.f32 %v3382, %v184
      %v3384 = vmul.f32 %v3382, %v185
      %v3385 = vmul.f32 %v3382, %v186
      %v3386 = vmul.f32 %v3382, %v187
      %v3391 = vrot.slane %v3383, 3
      %v3392 = vrot.slane %v3384, 3
      %v3393 = vsel %vm493, %v3391, %v3392
      %v3394 = vrot.slane %v3385, 3
      %v3395 = vrot.slane %v3386, 3
      %v3396 = vsel %vm493, %v3394, %v3395
      %3397 = vrot.lane.b32.xlu0 %v3393, 125
      %v3398 = vpop.permute.xlu0 %3397
      %3399 = vrot.lane.b32.xlu0 %v3396, 125
      %v3400 = vpop.permute.xlu0 %3399
      %v3403 = vadd.f32 %v3379, %v3398
      %v3404 = vadd.f32 %v3380, %v3400
      %s3405 = sld [smem:[#allocation3 + $0x90]]
      %v3406 = vstv %s3405
      %v3407 = vmul.f32 %v3406, %v184
      %v3408 = vmul.f32 %v3406, %v185
      %v3409 = vmul.f32 %v3406, %v186
      %v3410 = vmul.f32 %v3406, %v187
      %v3415 = vrot.slane %v3407, 3
      %v3416 = vrot.slane %v3408, 3
      %v3417 = vsel %vm493, %v3415, %v3416
      %v3418 = vrot.slane %v3409, 3
      %v3419 = vrot.slane %v3410, 3
      %v3420 = vsel %vm493, %v3418, %v3419
      %3421 = vrot.lane.b32.xlu0 %v3417, 124
      %v3422 = vpop.permute.xlu0 %3421
      %3423 = vrot.lane.b32.xlu0 %v3420, 124
      %v3424 = vpop.permute.xlu0 %3423
      %v3427 = vadd.f32 %v3403, %v3422
      %v3428 = vadd.f32 %v3404, %v3424
      %s3429 = sld [smem:[#allocation3 + $0x91]]
      %v3430 = vstv %s3429
      %v3431 = vmul.f32 %v3430, %v184
      %v3432 = vmul.f32 %v3430, %v185
      %v3433 = vmul.f32 %v3430, %v186
      %v3434 = vmul.f32 %v3430, %v187
      %v3439 = vrot.slane %v3431, 4
      %v3440 = vrot.slane %v3432, 4
      %v3441 = vsel %vm610, %v3439, %v3440
      %v3442 = vrot.slane %v3433, 4
      %v3443 = vrot.slane %v3434, 4
      %v3444 = vsel %vm610, %v3442, %v3443
      %v3447 = vadd.f32 %v3427, %v3441
      %v3448 = vadd.f32 %v3428, %v3444
      %s3449 = sld [smem:[#allocation3 + $0x92]]
      %v3450 = vstv %s3449
      %v3451 = vmul.f32 %v3450, %v184
      %v3452 = vmul.f32 %v3450, %v185
      %v3453 = vmul.f32 %v3450, %v186
      %v3454 = vmul.f32 %v3450, %v187
      %v3459 = vrot.slane %v3451, 4
      %v3460 = vrot.slane %v3452, 4
      %v3461 = vsel %vm610, %v3459, %v3460
      %v3462 = vrot.slane %v3453, 4
      %v3463 = vrot.slane %v3454, 4
      %v3464 = vsel %vm610, %v3462, %v3463
      %3465 = vrot.lane.b32.xlu0 %v3461, 127
      %v3466 = vpop.permute.xlu0 %3465
      %3467 = vrot.lane.b32.xlu0 %v3464, 127
      %v3468 = vpop.permute.xlu0 %3467
      %v3471 = vadd.f32 %v3447, %v3466
      %v3472 = vadd.f32 %v3448, %v3468
      %s3473 = sld [smem:[#allocation3 + $0x93]]
      %v3474 = vstv %s3473
      %v3475 = vmul.f32 %v3474, %v184
      %v3476 = vmul.f32 %v3474, %v185
      %v3477 = vmul.f32 %v3474, %v186
      %v3478 = vmul.f32 %v3474, %v187
      %v3483 = vrot.slane %v3475, 4
      %v3484 = vrot.slane %v3476, 4
      %v3485 = vsel %vm610, %v3483, %v3484
      %v3486 = vrot.slane %v3477, 4
      %v3487 = vrot.slane %v3478, 4
      %v3488 = vsel %vm610, %v3486, %v3487
      %3489 = vrot.lane.b32.xlu0 %v3485, 126
      %v3490 = vpop.permute.xlu0 %3489
      %3491 = vrot.lane.b32.xlu0 %v3488, 126
      %v3492 = vpop.permute.xlu0 %3491
      %v3495 = vadd.f32 %v3471, %v3490
      %v3496 = vadd.f32 %v3472, %v3492
      %s3497 = sld [smem:[#allocation3 + $0x94]]
      %v3498 = vstv %s3497
      %v3499 = vmul.f32 %v3498, %v184
      %v3500 = vmul.f32 %v3498, %v185
      %v3501 = vmul.f32 %v3498, %v186
      %v3502 = vmul.f32 %v3498, %v187
      %v3507 = vrot.slane %v3499, 4
      %v3508 = vrot.slane %v3500, 4
      %v3509 = vsel %vm610, %v3507, %v3508
      %v3510 = vrot.slane %v3501, 4
      %v3511 = vrot.slane %v3502, 4
      %v3512 = vsel %vm610, %v3510, %v3511
      %3513 = vrot.lane.b32.xlu0 %v3509, 125
      %v3514 = vpop.permute.xlu0 %3513
      %3515 = vrot.lane.b32.xlu0 %v3512, 125
      %v3516 = vpop.permute.xlu0 %3515
      %v3519 = vadd.f32 %v3495, %v3514
      %v3520 = vadd.f32 %v3496, %v3516
      %s3521 = sld [smem:[#allocation3 + $0x95]]
      %v3522 = vstv %s3521
      %v3523 = vmul.f32 %v3522, %v184
      %v3524 = vmul.f32 %v3522, %v185
      %v3525 = vmul.f32 %v3522, %v186
      %v3526 = vmul.f32 %v3522, %v187
      %v3531 = vrot.slane %v3523, 4
      %v3532 = vrot.slane %v3524, 4
      %v3533 = vsel %vm610, %v3531, %v3532
      %v3534 = vrot.slane %v3525, 4
      %v3535 = vrot.slane %v3526, 4
      %v3536 = vsel %vm610, %v3534, %v3535
      %3537 = vrot.lane.b32.xlu0 %v3533, 124
      %v3538 = vpop.permute.xlu0 %3537
      %3539 = vrot.lane.b32.xlu0 %v3536, 124
      %v3540 = vpop.permute.xlu0 %3539
      %v3543 = vadd.f32 %v3519, %v3538
      %v3544 = vadd.f32 %v3520, %v3540
      %3547 = vrot.lane.b32.xlu0 %v3543, 127
      %v3548 = vpop.permute.xlu0 %3547
      %3549 = vrot.lane.b32.xlu0 %v3544, 127
      %v3550 = vpop.permute.xlu0 %3549
      %v3553 = vmax.f32 %v3543, %v3548
      %v3554 = vmax.f32 %v3544, %v3550
      %v3557 = vrot.slane %v3553, 1
      %v3558 = vrot.slane %v3554, 1
      %v3561 = vmax.f32 %v3553, %v3557
      %v3562 = vmax.f32 %v3554, %v3558
      %v3563 = vmul.f32 %v3561, %v739
      %v3564 = vmul.f32 %v3562, %v739
      %v3565 = vsel %vm743, %v3563, 0.0
      %3566 = vadd.xlane.f32.xlu0 %v3565
      %v3567 = vpop.xlane.xlu0 %3566
      %v3568 = vsel %vm743, %v3564, 0.0
      %3569 = vadd.xlane.f32.xlu0 %v3568
      %v3570 = vpop.xlane.xlu0 %3569
      %3573 = vrot.lane.b32.xlu0 %v3563, 64
      %v3574 = vpop.permute.xlu0 %3573
      %3575 = vrot.lane.b32.xlu0 %v3564, 64
      %v3576 = vpop.permute.xlu0 %3575
      %v3579 = vsel %vm758, %v3574, 0.0
      %3580 = vadd.xlane.f32.xlu0 %v3579
      %v3581 = vpop.xlane.xlu0 %3580
      %v3582 = vsel %vm758, %v3576, 0.0
      %3583 = vadd.xlane.f32.xlu0 %v3582
      %v3584 = vpop.xlane.xlu0 %3583
      %s3585 = sld [smem:[#allocation3 + $0x96]]
      %v3586 = vstv %s3585
      %v3587 = vmul.f32 %v3586, %v184
      %v3588 = vmul.f32 %v3586, %v186
      %s3589 = sld [smem:[#allocation3 + $0x97]]
      %v3590 = vstv %s3589
      %v3591 = vmul.f32 %v3590, %v184
      %v3592 = vmul.f32 %v3590, %v186
      %3595 = vrot.lane.b32.xlu0 %v3591, 127
      %v3596 = vpop.permute.xlu0 %3595
      %3597 = vrot.lane.b32.xlu0 %v3592, 127
      %v3598 = vpop.permute.xlu0 %3597
      %v3601 = vadd.f32 %v3587, %v3596
      %v3602 = vadd.f32 %v3588, %v3598
      %s3603 = sld [smem:[#allocation3 + $0x98]]
      %v3604 = vstv %s3603
      %v3605 = vmul.f32 %v3604, %v184
      %v3606 = vmul.f32 %v3604, %v186
      %3609 = vrot.lane.b32.xlu0 %v3605, 126
      %v3610 = vpop.permute.xlu0 %3609
      %3611 = vrot.lane.b32.xlu0 %v3606, 126
      %v3612 = vpop.permute.xlu0 %3611
      %v3615 = vadd.f32 %v3601, %v3610
      %v3616 = vadd.f32 %v3602, %v3612
      %s3617 = sld [smem:[#allocation3 + $0x99]]
      %v3618 = vstv %s3617
      %v3619 = vmul.f32 %v3618, %v184
      %v3620 = vmul.f32 %v3618, %v186
      %3623 = vrot.lane.b32.xlu0 %v3619, 125
      %v3624 = vpop.permute.xlu0 %3623
      %3625 = vrot.lane.b32.xlu0 %v3620, 125
      %v3626 = vpop.permute.xlu0 %3625
      %v3629 = vadd.f32 %v3615, %v3624
      %v3630 = vadd.f32 %v3616, %v3626
      %s3631 = sld [smem:[#allocation3 + $0x9a]]
      %v3632 = vstv %s3631
      %v3633 = vmul.f32 %v3632, %v184
      %v3634 = vmul.f32 %v3632, %v186
      %3637 = vrot.lane.b32.xlu0 %v3633, 124
      %v3638 = vpop.permute.xlu0 %3637
      %3639 = vrot.lane.b32.xlu0 %v3634, 124
      %v3640 = vpop.permute.xlu0 %3639
      %v3643 = vadd.f32 %v3629, %v3638
      %v3644 = vadd.f32 %v3630, %v3640
      %s3645 = sld [smem:[#allocation3 + $0x9b]]
      %v3646 = vstv %s3645
      %v3647 = vmul.f32 %v3646, %v184
      %v3648 = vmul.f32 %v3646, %v185
      %v3649 = vmul.f32 %v3646, %v186
      %v3650 = vmul.f32 %v3646, %v187
      %v3655 = vrot.slane %v3647, 1
      %v3656 = vrot.slane %v3648, 1
      %v3657 = vsel %vm259, %v3655, %v3656
      %v3658 = vrot.slane %v3649, 1
      %v3659 = vrot.slane %v3650, 1
      %v3660 = vsel %vm259, %v3658, %v3659
      %v3663 = vadd.f32 %v3643, %v3657
      %v3664 = vadd.f32 %v3644, %v3660
      %s3665 = sld [smem:[#allocation3 + $0x9c]]
      %v3666 = vstv %s3665
      %v3667 = vmul.f32 %v3666, %v184
      %v3668 = vmul.f32 %v3666, %v185
      %v3669 = vmul.f32 %v3666, %v186
      %v3670 = vmul.f32 %v3666, %v187
      %v3675 = vrot.slane %v3667, 1
      %v3676 = vrot.slane %v3668, 1
      %v3677 = vsel %vm259, %v3675, %v3676
      %v3678 = vrot.slane %v3669, 1
      %v3679 = vrot.slane %v3670, 1
      %v3680 = vsel %vm259, %v3678, %v3679
      %3681 = vrot.lane.b32.xlu0 %v3677, 127
      %v3682 = vpop.permute.xlu0 %3681
      %3683 = vrot.lane.b32.xlu0 %v3680, 127
      %v3684 = vpop.permute.xlu0 %3683
      %v3687 = vadd.f32 %v3663, %v3682
      %v3688 = vadd.f32 %v3664, %v3684
      %s3689 = sld [smem:[#allocation3 + $0x9d]]
      %v3690 = vstv %s3689
      %v3691 = vmul.f32 %v3690, %v184
      %v3692 = vmul.f32 %v3690, %v185
      %v3693 = vmul.f32 %v3690, %v186
      %v3694 = vmul.f32 %v3690, %v187
      %v3699 = vrot.slane %v3691, 1
      %v3700 = vrot.slane %v3692, 1
      %v3701 = vsel %vm259, %v3699, %v3700
      %v3702 = vrot.slane %v3693, 1
      %v3703 = vrot.slane %v3694, 1
      %v3704 = vsel %vm259, %v3702, %v3703
      %3705 = vrot.lane.b32.xlu0 %v3701, 126
      %v3706 = vpop.permute.xlu0 %3705
      %3707 = vrot.lane.b32.xlu0 %v3704, 126
      %v3708 = vpop.permute.xlu0 %3707
      %v3711 = vadd.f32 %v3687, %v3706
      %v3712 = vadd.f32 %v3688, %v3708
      %s3713 = sld [smem:[#allocation3 + $0x9e]]
      %v3714 = vstv %s3713
      %v3715 = vmul.f32 %v3714, %v184
      %v3716 = vmul.f32 %v3714, %v185
      %v3717 = vmul.f32 %v3714, %v186
      %v3718 = vmul.f32 %v3714, %v187
      %v3723 = vrot.slane %v3715, 1
      %v3724 = vrot.slane %v3716, 1
      %v3725 = vsel %vm259, %v3723, %v3724
      %v3726 = vrot.slane %v3717, 1
      %v3727 = vrot.slane %v3718, 1
      %v3728 = vsel %vm259, %v3726, %v3727
      %3729 = vrot.lane.b32.xlu0 %v3725, 125
      %v3730 = vpop.permute.xlu0 %3729
      %3731 = vrot.lane.b32.xlu0 %v3728, 125
      %v3732 = vpop.permute.xlu0 %3731
      %v3735 = vadd.f32 %v3711, %v3730
      %v3736 = vadd.f32 %v3712, %v3732
      %s3737 = sld [smem:[#allocation3 + $0x9f]]
      %v3738 = vstv %s3737
      %v3739 = vmul.f32 %v3738, %v184
      %v3740 = vmul.f32 %v3738, %v185
      %v3741 = vmul.f32 %v3738, %v186
      %v3742 = vmul.f32 %v3738, %v187
      %v3747 = vrot.slane %v3739, 1
      %v3748 = vrot.slane %v3740, 1
      %v3749 = vsel %vm259, %v3747, %v3748
      %v3750 = vrot.slane %v3741, 1
      %v3751 = vrot.slane %v3742, 1
      %v3752 = vsel %vm259, %v3750, %v3751
      %3753 = vrot.lane.b32.xlu0 %v3749, 124
      %v3754 = vpop.permute.xlu0 %3753
      %3755 = vrot.lane.b32.xlu0 %v3752, 124
      %v3756 = vpop.permute.xlu0 %3755
      %v3759 = vadd.f32 %v3735, %v3754
      %v3760 = vadd.f32 %v3736, %v3756
      %s3761 = sld [smem:[#allocation3 + $0xa0]]
      %v3762 = vstv %s3761
      %v3763 = vmul.f32 %v3762, %v184
      %v3764 = vmul.f32 %v3762, %v185
      %v3765 = vmul.f32 %v3762, %v186
      %v3766 = vmul.f32 %v3762, %v187
      %v3771 = vrot.slane %v3763, 2
      %v3772 = vrot.slane %v3764, 2
      %v3773 = vsel %vm376, %v3771, %v3772
      %v3774 = vrot.slane %v3765, 2
      %v3775 = vrot.slane %v3766, 2
      %v3776 = vsel %vm376, %v3774, %v3775
      %v3779 = vadd.f32 %v3759, %v3773
      %v3780 = vadd.f32 %v3760, %v3776
      %s3781 = sld [smem:[#allocation3 + $0xa1]]
      %v3782 = vstv %s3781
      %v3783 = vmul.f32 %v3782, %v184
      %v3784 = vmul.f32 %v3782, %v185
      %v3785 = vmul.f32 %v3782, %v186
      %v3786 = vmul.f32 %v3782, %v187
      %v3791 = vrot.slane %v3783, 2
      %v3792 = vrot.slane %v3784, 2
      %v3793 = vsel %vm376, %v3791, %v3792
      %v3794 = vrot.slane %v3785, 2
      %v3795 = vrot.slane %v3786, 2
      %v3796 = vsel %vm376, %v3794, %v3795
      %3797 = vrot.lane.b32.xlu0 %v3793, 127
      %v3798 = vpop.permute.xlu0 %3797
      %3799 = vrot.lane.b32.xlu0 %v3796, 127
      %v3800 = vpop.permute.xlu0 %3799
      %v3803 = vadd.f32 %v3779, %v3798
      %v3804 = vadd.f32 %v3780, %v3800
      %s3805 = sld [smem:[#allocation3 + $0xa2]]
      %v3806 = vstv %s3805
      %v3807 = vmul.f32 %v3806, %v184
      %v3808 = vmul.f32 %v3806, %v185
      %v3809 = vmul.f32 %v3806, %v186
      %v3810 = vmul.f32 %v3806, %v187
      %v3815 = vrot.slane %v3807, 2
      %v3816 = vrot.slane %v3808, 2
      %v3817 = vsel %vm376, %v3815, %v3816
      %v3818 = vrot.slane %v3809, 2
      %v3819 = vrot.slane %v3810, 2
      %v3820 = vsel %vm376, %v3818, %v3819
      %3821 = vrot.lane.b32.xlu0 %v3817, 126
      %v3822 = vpop.permute.xlu0 %3821
      %3823 = vrot.lane.b32.xlu0 %v3820, 126
      %v3824 = vpop.permute.xlu0 %3823
      %v3827 = vadd.f32 %v3803, %v3822
      %v3828 = vadd.f32 %v3804, %v3824
      %s3829 = sld [smem:[#allocation3 + $0xa3]]
      %v3830 = vstv %s3829
      %v3831 = vmul.f32 %v3830, %v184
      %v3832 = vmul.f32 %v3830, %v185
      %v3833 = vmul.f32 %v3830, %v186
      %v3834 = vmul.f32 %v3830, %v187
      %v3839 = vrot.slane %v3831, 2
      %v3840 = vrot.slane %v3832, 2
      %v3841 = vsel %vm376, %v3839, %v3840
      %v3842 = vrot.slane %v3833, 2
      %v3843 = vrot.slane %v3834, 2
      %v3844 = vsel %vm376, %v3842, %v3843
      %3845 = vrot.lane.b32.xlu0 %v3841, 125
      %v3846 = vpop.permute.xlu0 %3845
      %3847 = vrot.lane.b32.xlu0 %v3844, 125
      %v3848 = vpop.permute.xlu0 %3847
      %v3851 = vadd.f32 %v3827, %v3846
      %v3852 = vadd.f32 %v3828, %v3848
      %s3853 = sld [smem:[#allocation3 + $0xa4]]
      %v3854 = vstv %s3853
      %v3855 = vmul.f32 %v3854, %v184
      %v3856 = vmul.f32 %v3854, %v185
      %v3857 = vmul.f32 %v3854, %v186
      %v3858 = vmul.f32 %v3854, %v187
      %v3863 = vrot.slane %v3855, 2
      %v3864 = vrot.slane %v3856, 2
      %v3865 = vsel %vm376, %v3863, %v3864
      %v3866 = vrot.slane %v3857, 2
      %v3867 = vrot.slane %v3858, 2
      %v3868 = vsel %vm376, %v3866, %v3867
      %3869 = vrot.lane.b32.xlu0 %v3865, 124
      %v3870 = vpop.permute.xlu0 %3869
      %3871 = vrot.lane.b32.xlu0 %v3868, 124
      %v3872 = vpop.permute.xlu0 %3871
      %v3875 = vadd.f32 %v3851, %v3870
      %v3876 = vadd.f32 %v3852, %v3872
      %s3877 = sld [smem:[#allocation3 + $0xa5]]
      %v3878 = vstv %s3877
      %v3879 = vmul.f32 %v3878, %v184
      %v3880 = vmul.f32 %v3878, %v185
      %v3881 = vmul.f32 %v3878, %v186
      %v3882 = vmul.f32 %v3878, %v187
      %v3887 = vrot.slane %v3879, 3
      %v3888 = vrot.slane %v3880, 3
      %v3889 = vsel %vm493, %v3887, %v3888
      %v3890 = vrot.slane %v3881, 3
      %v3891 = vrot.slane %v3882, 3
      %v3892 = vsel %vm493, %v3890, %v3891
      %v3895 = vadd.f32 %v3875, %v3889
      %v3896 = vadd.f32 %v3876, %v3892
      %s3897 = sld [smem:[#allocation3 + $0xa6]]
      %v3898 = vstv %s3897
      %v3899 = vmul.f32 %v3898, %v184
      %v3900 = vmul.f32 %v3898, %v185
      %v3901 = vmul.f32 %v3898, %v186
      %v3902 = vmul.f32 %v3898, %v187
      %v3907 = vrot.slane %v3899, 3
      %v3908 = vrot.slane %v3900, 3
      %v3909 = vsel %vm493, %v3907, %v3908
      %v3910 = vrot.slane %v3901, 3
      %v3911 = vrot.slane %v3902, 3
      %v3912 = vsel %vm493, %v3910, %v3911
      %3913 = vrot.lane.b32.xlu0 %v3909, 127
      %v3914 = vpop.permute.xlu0 %3913
      %3915 = vrot.lane.b32.xlu0 %v3912, 127
      %v3916 = vpop.permute.xlu0 %3915
      %v3919 = vadd.f32 %v3895, %v3914
      %v3920 = vadd.f32 %v3896, %v3916
      %s3921 = sld [smem:[#allocation3 + $0xa7]]
      %v3922 = vstv %s3921
      %v3923 = vmul.f32 %v3922, %v184
      %v3924 = vmul.f32 %v3922, %v185
      %v3925 = vmul.f32 %v3922, %v186
      %v3926 = vmul.f32 %v3922, %v187
      %v3931 = vrot.slane %v3923, 3
      %v3932 = vrot.slane %v3924, 3
      %v3933 = vsel %vm493, %v3931, %v3932
      %v3934 = vrot.slane %v3925, 3
      %v3935 = vrot.slane %v3926, 3
      %v3936 = vsel %vm493, %v3934, %v3935
      %3937 = vrot.lane.b32.xlu0 %v3933, 126
      %v3938 = vpop.permute.xlu0 %3937
      %3939 = vrot.lane.b32.xlu0 %v3936, 126
      %v3940 = vpop.permute.xlu0 %3939
      %v3943 = vadd.f32 %v3919, %v3938
      %v3944 = vadd.f32 %v3920, %v3940
      %s3945 = sld [smem:[#allocation3 + $0xa8]]
      %v3946 = vstv %s3945
      %v3947 = vmul.f32 %v3946, %v184
      %v3948 = vmul.f32 %v3946, %v185
      %v3949 = vmul.f32 %v3946, %v186
      %v3950 = vmul.f32 %v3946, %v187
      %v3955 = vrot.slane %v3947, 3
      %v3956 = vrot.slane %v3948, 3
      %v3957 = vsel %vm493, %v3955, %v3956
      %v3958 = vrot.slane %v3949, 3
      %v3959 = vrot.slane %v3950, 3
      %v3960 = vsel %vm493, %v3958, %v3959
      %3961 = vrot.lane.b32.xlu0 %v3957, 125
      %v3962 = vpop.permute.xlu0 %3961
      %3963 = vrot.lane.b32.xlu0 %v3960, 125
      %v3964 = vpop.permute.xlu0 %3963
      %v3967 = vadd.f32 %v3943, %v3962
      %v3968 = vadd.f32 %v3944, %v3964
      %s3969 = sld [smem:[#allocation3 + $0xa9]]
      %v3970 = vstv %s3969
      %v3971 = vmul.f32 %v3970, %v184
      %v3972 = vmul.f32 %v3970, %v185
      %v3973 = vmul.f32 %v3970, %v186
      %v3974 = vmul.f32 %v3970, %v187
      %v3979 = vrot.slane %v3971, 3
      %v3980 = vrot.slane %v3972, 3
      %v3981 = vsel %vm493, %v3979, %v3980
      %v3982 = vrot.slane %v3973, 3
      %v3983 = vrot.slane %v3974, 3
      %v3984 = vsel %vm493, %v3982, %v3983
      %3985 = vrot.lane.b32.xlu0 %v3981, 124
      %v3986 = vpop.permute.xlu0 %3985
      %3987 = vrot.lane.b32.xlu0 %v3984, 124
      %v3988 = vpop.permute.xlu0 %3987
      %v3991 = vadd.f32 %v3967, %v3986
      %v3992 = vadd.f32 %v3968, %v3988
      %s3993 = sld [smem:[#allocation3 + $0xaa]]
      %v3994 = vstv %s3993
      %v3995 = vmul.f32 %v3994, %v184
      %v3996 = vmul.f32 %v3994, %v185
      %v3997 = vmul.f32 %v3994, %v186
      %v3998 = vmul.f32 %v3994, %v187
      %v4003 = vrot.slane %v3995, 4
      %v4004 = vrot.slane %v3996, 4
      %v4005 = vsel %vm610, %v4003, %v4004
      %v4006 = vrot.slane %v3997, 4
      %v4007 = vrot.slane %v3998, 4
      %v4008 = vsel %vm610, %v4006, %v4007
      %v4011 = vadd.f32 %v3991, %v4005
      %v4012 = vadd.f32 %v3992, %v4008
      %s4013 = sld [smem:[#allocation3 + $0xab]]
      %v4014 = vstv %s4013
      %v4015 = vmul.f32 %v4014, %v184
      %v4016 = vmul.f32 %v4014, %v185
      %v4017 = vmul.f32 %v4014, %v186
      %v4018 = vmul.f32 %v4014, %v187
      %v4023 = vrot.slane %v4015, 4
      %v4024 = vrot.slane %v4016, 4
      %v4025 = vsel %vm610, %v4023, %v4024
      %v4026 = vrot.slane %v4017, 4
      %v4027 = vrot.slane %v4018, 4
      %v4028 = vsel %vm610, %v4026, %v4027
      %4029 = vrot.lane.b32.xlu0 %v4025, 127
      %v4030 = vpop.permute.xlu0 %4029
      %4031 = vrot.lane.b32.xlu0 %v4028, 127
      %v4032 = vpop.permute.xlu0 %4031
      %v4035 = vadd.f32 %v4011, %v4030
      %v4036 = vadd.f32 %v4012, %v4032
      %s4037 = sld [smem:[#allocation3 + $0xac]]
      %v4038 = vstv %s4037
      %v4039 = vmul.f32 %v4038, %v184
      %v4040 = vmul.f32 %v4038, %v185
      %v4041 = vmul.f32 %v4038, %v186
      %v4042 = vmul.f32 %v4038, %v187
      %v4047 = vrot.slane %v4039, 4
      %v4048 = vrot.slane %v4040, 4
      %v4049 = vsel %vm610, %v4047, %v4048
      %v4050 = vrot.slane %v4041, 4
      %v4051 = vrot.slane %v4042, 4
      %v4052 = vsel %vm610, %v4050, %v4051
      %4053 = vrot.lane.b32.xlu0 %v4049, 126
      %v4054 = vpop.permute.xlu0 %4053
      %4055 = vrot.lane.b32.xlu0 %v4052, 126
      %v4056 = vpop.permute.xlu0 %4055
      %v4059 = vadd.f32 %v4035, %v4054
      %v4060 = vadd.f32 %v4036, %v4056
      %s4061 = sld [smem:[#allocation3 + $0xad]]
      %v4062 = vstv %s4061
      %v4063 = vmul.f32 %v4062, %v184
      %v4064 = vmul.f32 %v4062, %v185
      %v4065 = vmul.f32 %v4062, %v186
      %v4066 = vmul.f32 %v4062, %v187
      %v4071 = vrot.slane %v4063, 4
      %v4072 = vrot.slane %v4064, 4
      %v4073 = vsel %vm610, %v4071, %v4072
      %v4074 = vrot.slane %v4065, 4
      %v4075 = vrot.slane %v4066, 4
      %v4076 = vsel %vm610, %v4074, %v4075
      %4077 = vrot.lane.b32.xlu0 %v4073, 125
      %v4078 = vpop.permute.xlu0 %4077
      %4079 = vrot.lane.b32.xlu0 %v4076, 125
      %v4080 = vpop.permute.xlu0 %4079
      %v4083 = vadd.f32 %v4059, %v4078
      %v4084 = vadd.f32 %v4060, %v4080
      %s4085 = sld [smem:[#allocation3 + $0xae]]
      %v4086 = vstv %s4085
      %v4087 = vmul.f32 %v4086, %v184
      %v4088 = vmul.f32 %v4086, %v185
      %v4089 = vmul.f32 %v4086, %v186
      %v4090 = vmul.f32 %v4086, %v187
      %v4095 = vrot.slane %v4087, 4
      %v4096 = vrot.slane %v4088, 4
      %v4097 = vsel %vm610, %v4095, %v4096
      %v4098 = vrot.slane %v4089, 4
      %v4099 = vrot.slane %v4090, 4
      %v4100 = vsel %vm610, %v4098, %v4099
      %4101 = vrot.lane.b32.xlu0 %v4097, 124
      %v4102 = vpop.permute.xlu0 %4101
      %4103 = vrot.lane.b32.xlu0 %v4100, 124
      %v4104 = vpop.permute.xlu0 %4103
      %v4107 = vadd.f32 %v4083, %v4102
      %v4108 = vadd.f32 %v4084, %v4104
      %4111 = vrot.lane.b32.xlu0 %v4107, 127
      %v4112 = vpop.permute.xlu0 %4111
      %4113 = vrot.lane.b32.xlu0 %v4108, 127
      %v4114 = vpop.permute.xlu0 %4113
      %v4117 = vmax.f32 %v4107, %v4112
      %v4118 = vmax.f32 %v4108, %v4114
      %v4121 = vrot.slane %v4117, 1
      %v4122 = vrot.slane %v4118, 1
      %v4125 = vmax.f32 %v4117, %v4121
      %v4126 = vmax.f32 %v4118, %v4122
      %v4127 = vmul.f32 %v4125, %v739
      %v4128 = vmul.f32 %v4126, %v739
      %v4129 = vsel %vm743, %v4127, 0.0
      %4130 = vadd.xlane.f32.xlu0 %v4129
      %v4131 = vpop.xlane.xlu0 %4130
      %v4132 = vsel %vm743, %v4128, 0.0
      %4133 = vadd.xlane.f32.xlu0 %v4132
      %v4134 = vpop.xlane.xlu0 %4133
      %4137 = vrot.lane.b32.xlu0 %v4127, 64
      %v4138 = vpop.permute.xlu0 %4137
      %4139 = vrot.lane.b32.xlu0 %v4128, 64
      %v4140 = vpop.permute.xlu0 %4139
      %v4143 = vsel %vm758, %v4138, 0.0
      %4144 = vadd.xlane.f32.xlu0 %v4143
      %v4145 = vpop.xlane.xlu0 %4144
      %v4146 = vsel %vm758, %v4140, 0.0
      %4147 = vadd.xlane.f32.xlu0 %v4146
      %v4148 = vpop.xlane.xlu0 %4147
      %s4149 = sld [smem:[#allocation3 + $0xaf]]
      %v4150 = vstv %s4149
      %v4151 = vmul.f32 %v4150, %v184
      %v4152 = vmul.f32 %v4150, %v186
      %s4153 = sld [smem:[#allocation3 + $0xb0]]
      %v4154 = vstv %s4153
      %v4155 = vmul.f32 %v4154, %v184
      %v4156 = vmul.f32 %v4154, %v186
      %4159 = vrot.lane.b32.xlu0 %v4155, 127
      %v4160 = vpop.permute.xlu0 %4159
      %4161 = vrot.lane.b32.xlu0 %v4156, 127
      %v4162 = vpop.permute.xlu0 %4161
      %v4165 = vadd.f32 %v4151, %v4160
      %v4166 = vadd.f32 %v4152, %v4162
      %s4167 = sld [smem:[#allocation3 + $0xb1]]
      %v4168 = vstv %s4167
      %v4169 = vmul.f32 %v4168, %v184
      %v4170 = vmul.f32 %v4168, %v186
      %4173 = vrot.lane.b32.xlu0 %v4169, 126
      %v4174 = vpop.permute.xlu0 %4173
      %4175 = vrot.lane.b32.xlu0 %v4170, 126
      %v4176 = vpop.permute.xlu0 %4175
      %v4179 = vadd.f32 %v4165, %v4174
      %v4180 = vadd.f32 %v4166, %v4176
      %s4181 = sld [smem:[#allocation3 + $0xb2]]
      %v4182 = vstv %s4181
      %v4183 = vmul.f32 %v4182, %v184
      %v4184 = vmul.f32 %v4182, %v186
      %4187 = vrot.lane.b32.xlu0 %v4183, 125
      %v4188 = vpop.permute.xlu0 %4187
      %4189 = vrot.lane.b32.xlu0 %v4184, 125
      %v4190 = vpop.permute.xlu0 %4189
      %v4193 = vadd.f32 %v4179, %v4188
      %v4194 = vadd.f32 %v4180, %v4190
      %s4195 = sld [smem:[#allocation3 + $0xb3]]
      %v4196 = vstv %s4195
      %v4197 = vmul.f32 %v4196, %v184
      %v4198 = vmul.f32 %v4196, %v186
      %4201 = vrot.lane.b32.xlu0 %v4197, 124
      %v4202 = vpop.permute.xlu0 %4201
      %4203 = vrot.lane.b32.xlu0 %v4198, 124
      %v4204 = vpop.permute.xlu0 %4203
      %v4207 = vadd.f32 %v4193, %v4202
      %v4208 = vadd.f32 %v4194, %v4204
      %s4209 = sld [smem:[#allocation3 + $0xb4]]
      %v4210 = vstv %s4209
      %v4211 = vmul.f32 %v4210, %v184
      %v4212 = vmul.f32 %v4210, %v185
      %v4213 = vmul.f32 %v4210, %v186
      %v4214 = vmul.f32 %v4210, %v187
      %v4219 = vrot.slane %v4211, 1
      %v4220 = vrot.slane %v4212, 1
      %v4221 = vsel %vm259, %v4219, %v4220
      %v4222 = vrot.slane %v4213, 1
      %v4223 = vrot.slane %v4214, 1
      %v4224 = vsel %vm259, %v4222, %v4223
      %v4227 = vadd.f32 %v4207, %v4221
      %v4228 = vadd.f32 %v4208, %v4224
      %s4229 = sld [smem:[#allocation3 + $0xb5]]
      %v4230 = vstv %s4229
      %v4231 = vmul.f32 %v4230, %v184
      %v4232 = vmul.f32 %v4230, %v185
      %v4233 = vmul.f32 %v4230, %v186
      %v4234 = vmul.f32 %v4230, %v187
      %v4239 = vrot.slane %v4231, 1
      %v4240 = vrot.slane %v4232, 1
      %v4241 = vsel %vm259, %v4239, %v4240
      %v4242 = vrot.slane %v4233, 1
      %v4243 = vrot.slane %v4234, 1
      %v4244 = vsel %vm259, %v4242, %v4243
      %4245 = vrot.lane.b32.xlu0 %v4241, 127
      %v4246 = vpop.permute.xlu0 %4245
      %4247 = vrot.lane.b32.xlu0 %v4244, 127
      %v4248 = vpop.permute.xlu0 %4247
      %v4251 = vadd.f32 %v4227, %v4246
      %v4252 = vadd.f32 %v4228, %v4248
      %s4253 = sld [smem:[#allocation3 + $0xb6]]
      %v4254 = vstv %s4253
      %v4255 = vmul.f32 %v4254, %v184
      %v4256 = vmul.f32 %v4254, %v185
      %v4257 = vmul.f32 %v4254, %v186
      %v4258 = vmul.f32 %v4254, %v187
      %v4263 = vrot.slane %v4255, 1
      %v4264 = vrot.slane %v4256, 1
      %v4265 = vsel %vm259, %v4263, %v4264
      %v4266 = vrot.slane %v4257, 1
      %v4267 = vrot.slane %v4258, 1
      %v4268 = vsel %vm259, %v4266, %v4267
      %4269 = vrot.lane.b32.xlu0 %v4265, 126
      %v4270 = vpop.permute.xlu0 %4269
      %4271 = vrot.lane.b32.xlu0 %v4268, 126
      %v4272 = vpop.permute.xlu0 %4271
      %v4275 = vadd.f32 %v4251, %v4270
      %v4276 = vadd.f32 %v4252, %v4272
      %s4277 = sld [smem:[#allocation3 + $0xb7]]
      %v4278 = vstv %s4277
      %v4279 = vmul.f32 %v4278, %v184
      %v4280 = vmul.f32 %v4278, %v185
      %v4281 = vmul.f32 %v4278, %v186
      %v4282 = vmul.f32 %v4278, %v187
      %v4287 = vrot.slane %v4279, 1
      %v4288 = vrot.slane %v4280, 1
      %v4289 = vsel %vm259, %v4287, %v4288
      %v4290 = vrot.slane %v4281, 1
      %v4291 = vrot.slane %v4282, 1
      %v4292 = vsel %vm259, %v4290, %v4291
      %4293 = vrot.lane.b32.xlu0 %v4289, 125
      %v4294 = vpop.permute.xlu0 %4293
      %4295 = vrot.lane.b32.xlu0 %v4292, 125
      %v4296 = vpop.permute.xlu0 %4295
      %v4299 = vadd.f32 %v4275, %v4294
      %v4300 = vadd.f32 %v4276, %v4296
      %s4301 = sld [smem:[#allocation3 + $0xb8]]
      %v4302 = vstv %s4301
      %v4303 = vmul.f32 %v4302, %v184
      %v4304 = vmul.f32 %v4302, %v185
      %v4305 = vmul.f32 %v4302, %v186
      %v4306 = vmul.f32 %v4302, %v187
      %v4311 = vrot.slane %v4303, 1
      %v4312 = vrot.slane %v4304, 1
      %v4313 = vsel %vm259, %v4311, %v4312
      %v4314 = vrot.slane %v4305, 1
      %v4315 = vrot.slane %v4306, 1
      %v4316 = vsel %vm259, %v4314, %v4315
      %4317 = vrot.lane.b32.xlu0 %v4313, 124
      %v4318 = vpop.permute.xlu0 %4317
      %4319 = vrot.lane.b32.xlu0 %v4316, 124
      %v4320 = vpop.permute.xlu0 %4319
      %v4323 = vadd.f32 %v4299, %v4318
      %v4324 = vadd.f32 %v4300, %v4320
      %s4325 = sld [smem:[#allocation3 + $0xb9]]
      %v4326 = vstv %s4325
      %v4327 = vmul.f32 %v4326, %v184
      %v4328 = vmul.f32 %v4326, %v185
      %v4329 = vmul.f32 %v4326, %v186
      %v4330 = vmul.f32 %v4326, %v187
      %v4335 = vrot.slane %v4327, 2
      %v4336 = vrot.slane %v4328, 2
      %v4337 = vsel %vm376, %v4335, %v4336
      %v4338 = vrot.slane %v4329, 2
      %v4339 = vrot.slane %v4330, 2
      %v4340 = vsel %vm376, %v4338, %v4339
      %v4343 = vadd.f32 %v4323, %v4337
      %v4344 = vadd.f32 %v4324, %v4340
      %s4345 = sld [smem:[#allocation3 + $0xba]]
      %v4346 = vstv %s4345
      %v4347 = vmul.f32 %v4346, %v184
      %v4348 = vmul.f32 %v4346, %v185
      %v4349 = vmul.f32 %v4346, %v186
      %v4350 = vmul.f32 %v4346, %v187
      %v4355 = vrot.slane %v4347, 2
      %v4356 = vrot.slane %v4348, 2
      %v4357 = vsel %vm376, %v4355, %v4356
      %v4358 = vrot.slane %v4349, 2
      %v4359 = vrot.slane %v4350, 2
      %v4360 = vsel %vm376, %v4358, %v4359
      %4361 = vrot.lane.b32.xlu0 %v4357, 127
      %v4362 = vpop.permute.xlu0 %4361
      %4363 = vrot.lane.b32.xlu0 %v4360, 127
      %v4364 = vpop.permute.xlu0 %4363
      %v4367 = vadd.f32 %v4343, %v4362
      %v4368 = vadd.f32 %v4344, %v4364
      %s4369 = sld [smem:[#allocation3 + $0xbb]]
      %v4370 = vstv %s4369
      %v4371 = vmul.f32 %v4370, %v184
      %v4372 = vmul.f32 %v4370, %v185
      %v4373 = vmul.f32 %v4370, %v186
      %v4374 = vmul.f32 %v4370, %v187
      %v4379 = vrot.slane %v4371, 2
      %v4380 = vrot.slane %v4372, 2
      %v4381 = vsel %vm376, %v4379, %v4380
      %v4382 = vrot.slane %v4373, 2
      %v4383 = vrot.slane %v4374, 2
      %v4384 = vsel %vm376, %v4382, %v4383
      %4385 = vrot.lane.b32.xlu0 %v4381, 126
      %v4386 = vpop.permute.xlu0 %4385
      %4387 = vrot.lane.b32.xlu0 %v4384, 126
      %v4388 = vpop.permute.xlu0 %4387
      %v4391 = vadd.f32 %v4367, %v4386
      %v4392 = vadd.f32 %v4368, %v4388
      %s4393 = sld [smem:[#allocation3 + $0xbc]]
      %v4394 = vstv %s4393
      %v4395 = vmul.f32 %v4394, %v184
      %v4396 = vmul.f32 %v4394, %v185
      %v4397 = vmul.f32 %v4394, %v186
      %v4398 = vmul.f32 %v4394, %v187
      %v4403 = vrot.slane %v4395, 2
      %v4404 = vrot.slane %v4396, 2
      %v4405 = vsel %vm376, %v4403, %v4404
      %v4406 = vrot.slane %v4397, 2
      %v4407 = vrot.slane %v4398, 2
      %v4408 = vsel %vm376, %v4406, %v4407
      %4409 = vrot.lane.b32.xlu0 %v4405, 125
      %v4410 = vpop.permute.xlu0 %4409
      %4411 = vrot.lane.b32.xlu0 %v4408, 125
      %v4412 = vpop.permute.xlu0 %4411
      %v4415 = vadd.f32 %v4391, %v4410
      %v4416 = vadd.f32 %v4392, %v4412
      %s4417 = sld [smem:[#allocation3 + $0xbd]]
      %v4418 = vstv %s4417
      %v4419 = vmul.f32 %v4418, %v184
      %v4420 = vmul.f32 %v4418, %v185
      %v4421 = vmul.f32 %v4418, %v186
      %v4422 = vmul.f32 %v4418, %v187
      %v4427 = vrot.slane %v4419, 2
      %v4428 = vrot.slane %v4420, 2
      %v4429 = vsel %vm376, %v4427, %v4428
      %v4430 = vrot.slane %v4421, 2
      %v4431 = vrot.slane %v4422, 2
      %v4432 = vsel %vm376, %v4430, %v4431
      %4433 = vrot.lane.b32.xlu0 %v4429, 124
      %v4434 = vpop.permute.xlu0 %4433
      %4435 = vrot.lane.b32.xlu0 %v4432, 124
      %v4436 = vpop.permute.xlu0 %4435
      %v4439 = vadd.f32 %v4415, %v4434
      %v4440 = vadd.f32 %v4416, %v4436
      %s4441 = sld [smem:[#allocation3 + $0xbe]]
      %v4442 = vstv %s4441
      %v4443 = vmul.f32 %v4442, %v184
      %v4444 = vmul.f32 %v4442, %v185
      %v4445 = vmul.f32 %v4442, %v186
      %v4446 = vmul.f32 %v4442, %v187
      %v4451 = vrot.slane %v4443, 3
      %v4452 = vrot.slane %v4444, 3
      %v4453 = vsel %vm493, %v4451, %v4452
      %v4454 = vrot.slane %v4445, 3
      %v4455 = vrot.slane %v4446, 3
      %v4456 = vsel %vm493, %v4454, %v4455
      %v4459 = vadd.f32 %v4439, %v4453
      %v4460 = vadd.f32 %v4440, %v4456
      %s4461 = sld [smem:[#allocation3 + $0xbf]]
      %v4462 = vstv %s4461
      %v4463 = vmul.f32 %v4462, %v184
      %v4464 = vmul.f32 %v4462, %v185
      %v4465 = vmul.f32 %v4462, %v186
      %v4466 = vmul.f32 %v4462, %v187
      %v4471 = vrot.slane %v4463, 3
      %v4472 = vrot.slane %v4464, 3
      %v4473 = vsel %vm493, %v4471, %v4472
      %v4474 = vrot.slane %v4465, 3
      %v4475 = vrot.slane %v4466, 3
      %v4476 = vsel %vm493, %v4474, %v4475
      %4477 = vrot.lane.b32.xlu0 %v4473, 127
      %v4478 = vpop.permute.xlu0 %4477
      %4479 = vrot.lane.b32.xlu0 %v4476, 127
      %v4480 = vpop.permute.xlu0 %4479
      %v4483 = vadd.f32 %v4459, %v4478
      %v4484 = vadd.f32 %v4460, %v4480
      %s4485 = sld [smem:[#allocation3 + $0xc0]]
      %v4486 = vstv %s4485
      %v4487 = vmul.f32 %v4486, %v184
      %v4488 = vmul.f32 %v4486, %v185
      %v4489 = vmul.f32 %v4486, %v186
      %v4490 = vmul.f32 %v4486, %v187
      %v4495 = vrot.slane %v4487, 3
      %v4496 = vrot.slane %v4488, 3
      %v4497 = vsel %vm493, %v4495, %v4496
      %v4498 = vrot.slane %v4489, 3
      %v4499 = vrot.slane %v4490, 3
      %v4500 = vsel %vm493, %v4498, %v4499
      %4501 = vrot.lane.b32.xlu0 %v4497, 126
      %v4502 = vpop.permute.xlu0 %4501
      %4503 = vrot.lane.b32.xlu0 %v4500, 126
      %v4504 = vpop.permute.xlu0 %4503
      %v4507 = vadd.f32 %v4483, %v4502
      %v4508 = vadd.f32 %v4484, %v4504
      %s4509 = sld [smem:[#allocation3 + $0xc1]]
      %v4510 = vstv %s4509
      %v4511 = vmul.f32 %v4510, %v184
      %v4512 = vmul.f32 %v4510, %v185
      %v4513 = vmul.f32 %v4510, %v186
      %v4514 = vmul.f32 %v4510, %v187
      %v4519 = vrot.slane %v4511, 3
      %v4520 = vrot.slane %v4512, 3
      %v4521 = vsel %vm493, %v4519, %v4520
      %v4522 = vrot.slane %v4513, 3
      %v4523 = vrot.slane %v4514, 3
      %v4524 = vsel %vm493, %v4522, %v4523
      %4525 = vrot.lane.b32.xlu0 %v4521, 125
      %v4526 = vpop.permute.xlu0 %4525
      %4527 = vrot.lane.b32.xlu0 %v4524, 125
      %v4528 = vpop.permute.xlu0 %4527
      %v4531 = vadd.f32 %v4507, %v4526
      %v4532 = vadd.f32 %v4508, %v4528
      %s4533 = sld [smem:[#allocation3 + $0xc2]]
      %v4534 = vstv %s4533
      %v4535 = vmul.f32 %v4534, %v184
      %v4536 = vmul.f32 %v4534, %v185
      %v4537 = vmul.f32 %v4534, %v186
      %v4538 = vmul.f32 %v4534, %v187
      %v4543 = vrot.slane %v4535, 3
      %v4544 = vrot.slane %v4536, 3
      %v4545 = vsel %vm493, %v4543, %v4544
      %v4546 = vrot.slane %v4537, 3
      %v4547 = vrot.slane %v4538, 3
      %v4548 = vsel %vm493, %v4546, %v4547
      %4549 = vrot.lane.b32.xlu0 %v4545, 124
      %v4550 = vpop.permute.xlu0 %4549
      %4551 = vrot.lane.b32.xlu0 %v4548, 124
      %v4552 = vpop.permute.xlu0 %4551
      %v4555 = vadd.f32 %v4531, %v4550
      %v4556 = vadd.f32 %v4532, %v4552
      %s4557 = sld [smem:[#allocation3 + $0xc3]]
      %v4558 = vstv %s4557
      %v4559 = vmul.f32 %v4558, %v184
      %v4560 = vmul.f32 %v4558, %v185
      %v4561 = vmul.f32 %v4558, %v186
      %v4562 = vmul.f32 %v4558, %v187
      %v4567 = vrot.slane %v4559, 4
      %v4568 = vrot.slane %v4560, 4
      %v4569 = vsel %vm610, %v4567, %v4568
      %v4570 = vrot.slane %v4561, 4
      %v4571 = vrot.slane %v4562, 4
      %v4572 = vsel %vm610, %v4570, %v4571
      %v4575 = vadd.f32 %v4555, %v4569
      %v4576 = vadd.f32 %v4556, %v4572
      %s4577 = sld [smem:[#allocation3 + $0xc4]]
      %v4578 = vstv %s4577
      %v4579 = vmul.f32 %v4578, %v184
      %v4580 = vmul.f32 %v4578, %v185
      %v4581 = vmul.f32 %v4578, %v186
      %v4582 = vmul.f32 %v4578, %v187
      %v4587 = vrot.slane %v4579, 4
      %v4588 = vrot.slane %v4580, 4
      %v4589 = vsel %vm610, %v4587, %v4588
      %v4590 = vrot.slane %v4581, 4
      %v4591 = vrot.slane %v4582, 4
      %v4592 = vsel %vm610, %v4590, %v4591
      %4593 = vrot.lane.b32.xlu0 %v4589, 127
      %v4594 = vpop.permute.xlu0 %4593
      %4595 = vrot.lane.b32.xlu0 %v4592, 127
      %v4596 = vpop.permute.xlu0 %4595
      %v4599 = vadd.f32 %v4575, %v4594
      %v4600 = vadd.f32 %v4576, %v4596
      %s4601 = sld [smem:[#allocation3 + $0xc5]]
      %v4602 = vstv %s4601
      %v4603 = vmul.f32 %v4602, %v184
      %v4604 = vmul.f32 %v4602, %v185
      %v4605 = vmul.f32 %v4602, %v186
      %v4606 = vmul.f32 %v4602, %v187
      %v4611 = vrot.slane %v4603, 4
      %v4612 = vrot.slane %v4604, 4
      %v4613 = vsel %vm610, %v4611, %v4612
      %v4614 = vrot.slane %v4605, 4
      %v4615 = vrot.slane %v4606, 4
      %v4616 = vsel %vm610, %v4614, %v4615
      %4617 = vrot.lane.b32.xlu0 %v4613, 126
      %v4618 = vpop.permute.xlu0 %4617
      %4619 = vrot.lane.b32.xlu0 %v4616, 126
      %v4620 = vpop.permute.xlu0 %4619
      %v4623 = vadd.f32 %v4599, %v4618
      %v4624 = vadd.f32 %v4600, %v4620
      %s4625 = sld [smem:[#allocation3 + $0xc6]]
      %v4626 = vstv %s4625
      %v4627 = vmul.f32 %v4626, %v184
      %v4628 = vmul.f32 %v4626, %v185
      %v4629 = vmul.f32 %v4626, %v186
      %v4630 = vmul.f32 %v4626, %v187
      %v4635 = vrot.slane %v4627, 4
      %v4636 = vrot.slane %v4628, 4
      %v4637 = vsel %vm610, %v4635, %v4636
      %v4638 = vrot.slane %v4629, 4
      %v4639 = vrot.slane %v4630, 4
      %v4640 = vsel %vm610, %v4638, %v4639
      %4641 = vrot.lane.b32.xlu0 %v4637, 125
      %v4642 = vpop.permute.xlu0 %4641
      %4643 = vrot.lane.b32.xlu0 %v4640, 125
      %v4644 = vpop.permute.xlu0 %4643
      %v4647 = vadd.f32 %v4623, %v4642
      %v4648 = vadd.f32 %v4624, %v4644
      %s4649 = sld [smem:[#allocation3 + $0xc7]]
      %v4650 = vstv %s4649
      %v4651 = vmul.f32 %v4650, %v184
      %v4652 = vmul.f32 %v4650, %v185
      %v4653 = vmul.f32 %v4650, %v186
      %v4654 = vmul.f32 %v4650, %v187
      %v4659 = vrot.slane %v4651, 4
      %v4660 = vrot.slane %v4652, 4
      %v4661 = vsel %vm610, %v4659, %v4660
      %v4662 = vrot.slane %v4653, 4
      %v4663 = vrot.slane %v4654, 4
      %v4664 = vsel %vm610, %v4662, %v4663
      %4665 = vrot.lane.b32.xlu0 %v4661, 124
      %v4666 = vpop.permute.xlu0 %4665
      %4667 = vrot.lane.b32.xlu0 %v4664, 124
      %v4668 = vpop.permute.xlu0 %4667
      %v4671 = vadd.f32 %v4647, %v4666
      %v4672 = vadd.f32 %v4648, %v4668
      %4675 = vrot.lane.b32.xlu0 %v4671, 127
      %v4676 = vpop.permute.xlu0 %4675
      %4677 = vrot.lane.b32.xlu0 %v4672, 127
      %v4678 = vpop.permute.xlu0 %4677
      %v4681 = vmax.f32 %v4671, %v4676
      %v4682 = vmax.f32 %v4672, %v4678
      %v4685 = vrot.slane %v4681, 1
      %v4686 = vrot.slane %v4682, 1
      %v4689 = vmax.f32 %v4681, %v4685
      %v4690 = vmax.f32 %v4682, %v4686
      %v4691 = vmul.f32 %v4689, %v739
      %v4692 = vmul.f32 %v4690, %v739
      %v4693 = vsel %vm743, %v4691, 0.0
      %4694 = vadd.xlane.f32.xlu0 %v4693
      %v4695 = vpop.xlane.xlu0 %4694
      %v4696 = vsel %vm743, %v4692, 0.0
      %4697 = vadd.xlane.f32.xlu0 %v4696
      %v4698 = vpop.xlane.xlu0 %4697
      %4701 = vrot.lane.b32.xlu0 %v4691, 64
      %v4702 = vpop.permute.xlu0 %4701
      %4703 = vrot.lane.b32.xlu0 %v4692, 64
      %v4704 = vpop.permute.xlu0 %4703
      %v4707 = vsel %vm758, %v4702, 0.0
      %4708 = vadd.xlane.f32.xlu0 %v4707
      %v4709 = vpop.xlane.xlu0 %4708
      %v4710 = vsel %vm758, %v4704, 0.0
      %4711 = vadd.xlane.f32.xlu0 %v4710
      %v4712 = vpop.xlane.xlu0 %4711
      %s4713 = sld [smem:[#allocation3 + $0xc8]]
      %v4714 = vstv %s4713
      %v4715 = vmul.f32 %v4714, %v184
      %v4716 = vmul.f32 %v4714, %v186
      %s4717 = sld [smem:[#allocation3 + $0xc9]]
      %v4718 = vstv %s4717
      %v4719 = vmul.f32 %v4718, %v184
      %v4720 = vmul.f32 %v4718, %v186
      %4723 = vrot.lane.b32.xlu0 %v4719, 127
      %v4724 = vpop.permute.xlu0 %4723
      %4725 = vrot.lane.b32.xlu0 %v4720, 127
      %v4726 = vpop.permute.xlu0 %4725
      %v4729 = vadd.f32 %v4715, %v4724
      %v4730 = vadd.f32 %v4716, %v4726
      %s4731 = sld [smem:[#allocation3 + $0xca]]
      %v4732 = vstv %s4731
      %v4733 = vmul.f32 %v4732, %v184
      %v4734 = vmul.f32 %v4732, %v186
      %4737 = vrot.lane.b32.xlu0 %v4733, 126
      %v4738 = vpop.permute.xlu0 %4737
      %4739 = vrot.lane.b32.xlu0 %v4734, 126
      %v4740 = vpop.permute.xlu0 %4739
      %v4743 = vadd.f32 %v4729, %v4738
      %v4744 = vadd.f32 %v4730, %v4740
      %s4745 = sld [smem:[#allocation3 + $0xcb]]
      %v4746 = vstv %s4745
      %v4747 = vmul.f32 %v4746, %v184
      %v4748 = vmul.f32 %v4746, %v186
      %4751 = vrot.lane.b32.xlu0 %v4747, 125
      %v4752 = vpop.permute.xlu0 %4751
      %4753 = vrot.lane.b32.xlu0 %v4748, 125
      %v4754 = vpop.permute.xlu0 %4753
      %v4757 = vadd.f32 %v4743, %v4752
      %v4758 = vadd.f32 %v4744, %v4754
      %s4759 = sld [smem:[#allocation3 + $0xcc]]
      %v4760 = vstv %s4759
      %v4761 = vmul.f32 %v4760, %v184
      %v4762 = vmul.f32 %v4760, %v186
      %4765 = vrot.lane.b32.xlu0 %v4761, 124
      %v4766 = vpop.permute.xlu0 %4765
      %4767 = vrot.lane.b32.xlu0 %v4762, 124
      %v4768 = vpop.permute.xlu0 %4767
      %v4771 = vadd.f32 %v4757, %v4766
      %v4772 = vadd.f32 %v4758, %v4768
      %s4773 = sld [smem:[#allocation3 + $0xcd]]
      %v4774 = vstv %s4773
      %v4775 = vmul.f32 %v4774, %v184
      %v4776 = vmul.f32 %v4774, %v185
      %v4777 = vmul.f32 %v4774, %v186
      %v4778 = vmul.f32 %v4774, %v187
      %v4783 = vrot.slane %v4775, 1
      %v4784 = vrot.slane %v4776, 1
      %v4785 = vsel %vm259, %v4783, %v4784
      %v4786 = vrot.slane %v4777, 1
      %v4787 = vrot.slane %v4778, 1
      %v4788 = vsel %vm259, %v4786, %v4787
      %v4791 = vadd.f32 %v4771, %v4785
      %v4792 = vadd.f32 %v4772, %v4788
      %s4793 = sld [smem:[#allocation3 + $0xce]]
      %v4794 = vstv %s4793
      %v4795 = vmul.f32 %v4794, %v184
      %v4796 = vmul.f32 %v4794, %v185
      %v4797 = vmul.f32 %v4794, %v186
      %v4798 = vmul.f32 %v4794, %v187
      %v4803 = vrot.slane %v4795, 1
      %v4804 = vrot.slane %v4796, 1
      %v4805 = vsel %vm259, %v4803, %v4804
      %v4806 = vrot.slane %v4797, 1
      %v4807 = vrot.slane %v4798, 1
      %v4808 = vsel %vm259, %v4806, %v4807
      %4809 = vrot.lane.b32.xlu0 %v4805, 127
      %v4810 = vpop.permute.xlu0 %4809
      %4811 = vrot.lane.b32.xlu0 %v4808, 127
      %v4812 = vpop.permute.xlu0 %4811
      %v4815 = vadd.f32 %v4791, %v4810
      %v4816 = vadd.f32 %v4792, %v4812
      %s4817 = sld [smem:[#allocation3 + $0xcf]]
      %v4818 = vstv %s4817
      %v4819 = vmul.f32 %v4818, %v184
      %v4820 = vmul.f32 %v4818, %v185
      %v4821 = vmul.f32 %v4818, %v186
      %v4822 = vmul.f32 %v4818, %v187
      %v4827 = vrot.slane %v4819, 1
      %v4828 = vrot.slane %v4820, 1
      %v4829 = vsel %vm259, %v4827, %v4828
      %v4830 = vrot.slane %v4821, 1
      %v4831 = vrot.slane %v4822, 1
      %v4832 = vsel %vm259, %v4830, %v4831
      %4833 = vrot.lane.b32.xlu0 %v4829, 126
      %v4834 = vpop.permute.xlu0 %4833
      %4835 = vrot.lane.b32.xlu0 %v4832, 126
      %v4836 = vpop.permute.xlu0 %4835
      %v4839 = vadd.f32 %v4815, %v4834
      %v4840 = vadd.f32 %v4816, %v4836
      %s4841 = sld [smem:[#allocation3 + $0xd0]]
      %v4842 = vstv %s4841
      %v4843 = vmul.f32 %v4842, %v184
      %v4844 = vmul.f32 %v4842, %v185
      %v4845 = vmul.f32 %v4842, %v186
      %v4846 = vmul.f32 %v4842, %v187
      %v4851 = vrot.slane %v4843, 1
      %v4852 = vrot.slane %v4844, 1
      %v4853 = vsel %vm259, %v4851, %v4852
      %v4854 = vrot.slane %v4845, 1
      %v4855 = vrot.slane %v4846, 1
      %v4856 = vsel %vm259, %v4854, %v4855
      %4857 = vrot.lane.b32.xlu0 %v4853, 125
      %v4858 = vpop.permute.xlu0 %4857
      %4859 = vrot.lane.b32.xlu0 %v4856, 125
      %v4860 = vpop.permute.xlu0 %4859
      %v4863 = vadd.f32 %v4839, %v4858
      %v4864 = vadd.f32 %v4840, %v4860
      %s4865 = sld [smem:[#allocation3 + $0xd1]]
      %v4866 = vstv %s4865
      %v4867 = vmul.f32 %v4866, %v184
      %v4868 = vmul.f32 %v4866, %v185
      %v4869 = vmul.f32 %v4866, %v186
      %v4870 = vmul.f32 %v4866, %v187
      %v4875 = vrot.slane %v4867, 1
      %v4876 = vrot.slane %v4868, 1
      %v4877 = vsel %vm259, %v4875, %v4876
      %v4878 = vrot.slane %v4869, 1
      %v4879 = vrot.slane %v4870, 1
      %v4880 = vsel %vm259, %v4878, %v4879
      %4881 = vrot.lane.b32.xlu0 %v4877, 124
      %v4882 = vpop.permute.xlu0 %4881
      %4883 = vrot.lane.b32.xlu0 %v4880, 124
      %v4884 = vpop.permute.xlu0 %4883
      %v4887 = vadd.f32 %v4863, %v4882
      %v4888 = vadd.f32 %v4864, %v4884
      %s4889 = sld [smem:[#allocation3 + $0xd2]]
      %v4890 = vstv %s4889
      %v4891 = vmul.f32 %v4890, %v184
      %v4892 = vmul.f32 %v4890, %v185
      %v4893 = vmul.f32 %v4890, %v186
      %v4894 = vmul.f32 %v4890, %v187
      %v4899 = vrot.slane %v4891, 2
      %v4900 = vrot.slane %v4892, 2
      %v4901 = vsel %vm376, %v4899, %v4900
      %v4902 = vrot.slane %v4893, 2
      %v4903 = vrot.slane %v4894, 2
      %v4904 = vsel %vm376, %v4902, %v4903
      %v4907 = vadd.f32 %v4887, %v4901
      %v4908 = vadd.f32 %v4888, %v4904
      %s4909 = sld [smem:[#allocation3 + $0xd3]]
      %v4910 = vstv %s4909
      %v4911 = vmul.f32 %v4910, %v184
      %v4912 = vmul.f32 %v4910, %v185
      %v4913 = vmul.f32 %v4910, %v186
      %v4914 = vmul.f32 %v4910, %v187
      %v4919 = vrot.slane %v4911, 2
      %v4920 = vrot.slane %v4912, 2
      %v4921 = vsel %vm376, %v4919, %v4920
      %v4922 = vrot.slane %v4913, 2
      %v4923 = vrot.slane %v4914, 2
      %v4924 = vsel %vm376, %v4922, %v4923
      %4925 = vrot.lane.b32.xlu0 %v4921, 127
      %v4926 = vpop.permute.xlu0 %4925
      %4927 = vrot.lane.b32.xlu0 %v4924, 127
      %v4928 = vpop.permute.xlu0 %4927
      %v4931 = vadd.f32 %v4907, %v4926
      %v4932 = vadd.f32 %v4908, %v4928
      %s4933 = sld [smem:[#allocation3 + $0xd4]]
      %v4934 = vstv %s4933
      %v4935 = vmul.f32 %v4934, %v184
      %v4936 = vmul.f32 %v4934, %v185
      %v4937 = vmul.f32 %v4934, %v186
      %v4938 = vmul.f32 %v4934, %v187
      %v4943 = vrot.slane %v4935, 2
      %v4944 = vrot.slane %v4936, 2
      %v4945 = vsel %vm376, %v4943, %v4944
      %v4946 = vrot.slane %v4937, 2
      %v4947 = vrot.slane %v4938, 2
      %v4948 = vsel %vm376, %v4946, %v4947
      %4949 = vrot.lane.b32.xlu0 %v4945, 126
      %v4950 = vpop.permute.xlu0 %4949
      %4951 = vrot.lane.b32.xlu0 %v4948, 126
      %v4952 = vpop.permute.xlu0 %4951
      %v4955 = vadd.f32 %v4931, %v4950
      %v4956 = vadd.f32 %v4932, %v4952
      %s4957 = sld [smem:[#allocation3 + $0xd5]]
      %v4958 = vstv %s4957
      %v4959 = vmul.f32 %v4958, %v184
      %v4960 = vmul.f32 %v4958, %v185
      %v4961 = vmul.f32 %v4958, %v186
      %v4962 = vmul.f32 %v4958, %v187
      %v4967 = vrot.slane %v4959, 2
      %v4968 = vrot.slane %v4960, 2
      %v4969 = vsel %vm376, %v4967, %v4968
      %v4970 = vrot.slane %v4961, 2
      %v4971 = vrot.slane %v4962, 2
      %v4972 = vsel %vm376, %v4970, %v4971
      %4973 = vrot.lane.b32.xlu0 %v4969, 125
      %v4974 = vpop.permute.xlu0 %4973
      %4975 = vrot.lane.b32.xlu0 %v4972, 125
      %v4976 = vpop.permute.xlu0 %4975
      %v4979 = vadd.f32 %v4955, %v4974
      %v4980 = vadd.f32 %v4956, %v4976
      %s4981 = sld [smem:[#allocation3 + $0xd6]]
      %v4982 = vstv %s4981
      %v4983 = vmul.f32 %v4982, %v184
      %v4984 = vmul.f32 %v4982, %v185
      %v4985 = vmul.f32 %v4982, %v186
      %v4986 = vmul.f32 %v4982, %v187
      %v4991 = vrot.slane %v4983, 2
      %v4992 = vrot.slane %v4984, 2
      %v4993 = vsel %vm376, %v4991, %v4992
      %v4994 = vrot.slane %v4985, 2
      %v4995 = vrot.slane %v4986, 2
      %v4996 = vsel %vm376, %v4994, %v4995
      %4997 = vrot.lane.b32.xlu0 %v4993, 124
      %v4998 = vpop.permute.xlu0 %4997
      %4999 = vrot.lane.b32.xlu0 %v4996, 124
      %v5000 = vpop.permute.xlu0 %4999
      %v5003 = vadd.f32 %v4979, %v4998
      %v5004 = vadd.f32 %v4980, %v5000
      %s5005 = sld [smem:[#allocation3 + $0xd7]]
      %v5006 = vstv %s5005
      %v5007 = vmul.f32 %v5006, %v184
      %v5008 = vmul.f32 %v5006, %v185
      %v5009 = vmul.f32 %v5006, %v186
      %v5010 = vmul.f32 %v5006, %v187
      %v5015 = vrot.slane %v5007, 3
      %v5016 = vrot.slane %v5008, 3
      %v5017 = vsel %vm493, %v5015, %v5016
      %v5018 = vrot.slane %v5009, 3
      %v5019 = vrot.slane %v5010, 3
      %v5020 = vsel %vm493, %v5018, %v5019
      %v5023 = vadd.f32 %v5003, %v5017
      %v5024 = vadd.f32 %v5004, %v5020
      %s5025 = sld [smem:[#allocation3 + $0xd8]]
      %v5026 = vstv %s5025
      %v5027 = vmul.f32 %v5026, %v184
      %v5028 = vmul.f32 %v5026, %v185
      %v5029 = vmul.f32 %v5026, %v186
      %v5030 = vmul.f32 %v5026, %v187
      %v5035 = vrot.slane %v5027, 3
      %v5036 = vrot.slane %v5028, 3
      %v5037 = vsel %vm493, %v5035, %v5036
      %v5038 = vrot.slane %v5029, 3
      %v5039 = vrot.slane %v5030, 3
      %v5040 = vsel %vm493, %v5038, %v5039
      %5041 = vrot.lane.b32.xlu0 %v5037, 127
      %v5042 = vpop.permute.xlu0 %5041
      %5043 = vrot.lane.b32.xlu0 %v5040, 127
      %v5044 = vpop.permute.xlu0 %5043
      %v5047 = vadd.f32 %v5023, %v5042
      %v5048 = vadd.f32 %v5024, %v5044
      %s5049 = sld [smem:[#allocation3 + $0xd9]]
      %v5050 = vstv %s5049
      %v5051 = vmul.f32 %v5050, %v184
      %v5052 = vmul.f32 %v5050, %v185
      %v5053 = vmul.f32 %v5050, %v186
      %v5054 = vmul.f32 %v5050, %v187
      %v5059 = vrot.slane %v5051, 3
      %v5060 = vrot.slane %v5052, 3
      %v5061 = vsel %vm493, %v5059, %v5060
      %v5062 = vrot.slane %v5053, 3
      %v5063 = vrot.slane %v5054, 3
      %v5064 = vsel %vm493, %v5062, %v5063
      %5065 = vrot.lane.b32.xlu0 %v5061, 126
      %v5066 = vpop.permute.xlu0 %5065
      %5067 = vrot.lane.b32.xlu0 %v5064, 126
      %v5068 = vpop.permute.xlu0 %5067
      %v5071 = vadd.f32 %v5047, %v5066
      %v5072 = vadd.f32 %v5048, %v5068
      %s5073 = sld [smem:[#allocation3 + $0xda]]
      %v5074 = vstv %s5073
      %v5075 = vmul.f32 %v5074, %v184
      %v5076 = vmul.f32 %v5074, %v185
      %v5077 = vmul.f32 %v5074, %v186
      %v5078 = vmul.f32 %v5074, %v187
      %v5083 = vrot.slane %v5075, 3
      %v5084 = vrot.slane %v5076, 3
      %v5085 = vsel %vm493, %v5083, %v5084
      %v5086 = vrot.slane %v5077, 3
      %v5087 = vrot.slane %v5078, 3
      %v5088 = vsel %vm493, %v5086, %v5087
      %5089 = vrot.lane.b32.xlu0 %v5085, 125
      %v5090 = vpop.permute.xlu0 %5089
      %5091 = vrot.lane.b32.xlu0 %v5088, 125
      %v5092 = vpop.permute.xlu0 %5091
      %v5095 = vadd.f32 %v5071, %v5090
      %v5096 = vadd.f32 %v5072, %v5092
      %s5097 = sld [smem:[#allocation3 + $0xdb]]
      %v5098 = vstv %s5097
      %v5099 = vmul.f32 %v5098, %v184
      %v5100 = vmul.f32 %v5098, %v185
      %v5101 = vmul.f32 %v5098, %v186
      %v5102 = vmul.f32 %v5098, %v187
      %v5107 = vrot.slane %v5099, 3
      %v5108 = vrot.slane %v5100, 3
      %v5109 = vsel %vm493, %v5107, %v5108
      %v5110 = vrot.slane %v5101, 3
      %v5111 = vrot.slane %v5102, 3
      %v5112 = vsel %vm493, %v5110, %v5111
      %5113 = vrot.lane.b32.xlu0 %v5109, 124
      %v5114 = vpop.permute.xlu0 %5113
      %5115 = vrot.lane.b32.xlu0 %v5112, 124
      %v5116 = vpop.permute.xlu0 %5115
      %v5119 = vadd.f32 %v5095, %v5114
      %v5120 = vadd.f32 %v5096, %v5116
      %s5121 = sld [smem:[#allocation3 + $0xdc]]
      %v5122 = vstv %s5121
      %v5123 = vmul.f32 %v5122, %v184
      %v5124 = vmul.f32 %v5122, %v185
      %v5125 = vmul.f32 %v5122, %v186
      %v5126 = vmul.f32 %v5122, %v187
      %v5131 = vrot.slane %v5123, 4
      %v5132 = vrot.slane %v5124, 4
      %v5133 = vsel %vm610, %v5131, %v5132
      %v5134 = vrot.slane %v5125, 4
      %v5135 = vrot.slane %v5126, 4
      %v5136 = vsel %vm610, %v5134, %v5135
      %v5139 = vadd.f32 %v5119, %v5133
      %v5140 = vadd.f32 %v5120, %v5136
      %s5141 = sld [smem:[#allocation3 + $0xdd]]
      %v5142 = vstv %s5141
      %v5143 = vmul.f32 %v5142, %v184
      %v5144 = vmul.f32 %v5142, %v185
      %v5145 = vmul.f32 %v5142, %v186
      %v5146 = vmul.f32 %v5142, %v187
      %v5151 = vrot.slane %v5143, 4
      %v5152 = vrot.slane %v5144, 4
      %v5153 = vsel %vm610, %v5151, %v5152
      %v5154 = vrot.slane %v5145, 4
      %v5155 = vrot.slane %v5146, 4
      %v5156 = vsel %vm610, %v5154, %v5155
      %5157 = vrot.lane.b32.xlu0 %v5153, 127
      %v5158 = vpop.permute.xlu0 %5157
      %5159 = vrot.lane.b32.xlu0 %v5156, 127
      %v5160 = vpop.permute.xlu0 %5159
      %v5163 = vadd.f32 %v5139, %v5158
      %v5164 = vadd.f32 %v5140, %v5160
      %s5165 = sld [smem:[#allocation3 + $0xde]]
      %v5166 = vstv %s5165
      %v5167 = vmul.f32 %v5166, %v184
      %v5168 = vmul.f32 %v5166, %v185
      %v5169 = vmul.f32 %v5166, %v186
      %v5170 = vmul.f32 %v5166, %v187
      %v5175 = vrot.slane %v5167, 4
      %v5176 = vrot.slane %v5168, 4
      %v5177 = vsel %vm610, %v5175, %v5176
      %v5178 = vrot.slane %v5169, 4
      %v5179 = vrot.slane %v5170, 4
      %v5180 = vsel %vm610, %v5178, %v5179
      %5181 = vrot.lane.b32.xlu0 %v5177, 126
      %v5182 = vpop.permute.xlu0 %5181
      %5183 = vrot.lane.b32.xlu0 %v5180, 126
      %v5184 = vpop.permute.xlu0 %5183
      %v5187 = vadd.f32 %v5163, %v5182
      %v5188 = vadd.f32 %v5164, %v5184
      %s5189 = sld [smem:[#allocation3 + $0xdf]]
      %v5190 = vstv %s5189
      %v5191 = vmul.f32 %v5190, %v184
      %v5192 = vmul.f32 %v5190, %v185
      %v5193 = vmul.f32 %v5190, %v186
      %v5194 = vmul.f32 %v5190, %v187
      %v5199 = vrot.slane %v5191, 4
      %v5200 = vrot.slane %v5192, 4
      %v5201 = vsel %vm610, %v5199, %v5200
      %v5202 = vrot.slane %v5193, 4
      %v5203 = vrot.slane %v5194, 4
      %v5204 = vsel %vm610, %v5202, %v5203
      %5205 = vrot.lane.b32.xlu0 %v5201, 125
      %v5206 = vpop.permute.xlu0 %5205
      %5207 = vrot.lane.b32.xlu0 %v5204, 125
      %v5208 = vpop.permute.xlu0 %5207
      %v5211 = vadd.f32 %v5187, %v5206
      %v5212 = vadd.f32 %v5188, %v5208
      %s5213 = sld [smem:[#allocation3 + $0xe0]]
      %v5214 = vstv %s5213
      %v5215 = vmul.f32 %v5214, %v184
      %v5216 = vmul.f32 %v5214, %v185
      %v5217 = vmul.f32 %v5214, %v186
      %v5218 = vmul.f32 %v5214, %v187
      %v5223 = vrot.slane %v5215, 4
      %v5224 = vrot.slane %v5216, 4
      %v5225 = vsel %vm610, %v5223, %v5224
      %v5226 = vrot.slane %v5217, 4
      %v5227 = vrot.slane %v5218, 4
      %v5228 = vsel %vm610, %v5226, %v5227
      %5229 = vrot.lane.b32.xlu0 %v5225, 124
      %v5230 = vpop.permute.xlu0 %5229
      %5231 = vrot.lane.b32.xlu0 %v5228, 124
      %v5232 = vpop.permute.xlu0 %5231
      %v5235 = vadd.f32 %v5211, %v5230
      %v5236 = vadd.f32 %v5212, %v5232
      %5239 = vrot.lane.b32.xlu0 %v5235, 127
      %v5240 = vpop.permute.xlu0 %5239
      %5241 = vrot.lane.b32.xlu0 %v5236, 127
      %v5242 = vpop.permute.xlu0 %5241
      %v5245 = vmax.f32 %v5235, %v5240
      %v5246 = vmax.f32 %v5236, %v5242
      %v5249 = vrot.slane %v5245, 1
      %v5250 = vrot.slane %v5246, 1
      %v5253 = vmax.f32 %v5245, %v5249
      %v5254 = vmax.f32 %v5246, %v5250
      %v5255 = vmul.f32 %v5253, %v739
      %v5256 = vmul.f32 %v5254, %v739
      %v5257 = vsel %vm743, %v5255, 0.0
      %5258 = vadd.xlane.f32.xlu0 %v5257
      %v5259 = vpop.xlane.xlu0 %5258
      %v5260 = vsel %vm743, %v5256, 0.0
      %5261 = vadd.xlane.f32.xlu0 %v5260
      %v5262 = vpop.xlane.xlu0 %5261
      %5265 = vrot.lane.b32.xlu0 %v5255, 64
      %v5266 = vpop.permute.xlu0 %5265
      %5267 = vrot.lane.b32.xlu0 %v5256, 64
      %v5268 = vpop.permute.xlu0 %5267
      %v5271 = vsel %vm758, %v5266, 0.0
      %5272 = vadd.xlane.f32.xlu0 %v5271
      %v5273 = vpop.xlane.xlu0 %5272
      %v5274 = vsel %vm758, %v5268, 0.0
      %5275 = vadd.xlane.f32.xlu0 %v5274
      %v5276 = vpop.xlane.xlu0 %5275
      %s5277 = sld [smem:[#allocation3 + $0xe1]]
      %v5278 = vstv %s5277
      %v5279 = vmul.f32 %v5278, %v184
      %v5280 = vmul.f32 %v5278, %v186
      %s5281 = sld [smem:[#allocation3 + $0xe2]]
      %v5282 = vstv %s5281
      %v5283 = vmul.f32 %v5282, %v184
      %v5284 = vmul.f32 %v5282, %v186
      %5287 = vrot.lane.b32.xlu0 %v5283, 127
      %v5288 = vpop.permute.xlu0 %5287
      %5289 = vrot.lane.b32.xlu0 %v5284, 127
      %v5290 = vpop.permute.xlu0 %5289
      %v5293 = vadd.f32 %v5279, %v5288
      %v5294 = vadd.f32 %v5280, %v5290
      %s5295 = sld [smem:[#allocation3 + $0xe3]]
      %v5296 = vstv %s5295
      %v5297 = vmul.f32 %v5296, %v184
      %v5298 = vmul.f32 %v5296, %v186
      %5301 = vrot.lane.b32.xlu0 %v5297, 126
      %v5302 = vpop.permute.xlu0 %5301
      %5303 = vrot.lane.b32.xlu0 %v5298, 126
      %v5304 = vpop.permute.xlu0 %5303
      %v5307 = vadd.f32 %v5293, %v5302
      %v5308 = vadd.f32 %v5294, %v5304
      %s5309 = sld [smem:[#allocation3 + $0xe4]]
      %v5310 = vstv %s5309
      %v5311 = vmul.f32 %v5310, %v184
      %v5312 = vmul.f32 %v5310, %v186
      %5315 = vrot.lane.b32.xlu0 %v5311, 125
      %v5316 = vpop.permute.xlu0 %5315
      %5317 = vrot.lane.b32.xlu0 %v5312, 125
      %v5318 = vpop.permute.xlu0 %5317
      %v5321 = vadd.f32 %v5307, %v5316
      %v5322 = vadd.f32 %v5308, %v5318
      %s5323 = sld [smem:[#allocation3 + $0xe5]]
      %v5324 = vstv %s5323
      %v5325 = vmul.f32 %v5324, %v184
      %v5326 = vmul.f32 %v5324, %v186
      %5329 = vrot.lane.b32.xlu0 %v5325, 124
      %v5330 = vpop.permute.xlu0 %5329
      %5331 = vrot.lane.b32.xlu0 %v5326, 124
      %v5332 = vpop.permute.xlu0 %5331
      %v5335 = vadd.f32 %v5321, %v5330
      %v5336 = vadd.f32 %v5322, %v5332
      %s5337 = sld [smem:[#allocation3 + $0xe6]]
      %v5338 = vstv %s5337
      %v5339 = vmul.f32 %v5338, %v184
      %v5340 = vmul.f32 %v5338, %v185
      %v5341 = vmul.f32 %v5338, %v186
      %v5342 = vmul.f32 %v5338, %v187
      %v5347 = vrot.slane %v5339, 1
      %v5348 = vrot.slane %v5340, 1
      %v5349 = vsel %vm259, %v5347, %v5348
      %v5350 = vrot.slane %v5341, 1
      %v5351 = vrot.slane %v5342, 1
      %v5352 = vsel %vm259, %v5350, %v5351
      %v5355 = vadd.f32 %v5335, %v5349
      %v5356 = vadd.f32 %v5336, %v5352
      %s5357 = sld [smem:[#allocation3 + $0xe7]]
      %v5358 = vstv %s5357
      %v5359 = vmul.f32 %v5358, %v184
      %v5360 = vmul.f32 %v5358, %v185
      %v5361 = vmul.f32 %v5358, %v186
      %v5362 = vmul.f32 %v5358, %v187
      %v5367 = vrot.slane %v5359, 1
      %v5368 = vrot.slane %v5360, 1
      %v5369 = vsel %vm259, %v5367, %v5368
      %v5370 = vrot.slane %v5361, 1
      %v5371 = vrot.slane %v5362, 1
      %v5372 = vsel %vm259, %v5370, %v5371
      %5373 = vrot.lane.b32.xlu0 %v5369, 127
      %v5374 = vpop.permute.xlu0 %5373
      %5375 = vrot.lane.b32.xlu0 %v5372, 127
      %v5376 = vpop.permute.xlu0 %5375
      %v5379 = vadd.f32 %v5355, %v5374
      %v5380 = vadd.f32 %v5356, %v5376
      %s5381 = sld [smem:[#allocation3 + $0xe8]]
      %v5382 = vstv %s5381
      %v5383 = vmul.f32 %v5382, %v184
      %v5384 = vmul.f32 %v5382, %v185
      %v5385 = vmul.f32 %v5382, %v186
      %v5386 = vmul.f32 %v5382, %v187
      %v5391 = vrot.slane %v5383, 1
      %v5392 = vrot.slane %v5384, 1
      %v5393 = vsel %vm259, %v5391, %v5392
      %v5394 = vrot.slane %v5385, 1
      %v5395 = vrot.slane %v5386, 1
      %v5396 = vsel %vm259, %v5394, %v5395
      %5397 = vrot.lane.b32.xlu0 %v5393, 126
      %v5398 = vpop.permute.xlu0 %5397
      %5399 = vrot.lane.b32.xlu0 %v5396, 126
      %v5400 = vpop.permute.xlu0 %5399
      %v5403 = vadd.f32 %v5379, %v5398
      %v5404 = vadd.f32 %v5380, %v5400
      %s5405 = sld [smem:[#allocation3 + $0xe9]]
      %v5406 = vstv %s5405
      %v5407 = vmul.f32 %v5406, %v184
      %v5408 = vmul.f32 %v5406, %v185
      %v5409 = vmul.f32 %v5406, %v186
      %v5410 = vmul.f32 %v5406, %v187
      %v5415 = vrot.slane %v5407, 1
      %v5416 = vrot.slane %v5408, 1
      %v5417 = vsel %vm259, %v5415, %v5416
      %v5418 = vrot.slane %v5409, 1
      %v5419 = vrot.slane %v5410, 1
      %v5420 = vsel %vm259, %v5418, %v5419
      %5421 = vrot.lane.b32.xlu0 %v5417, 125
      %v5422 = vpop.permute.xlu0 %5421
      %5423 = vrot.lane.b32.xlu0 %v5420, 125
      %v5424 = vpop.permute.xlu0 %5423
      %v5427 = vadd.f32 %v5403, %v5422
      %v5428 = vadd.f32 %v5404, %v5424
      %s5429 = sld [smem:[#allocation3 + $0xea]]
      %v5430 = vstv %s5429
      %v5431 = vmul.f32 %v5430, %v184
      %v5432 = vmul.f32 %v5430, %v185
      %v5433 = vmul.f32 %v5430, %v186
      %v5434 = vmul.f32 %v5430, %v187
      %v5439 = vrot.slane %v5431, 1
      %v5440 = vrot.slane %v5432, 1
      %v5441 = vsel %vm259, %v5439, %v5440
      %v5442 = vrot.slane %v5433, 1
      %v5443 = vrot.slane %v5434, 1
      %v5444 = vsel %vm259, %v5442, %v5443
      %5445 = vrot.lane.b32.xlu0 %v5441, 124
      %v5446 = vpop.permute.xlu0 %5445
      %5447 = vrot.lane.b32.xlu0 %v5444, 124
      %v5448 = vpop.permute.xlu0 %5447
      %v5451 = vadd.f32 %v5427, %v5446
      %v5452 = vadd.f32 %v5428, %v5448
      %s5453 = sld [smem:[#allocation3 + $0xeb]]
      %v5454 = vstv %s5453
      %v5455 = vmul.f32 %v5454, %v184
      %v5456 = vmul.f32 %v5454, %v185
      %v5457 = vmul.f32 %v5454, %v186
      %v5458 = vmul.f32 %v5454, %v187
      %v5463 = vrot.slane %v5455, 2
      %v5464 = vrot.slane %v5456, 2
      %v5465 = vsel %vm376, %v5463, %v5464
      %v5466 = vrot.slane %v5457, 2
      %v5467 = vrot.slane %v5458, 2
      %v5468 = vsel %vm376, %v5466, %v5467
      %v5471 = vadd.f32 %v5451, %v5465
      %v5472 = vadd.f32 %v5452, %v5468
      %s5473 = sld [smem:[#allocation3 + $0xec]]
      %v5474 = vstv %s5473
      %v5475 = vmul.f32 %v5474, %v184
      %v5476 = vmul.f32 %v5474, %v185
      %v5477 = vmul.f32 %v5474, %v186
      %v5478 = vmul.f32 %v5474, %v187
      %v5483 = vrot.slane %v5475, 2
      %v5484 = vrot.slane %v5476, 2
      %v5485 = vsel %vm376, %v5483, %v5484
      %v5486 = vrot.slane %v5477, 2
      %v5487 = vrot.slane %v5478, 2
      %v5488 = vsel %vm376, %v5486, %v5487
      %5489 = vrot.lane.b32.xlu0 %v5485, 127
      %v5490 = vpop.permute.xlu0 %5489
      %5491 = vrot.lane.b32.xlu0 %v5488, 127
      %v5492 = vpop.permute.xlu0 %5491
      %v5495 = vadd.f32 %v5471, %v5490
      %v5496 = vadd.f32 %v5472, %v5492
      %s5497 = sld [smem:[#allocation3 + $0xed]]
      %v5498 = vstv %s5497
      %v5499 = vmul.f32 %v5498, %v184
      %v5500 = vmul.f32 %v5498, %v185
      %v5501 = vmul.f32 %v5498, %v186
      %v5502 = vmul.f32 %v5498, %v187
      %v5507 = vrot.slane %v5499, 2
      %v5508 = vrot.slane %v5500, 2
      %v5509 = vsel %vm376, %v5507, %v5508
      %v5510 = vrot.slane %v5501, 2
      %v5511 = vrot.slane %v5502, 2
      %v5512 = vsel %vm376, %v5510, %v5511
      %5513 = vrot.lane.b32.xlu0 %v5509, 126
      %v5514 = vpop.permute.xlu0 %5513
      %5515 = vrot.lane.b32.xlu0 %v5512, 126
      %v5516 = vpop.permute.xlu0 %5515
      %v5519 = vadd.f32 %v5495, %v5514
      %v5520 = vadd.f32 %v5496, %v5516
      %s5521 = sld [smem:[#allocation3 + $0xee]]
      %v5522 = vstv %s5521
      %v5523 = vmul.f32 %v5522, %v184
      %v5524 = vmul.f32 %v5522, %v185
      %v5525 = vmul.f32 %v5522, %v186
      %v5526 = vmul.f32 %v5522, %v187
      %v5531 = vrot.slane %v5523, 2
      %v5532 = vrot.slane %v5524, 2
      %v5533 = vsel %vm376, %v5531, %v5532
      %v5534 = vrot.slane %v5525, 2
      %v5535 = vrot.slane %v5526, 2
      %v5536 = vsel %vm376, %v5534, %v5535
      %5537 = vrot.lane.b32.xlu0 %v5533, 125
      %v5538 = vpop.permute.xlu0 %5537
      %5539 = vrot.lane.b32.xlu0 %v5536, 125
      %v5540 = vpop.permute.xlu0 %5539
      %v5543 = vadd.f32 %v5519, %v5538
      %v5544 = vadd.f32 %v5520, %v5540
      %s5545 = sld [smem:[#allocation3 + $0xef]]
      %v5546 = vstv %s5545
      %v5547 = vmul.f32 %v5546, %v184
      %v5548 = vmul.f32 %v5546, %v185
      %v5549 = vmul.f32 %v5546, %v186
      %v5550 = vmul.f32 %v5546, %v187
      %v5555 = vrot.slane %v5547, 2
      %v5556 = vrot.slane %v5548, 2
      %v5557 = vsel %vm376, %v5555, %v5556
      %v5558 = vrot.slane %v5549, 2
      %v5559 = vrot.slane %v5550, 2
      %v5560 = vsel %vm376, %v5558, %v5559
      %5561 = vrot.lane.b32.xlu0 %v5557, 124
      %v5562 = vpop.permute.xlu0 %5561
      %5563 = vrot.lane.b32.xlu0 %v5560, 124
      %v5564 = vpop.permute.xlu0 %5563
      %v5567 = vadd.f32 %v5543, %v5562
      %v5568 = vadd.f32 %v5544, %v5564
      %s5569 = sld [smem:[#allocation3 + $0xf0]]
      %v5570 = vstv %s5569
      %v5571 = vmul.f32 %v5570, %v184
      %v5572 = vmul.f32 %v5570, %v185
      %v5573 = vmul.f32 %v5570, %v186
      %v5574 = vmul.f32 %v5570, %v187
      %v5579 = vrot.slane %v5571, 3
      %v5580 = vrot.slane %v5572, 3
      %v5581 = vsel %vm493, %v5579, %v5580
      %v5582 = vrot.slane %v5573, 3
      %v5583 = vrot.slane %v5574, 3
      %v5584 = vsel %vm493, %v5582, %v5583
      %v5587 = vadd.f32 %v5567, %v5581
      %v5588 = vadd.f32 %v5568, %v5584
      %s5589 = sld [smem:[#allocation3 + $0xf1]]
      %v5590 = vstv %s5589
      %v5591 = vmul.f32 %v5590, %v184
      %v5592 = vmul.f32 %v5590, %v185
      %v5593 = vmul.f32 %v5590, %v186
      %v5594 = vmul.f32 %v5590, %v187
      %v5599 = vrot.slane %v5591, 3
      %v5600 = vrot.slane %v5592, 3
      %v5601 = vsel %vm493, %v5599, %v5600
      %v5602 = vrot.slane %v5593, 3
      %v5603 = vrot.slane %v5594, 3
      %v5604 = vsel %vm493, %v5602, %v5603
      %5605 = vrot.lane.b32.xlu0 %v5601, 127
      %v5606 = vpop.permute.xlu0 %5605
      %5607 = vrot.lane.b32.xlu0 %v5604, 127
      %v5608 = vpop.permute.xlu0 %5607
      %v5611 = vadd.f32 %v5587, %v5606
      %v5612 = vadd.f32 %v5588, %v5608
      %s5613 = sld [smem:[#allocation3 + $0xf2]]
      %v5614 = vstv %s5613
      %v5615 = vmul.f32 %v5614, %v184
      %v5616 = vmul.f32 %v5614, %v185
      %v5617 = vmul.f32 %v5614, %v186
      %v5618 = vmul.f32 %v5614, %v187
      %v5623 = vrot.slane %v5615, 3
      %v5624 = vrot.slane %v5616, 3
      %v5625 = vsel %vm493, %v5623, %v5624
      %v5626 = vrot.slane %v5617, 3
      %v5627 = vrot.slane %v5618, 3
      %v5628 = vsel %vm493, %v5626, %v5627
      %5629 = vrot.lane.b32.xlu0 %v5625, 126
      %v5630 = vpop.permute.xlu0 %5629
      %5631 = vrot.lane.b32.xlu0 %v5628, 126
      %v5632 = vpop.permute.xlu0 %5631
      %v5635 = vadd.f32 %v5611, %v5630
      %v5636 = vadd.f32 %v5612, %v5632
      %s5637 = sld [smem:[#allocation3 + $0xf3]]
      %v5638 = vstv %s5637
      %v5639 = vmul.f32 %v5638, %v184
      %v5640 = vmul.f32 %v5638, %v185
      %v5641 = vmul.f32 %v5638, %v186
      %v5642 = vmul.f32 %v5638, %v187
      %v5647 = vrot.slane %v5639, 3
      %v5648 = vrot.slane %v5640, 3
      %v5649 = vsel %vm493, %v5647, %v5648
      %v5650 = vrot.slane %v5641, 3
      %v5651 = vrot.slane %v5642, 3
      %v5652 = vsel %vm493, %v5650, %v5651
      %5653 = vrot.lane.b32.xlu0 %v5649, 125
      %v5654 = vpop.permute.xlu0 %5653
      %5655 = vrot.lane.b32.xlu0 %v5652, 125
      %v5656 = vpop.permute.xlu0 %5655
      %v5659 = vadd.f32 %v5635, %v5654
      %v5660 = vadd.f32 %v5636, %v5656
      %s5661 = sld [smem:[#allocation3 + $0xf4]]
      %v5662 = vstv %s5661
      %v5663 = vmul.f32 %v5662, %v184
      %v5664 = vmul.f32 %v5662, %v185
      %v5665 = vmul.f32 %v5662, %v186
      %v5666 = vmul.f32 %v5662, %v187
      %v5671 = vrot.slane %v5663, 3
      %v5672 = vrot.slane %v5664, 3
      %v5673 = vsel %vm493, %v5671, %v5672
      %v5674 = vrot.slane %v5665, 3
      %v5675 = vrot.slane %v5666, 3
      %v5676 = vsel %vm493, %v5674, %v5675
      %5677 = vrot.lane.b32.xlu0 %v5673, 124
      %v5678 = vpop.permute.xlu0 %5677
      %5679 = vrot.lane.b32.xlu0 %v5676, 124
      %v5680 = vpop.permute.xlu0 %5679
      %v5683 = vadd.f32 %v5659, %v5678
      %v5684 = vadd.f32 %v5660, %v5680
      %s5685 = sld [smem:[#allocation3 + $0xf5]]
      %v5686 = vstv %s5685
      %v5687 = vmul.f32 %v5686, %v184
      %v5688 = vmul.f32 %v5686, %v185
      %v5689 = vmul.f32 %v5686, %v186
      %v5690 = vmul.f32 %v5686, %v187
      %v5695 = vrot.slane %v5687, 4
      %v5696 = vrot.slane %v5688, 4
      %v5697 = vsel %vm610, %v5695, %v5696
      %v5698 = vrot.slane %v5689, 4
      %v5699 = vrot.slane %v5690, 4
      %v5700 = vsel %vm610, %v5698, %v5699
      %v5703 = vadd.f32 %v5683, %v5697
      %v5704 = vadd.f32 %v5684, %v5700
      %s5705 = sld [smem:[#allocation3 + $0xf6]]
      %v5706 = vstv %s5705
      %v5707 = vmul.f32 %v5706, %v184
      %v5708 = vmul.f32 %v5706, %v185
      %v5709 = vmul.f32 %v5706, %v186
      %v5710 = vmul.f32 %v5706, %v187
      %v5715 = vrot.slane %v5707, 4
      %v5716 = vrot.slane %v5708, 4
      %v5717 = vsel %vm610, %v5715, %v5716
      %v5718 = vrot.slane %v5709, 4
      %v5719 = vrot.slane %v5710, 4
      %v5720 = vsel %vm610, %v5718, %v5719
      %5721 = vrot.lane.b32.xlu0 %v5717, 127
      %v5722 = vpop.permute.xlu0 %5721
      %5723 = vrot.lane.b32.xlu0 %v5720, 127
      %v5724 = vpop.permute.xlu0 %5723
      %v5727 = vadd.f32 %v5703, %v5722
      %v5728 = vadd.f32 %v5704, %v5724
      %s5729 = sld [smem:[#allocation3 + $0xf7]]
      %v5730 = vstv %s5729
      %v5731 = vmul.f32 %v5730, %v184
      %v5732 = vmul.f32 %v5730, %v185
      %v5733 = vmul.f32 %v5730, %v186
      %v5734 = vmul.f32 %v5730, %v187
      %v5739 = vrot.slane %v5731, 4
      %v5740 = vrot.slane %v5732, 4
      %v5741 = vsel %vm610, %v5739, %v5740
      %v5742 = vrot.slane %v5733, 4
      %v5743 = vrot.slane %v5734, 4
      %v5744 = vsel %vm610, %v5742, %v5743
      %5745 = vrot.lane.b32.xlu0 %v5741, 126
      %v5746 = vpop.permute.xlu0 %5745
      %5747 = vrot.lane.b32.xlu0 %v5744, 126
      %v5748 = vpop.permute.xlu0 %5747
      %v5751 = vadd.f32 %v5727, %v5746
      %v5752 = vadd.f32 %v5728, %v5748
      %s5753 = sld [smem:[#allocation3 + $0xf8]]
      %v5754 = vstv %s5753
      %v5755 = vmul.f32 %v5754, %v184
      %v5756 = vmul.f32 %v5754, %v185
      %v5757 = vmul.f32 %v5754, %v186
      %v5758 = vmul.f32 %v5754, %v187
      %v5763 = vrot.slane %v5755, 4
      %v5764 = vrot.slane %v5756, 4
      %v5765 = vsel %vm610, %v5763, %v5764
      %v5766 = vrot.slane %v5757, 4
      %v5767 = vrot.slane %v5758, 4
      %v5768 = vsel %vm610, %v5766, %v5767
      %5769 = vrot.lane.b32.xlu0 %v5765, 125
      %v5770 = vpop.permute.xlu0 %5769
      %5771 = vrot.lane.b32.xlu0 %v5768, 125
      %v5772 = vpop.permute.xlu0 %5771
      %v5775 = vadd.f32 %v5751, %v5770
      %v5776 = vadd.f32 %v5752, %v5772
      %s5777 = sld [smem:[#allocation3 + $0xf9]]
      %v5778 = vstv %s5777
      %v5779 = vmul.f32 %v5778, %v184
      %v5780 = vmul.f32 %v5778, %v185
      %v5781 = vmul.f32 %v5778, %v186
      %v5782 = vmul.f32 %v5778, %v187
      %v5787 = vrot.slane %v5779, 4
      %v5788 = vrot.slane %v5780, 4
      %v5789 = vsel %vm610, %v5787, %v5788
      %v5790 = vrot.slane %v5781, 4
      %v5791 = vrot.slane %v5782, 4
      %v5792 = vsel %vm610, %v5790, %v5791
      %5793 = vrot.lane.b32.xlu0 %v5789, 124
      %v5794 = vpop.permute.xlu0 %5793
      %5795 = vrot.lane.b32.xlu0 %v5792, 124
      %v5796 = vpop.permute.xlu0 %5795
      %v5799 = vadd.f32 %v5775, %v5794
      %v5800 = vadd.f32 %v5776, %v5796
      %5803 = vrot.lane.b32.xlu0 %v5799, 127
      %v5804 = vpop.permute.xlu0 %5803
      %5805 = vrot.lane.b32.xlu0 %v5800, 127
      %v5806 = vpop.permute.xlu0 %5805
      %v5809 = vmax.f32 %v5799, %v5804
      %v5810 = vmax.f32 %v5800, %v5806
      %v5813 = vrot.slane %v5809, 1
      %v5814 = vrot.slane %v5810, 1
      %v5817 = vmax.f32 %v5809, %v5813
      %v5818 = vmax.f32 %v5810, %v5814
      %v5819 = vmul.f32 %v5817, %v739
      %v5820 = vmul.f32 %v5818, %v739
      %v5821 = vsel %vm743, %v5819, 0.0
      %5822 = vadd.xlane.f32.xlu0 %v5821
      %v5823 = vpop.xlane.xlu0 %5822
      %v5824 = vsel %vm743, %v5820, 0.0
      %5825 = vadd.xlane.f32.xlu0 %v5824
      %v5826 = vpop.xlane.xlu0 %5825
      %5829 = vrot.lane.b32.xlu0 %v5819, 64
      %v5830 = vpop.permute.xlu0 %5829
      %5831 = vrot.lane.b32.xlu0 %v5820, 64
      %v5832 = vpop.permute.xlu0 %5831
      %v5835 = vsel %vm758, %v5830, 0.0
      %5836 = vadd.xlane.f32.xlu0 %v5835
      %v5837 = vpop.xlane.xlu0 %5836
      %v5838 = vsel %vm758, %v5832, 0.0
      %5839 = vadd.xlane.f32.xlu0 %v5838
      %v5840 = vpop.xlane.xlu0 %5839
      %vm5841 = vcmask 7168
      %v5842 = vsel %vm5841, %v746, %v1311
      %v5843 = vsel %vm5841, %v749, %v1314
      %vm5844 = vcmask 15360
      %v5845 = vsel %vm5844, %v5842, %v1875
      %v5846 = vsel %vm5844, %v5843, %v1878
      %vm5847 = vcmask 23552
      %v5848 = vsel %vm5847, %v5845, %v2439
      %v5849 = vsel %vm5847, %v5846, %v2442
      %vm5850 = vcmask 31744
      %v5851 = vsel %vm5850, %v5848, %v3003
      %v5852 = vsel %vm5850, %v5849, %v3006
      %vm5853 = vcmask 39936
      %v5854 = vsel %vm5853, %v5851, %v3567
      %v5855 = vsel %vm5853, %v5852, %v3570
      %vm5856 = vcmask 48128
      %v5857 = vsel %vm5856, %v5854, %v4131
      %v5858 = vsel %vm5856, %v5855, %v4134
      %vm5859 = vcmask 56320
      %v5860 = vsel %vm5859, %v5857, %v4695
      %v5861 = vsel %vm5859, %v5858, %v4698
      %vm5862 = vcmask 64512
      %v5863 = vsel %vm5862, %v5860, %v5259
      %v5864 = vsel %vm5862, %v5861, %v5262
      %vm5865 = vcmask 72704
      %v5866 = vsel %vm5865, %v5863, %v5823
      %v5867 = vsel %vm5865, %v5864, %v5826
      %vm5868 = vcmask 80896
      %v5869 = vsel %vm5868, %v5866, %v761
      %v5870 = vsel %vm5868, %v5867, %v764
      %vm5871 = vcmask 89088
      %v5872 = vsel %vm5871, %v5869, %v1325
      %v5873 = vsel %vm5871, %v5870, %v1328
      %vm5874 = vcmask 97280
      %v5875 = vsel %vm5874, %v5872, %v1889
      %v5876 = vsel %vm5874, %v5873, %v1892
      %vm5877 = vcmask 105472
      %v5878 = vsel %vm5877, %v5875, %v2453
      %v5879 = vsel %vm5877, %v5876, %v2456
      %vm5880 = vcmask 113664
      %v5881 = vsel %vm5880, %v5878, %v3017
      %v5882 = vsel %vm5880, %v5879, %v3020
      %vm5883 = vcmask 121856
      %v5884 = vsel %vm5883, %v5881, %v3581
      %v5885 = vsel %vm5883, %v5882, %v3584
      %v5886 = vsel %vm5841, %v4145, %v4709
      %v5887 = vsel %vm5841, %v4148, %v4712
      %v5888 = vsel %vm5844, %v5886, %v5273
      %v5889 = vsel %vm5844, %v5887, %v5276
      %v5890 = vsel %vm5847, %v5888, %v5837
      %v5891 = vsel %vm5847, %v5889, %v5840
      %v5892 = vsel %vm5850, %v5890, 0.0
      %v5893 = vsel %vm5850, %v5891, 0.0
      %5896 = vrot.lane.b32.xlu0 %v5892, 16
      %v5897 = vpop.permute.xlu0 %5896
      %5898 = vrot.lane.b32.xlu0 %v5893, 16
      %v5899 = vpop.permute.xlu0 %5898
      %vm5902 = vcmask 130048
      %v5903 = vsel %vm5902, %v5884, %v5897
      %v5904 = vsel %vm5902, %v5885, %v5899
      %v5905 = vld [vmem:[%s3] sm:$0x1]
      %v5907 = vlaneseq
      %v5908 = vshrl.u32 %v5907, 7
      %v5909 = vsub.s32 0, %v5908
      %v5910 = vrot.slane %v5905, %v5909
      %v5912 = vadd.f32 %v5903, %v5910
      %v5913 = vadd.f32 %v5904, %v5910
      %5914 = vst [vmem:[%s182] sm:$0x7f] %v5912
      %5915 = vst [vmem:[%s182 + $0x8] sm:$0x7f] %v5913
      %s5916 = smul.u32 2, %s21
      %p5917 = scmp.lt.s32.totalorder %s5916, 3
      %s5918 = scalar_select %p5917, %s5916, 3
      %s5919 = smul.addr %s5918, 8
      %s5920 = scalar_lea.vmem %s4, %s5919
      // Predicated region
      $region33: #{toy_model_forward.1} parent=31 // pred_check
        %p5921 = pneg %p107
      $region34: #{toy_model_forward.1} parent=31 // pred_check_branch
        %5923 = sbr.rel (%p5921) target = $region36
      $region35: #{toy_model_forward.1} parent=31 // pred_region
        %s5924 = smul.u32 2, %s21
      $region36: #{toy_model_forward.1} parent=31 // pred_fallthru
        _
    $region32: #{toy_model_forward.1} parent=5 // pred_fallthru
      _
    %p5925 = scmp.le.s32.totalorder 2, %s16
    // Predicated region
    $region37: #{toy_model_forward.1} parent=5 // pred_check
      %p5926 = pneg %p5925
    $region38: #{toy_model_forward.1} parent=5 // pred_check_branch
      %5928 = sbr.rel (%p5926) target = $region40
    $region39: #{toy_model_forward.1} parent=5 // pred_region
      %s5929 = ssub.s32 %s16, 2
      // Predicated region
      $region41: #{toy_model_forward.1} parent=39 // pred_check
        %p5930 = pneg %p113
      $region42: #{toy_model_forward.1} parent=39 // pred_check_branch
        %5932 = sbr.rel (%p5930) target = $region44
      $region43: #{toy_model_forward.1} parent=39 // pred_region
        %s5933 = smul.u32 2, %s22
        %p5934 = scmp.lt.s32.totalorder %s5933, 3
        %s5935 = scalar_select %p5934, %s5933, 3
        %s5936 = smul.addr %s5935, 8
        %s5937 = scalar_lea.vmem %s4, %s5936
      $region44: #{toy_model_forward.1} parent=39 // pred_fallthru
        _
    $region40: #{toy_model_forward.1} parent=5 // pred_fallthru
      _
  $region6: #{toy_model_forward.1} parent=0 // loop_footer
    %s20 = sadd.s32 1, %s16
  $region7: #{toy_model_forward.1} parent=0 // loop_footer_branch
    %15 = sbr.rel target = $region3
  $region8: #{toy_model_forward.1} parent=0 // loop_exit
    _

</llo_original>
